<compile_context>
chip_gen: v6e
topology: v6e:2x2x1
jax: 0.10.0
libtpu: 0.0.40
codegen_flags: <defaults>
</compile_context>

<pallas_src>
import jax
import jax.numpy as jnp
from jax.experimental import pallas as pl
from jax.experimental.pallas import tpu as pltpu

IN_DIM = 64 * 64        # 4096
H1, H2, H3 = 512, 512, 256
OUT_DIM = 10
OUT_PAD = 128           # lane-dense padded output width
K_CHUNK = 2048          # streaming chunk of the 4096-wide first-layer K axis


def _round_up(a, m):
    return ((a + m - 1) // m) * m


def mlp_kernel(x_ref, w1_ref, b1_ref, w2_ref, b2_ref, w3_ref, b3_ref,
               w4_ref, b4_ref, o_ref, h1_acc):
    """Grid = (batch tiles, K chunks).  Axis 1 walks K_CHUNK slices of
    (x, w1); partial first-layer products accumulate into an f32 VMEM
    scratch.  Layers 2-4 (VMEM-resident weights) run once per batch tile on
    the last K step."""
    k = pl.program_id(1)

    @pl.when(k == 0)
    def _():
        h1_acc[...] = jnp.zeros_like(h1_acc)

    # bf16 x bf16 matmul on the MXU, f32 accumulation.  x is already bf16.
    h1_acc[...] += jnp.dot(x_ref[...], w1_ref[...],
                           preferred_element_type=jnp.float32)

    @pl.when(k == pl.num_programs(1) - 1)
    def _():
        h1 = jnp.maximum(h1_acc[...] + b1_ref[...], 0.0)

        h2 = jnp.dot(h1.astype(jnp.bfloat16), w2_ref[...],
                     preferred_element_type=jnp.float32) + b2_ref[...]
        h2 = jnp.maximum(h2, 0.0)

        h3 = jnp.dot(h2.astype(jnp.bfloat16), w3_ref[...],
                     preferred_element_type=jnp.float32) + b3_ref[...]
        h3 = jnp.maximum(h3, 0.0)

        h4 = jnp.dot(h3.astype(jnp.bfloat16), w4_ref[...],
                     preferred_element_type=jnp.float32) + b4_ref[...]
        o_ref[...] = h4.astype(o_ref.dtype)


@jax.jit
def mlp_forward(x, params):
    """x: (B, 4096) float32/bf16.
    params: w1..w3 bf16 (in, out), w4 bf16 padded to (256, 128),
            b1..b3 f32 (1, dim), b4 f32 padded to (1, 128)."""
    B = x.shape[0]

    # Batch tiling: one "parallel" grid axis of B_TILE-row tiles.
    B_TILE = 256 if B > 256 else _round_up(max(B, 1), 8)
    B_pad = _round_up(B, B_TILE)
    if B_pad != B:
        x = jnp.pad(x, ((0, B_pad - B), (0, 0)))
    # Cast once here; no per-step convert inside the K loop.
    x = x.astype(jnp.bfloat16)

    n_b = B_pad // B_TILE
    n_k = IN_DIM // K_CHUNK

    flops = 2 * B_pad * (IN_DIM * H1 + H1 * H2 + H2 * H3 + H3 * OUT_PAD)
    bytes_accessed = (
        B_pad * IN_DIM * 2                                      # bf16 activations in
        + 2 * (IN_DIM * H1 + H1 * H2 + H2 * H3 + H3 * OUT_PAD)  # bf16 weights
        + 4 * (H1 + H2 + H3 + OUT_PAD)                          # f32 biases
        + B_pad * OUT_PAD * 4)                                  # f32 output

    # NOTE: the constant-index resident operands (b1, w2, b2, w3, b3, w4, b4)
    # keep the default double-buffering; total VMEM stays well under the
    # 32 MiB limit even at B_TILE=256 / K_CHUNK=2048 (~9 MiB), so the
    # single-buffer (pl.Buffered(1)) refinement is left out for portability.
    grid_spec = pltpu.PrefetchScalarGridSpec(
        num_scalar_prefetch=0,
        grid=(n_b, n_k),
        in_specs=[
            pl.BlockSpec((B_TILE, K_CHUNK), lambda b, k: (b, k)),  # x: B,K tiled
            pl.BlockSpec((K_CHUNK, H1), lambda b, k: (k, 0)),      # w1: K-streamed
            pl.BlockSpec((1, H1), lambda b, k: (0, 0)),            # b1
            pl.BlockSpec((H1, H2), lambda b, k: (0, 0)),           # w2 (resident)
            pl.BlockSpec((1, H2), lambda b, k: (0, 0)),            # b2
            pl.BlockSpec((H2, H3), lambda b, k: (0, 0)),           # w3 (resident)
            pl.BlockSpec((1, H3), lambda b, k: (0, 0)),            # b3
            pl.BlockSpec((H3, OUT_PAD), lambda b, k: (0, 0)),      # w4 padded
            pl.BlockSpec((1, OUT_PAD), lambda b, k: (0, 0)),       # b4 padded
        ],
        out_specs=pl.BlockSpec((B_TILE, OUT_PAD), lambda b, k: (b, 0)),
        scratch_shapes=[pltpu.VMEM((B_TILE, H1), jnp.float32)],    # layer-1 acc
    )

    out_padded = pl.pallas_call(
        mlp_kernel,
        out_shape=jax.ShapeDtypeStruct((B_pad, OUT_PAD), jnp.float32),
        grid_spec=grid_spec,
        compiler_params=pltpu.CompilerParams(
            # batch axis parallel (megacore on v7x), K axis is a reduction.
            dimension_semantics=("parallel", "arbitrary"),
            vmem_limit_bytes=32 << 20,          # safe on v7x (64 MiB physical)
        ),
        cost_estimate=pl.CostEstimate(
            flops=flops, transcendentals=0, bytes_accessed=bytes_accessed),
    )(x, params["w1"], params["b1"], params["w2"], params["b2"],
      params["w3"], params["b3"], params["w4"], params["b4"])

    return out_padded[:B, :OUT_DIM]


def init_params(key):
    """PyTorch nn.Linear-style init: U(-1/sqrt(fan_in), 1/sqrt(fan_in)).
    Weights stored (in, out) in bf16 (halves HBM traffic); biases stay f32.
    The final layer is zero-padded to OUT_PAD columns once, here (the padded
    output columns are exactly zero and sliced off in the wrapper)."""
    dims = [(IN_DIM, H1), (H1, H2), (H2, H3), (H3, OUT_DIM)]
    params = {}
    keys = jax.random.split(key, 2 * len(dims))
    for i, (fan_in, fan_out) in enumerate(dims):
        bound = 1.0 / jnp.sqrt(fan_in)
        w = jax.random.uniform(keys[2 * i], (fan_in, fan_out),
                               minval=-bound, maxval=bound, dtype=jnp.float32)
        b = jax.random.uniform(keys[2 * i + 1], (1, fan_out),
                               minval=-bound, maxval=bound, dtype=jnp.float32)
        if fan_out == OUT_DIM:  # pad layer 4 to lane-dense width at init time
            w = jnp.pad(w, ((0, 0), (0, OUT_PAD - OUT_DIM)))
            b = jnp.pad(b, ((0, 0), (0, OUT_PAD - OUT_DIM)))
        params[f"w{i + 1}"] = w.astype(jnp.bfloat16)
        params[f"b{i + 1}"] = b  # f32 bias, added after f32 accumulation
    return params


def reference_forward(x, params):
    """Pure-JAX reference using the same bf16-input / f32-accumulate matmul
    precision as the kernel (standard TPU mixed-precision recipe).
    NOTE: this is a deliberate precision change vs the f32 PyTorch Net."""
    def dense(h, w, b, relu):
        y = jnp.dot(h.astype(jnp.bfloat16), w,
                    preferred_element_type=jnp.float32) + b
        return jnp.maximum(y, 0.0) if relu else y

    h = dense(x, params["w1"], params["b1"], True)
    h = dense(h, params["w2"], params["b2"], True)
    h = dense(h, params["w3"], params["b3"], True)
    return dense(h, params["w4"], params["b4"], False)[:, :OUT_DIM]


if __name__ == "__main__":
    key = jax.random.PRNGKey(0)
    k_params, k_x = jax.random.split(key)

    params = init_params(k_params)
    B = 8  # small demo batch; larger B uses batch-tiled "parallel" grid axis
    x = jax.random.normal(k_x, (B, IN_DIM), dtype=jnp.float32)

    out = jax.block_until_ready(mlp_forward(x, params))

    ref = reference_forward(x, params)
    assert out.shape == (B, OUT_DIM), out.shape
    assert jnp.allclose(out, ref, atol=1e-3, rtol=1e-3), "mismatch vs reference"

    print("KERNEL_OK")
</pallas_src>

<mosaic_0001>
module attributes {stable_mosaic.version = 11 : i64} {
  func.func @mlp_kernel(%arg0: i32, %arg1: i32, %arg2: memref<8x2048xbf16, #tpu.memory_space<vmem>>, %arg3: memref<2048x512xbf16, #tpu.memory_space<vmem>>, %arg4: memref<1x512xf32, #tpu.memory_space<vmem>>, %arg5: memref<512x512xbf16, #tpu.memory_space<vmem>>, %arg6: memref<1x512xf32, #tpu.memory_space<vmem>>, %arg7: memref<512x256xbf16, #tpu.memory_space<vmem>>, %arg8: memref<1x256xf32, #tpu.memory_space<vmem>>, %arg9: memref<256x128xbf16, #tpu.memory_space<vmem>>, %arg10: memref<1x128xf32, #tpu.memory_space<vmem>>, %arg11: memref<8x128xf32, #tpu.memory_space<vmem>>, %arg12: memref<8x512xf32, #tpu.memory_space<vmem>>) attributes {dimension_semantics = [#tpu.dimension_semantics<parallel>, #tpu.dimension_semantics<arbitrary>], iteration_bounds = array<i64: 1, 2>, scalar_prefetch = 0 : i64, scratch_operands = 1 : i64, tpu.core_type = #tpu.core_type<tc>, window_params = [{transform_indices = @transform_0, window_bounds = array<i64: 8, 2048>}, {transform_indices = @transform_1, window_bounds = array<i64: 2048, 512>}, {pipeline_mode = #tpu.pipeline_mode<synchronous>, transform_indices = @transform_2, window_bounds = array<i64: 1, 512>}, {pipeline_mode = #tpu.pipeline_mode<synchronous>, transform_indices = @transform_3, window_bounds = array<i64: 512, 512>}, {pipeline_mode = #tpu.pipeline_mode<synchronous>, transform_indices = @transform_4, window_bounds = array<i64: 1, 512>}, {pipeline_mode = #tpu.pipeline_mode<synchronous>, transform_indices = @transform_5, window_bounds = array<i64: 512, 256>}, {pipeline_mode = #tpu.pipeline_mode<synchronous>, transform_indices = @transform_6, window_bounds = array<i64: 1, 256>}, {pipeline_mode = #tpu.pipeline_mode<synchronous>, transform_indices = @transform_7, window_bounds = array<i64: 256, 128>}, {pipeline_mode = #tpu.pipeline_mode<synchronous>, transform_indices = @transform_8, window_bounds = array<i64: 1, 128>}, {transform_indices = @transform_9, window_bounds = array<i64: 8, 128>}]} {
    %c0_i32 = arith.constant 0 : i32
    %0 = arith.cmpi eq, %arg1, %c0_i32 : i32
    %1 = arith.extui %0 : i1 to i32
    %c0_i32_0 = arith.constant 0 : i32
    %2 = arith.cmpi ne, %1, %c0_i32_0 : i32
    scf.if %2 {
      %cst_9 = arith.constant 0.000000e+00 : f32
      %12 = vector.broadcast %cst_9 : f32 to vector<8x512xf32>
      %c0_10 = arith.constant 0 : index
      %c0_11 = arith.constant 0 : index
      %13 = vector.load %arg12[%c0_10, %c0_11] : memref<8x512xf32, #tpu.memory_space<vmem>>, vector<8x512xf32>
      tpu.vector_store %arg12[%c0_10, %c0_11], %12 {strides = array<i32>} : memref<8x512xf32, #tpu.memory_space<vmem>>, vector<8x512xf32>,
    } else {
    }
    %c0 = arith.constant 0 : index
    %c0_1 = arith.constant 0 : index
    %3 = vector.load %arg12[%c0, %c0_1] : memref<8x512xf32, #tpu.memory_space<vmem>>, vector<8x512xf32>
    %c0_2 = arith.constant 0 : index
    %c0_3 = arith.constant 0 : index
    %4 = vector.load %arg2[%c0_2, %c0_3] : memref<8x2048xbf16, #tpu.memory_space<vmem>>, vector<8x2048xbf16>
    %c0_4 = arith.constant 0 : index
    %c0_5 = arith.constant 0 : index
    %5 = vector.load %arg3[%c0_4, %c0_5] : memref<2048x512xbf16, #tpu.memory_space<vmem>>, vector<2048x512xbf16>
    %cst = arith.constant dense<0.000000e+00> : vector<8x512xf32>
    %6 = tpu.matmul %4, %5, %cst {dimension_numbers = #tpu.dot_dimension_numbers<[1], [0], [0], [1], [0, 0, 1, 1], [], []>} : vector<8x2048xbf16>, vector<2048x512xbf16>, vector<8x512xf32> -> vector<8x512xf32>
    %7 = arith.addf %3, %6 : vector<8x512xf32>
    %c0_6 = arith.constant 0 : index
    %c0_7 = arith.constant 0 : index
    %8 = vector.load %arg12[%c0_6, %c0_7] : memref<8x512xf32, #tpu.memory_space<vmem>>, vector<8x512xf32>
    tpu.vector_store %arg12[%c0_6, %c0_7], %7 {strides = array<i32>} : memref<8x512xf32, #tpu.memory_space<vmem>>, vector<8x512xf32>,
    %c1_i32 = arith.constant 1 : i32
    %9 = arith.cmpi eq, %arg1, %c1_i32 : i32
    %10 = arith.extui %9 : i1 to i32
    %c0_i32_8 = arith.constant 0 : i32
    %11 = arith.cmpi ne, %10, %c0_i32_8 : i32
    scf.if %11 {
      %c0_9 = arith.constant 0 : index
      %c0_10 = arith.constant 0 : index
      %12 = vector.load %arg12[%c0_9, %c0_10] : memref<8x512xf32, #tpu.memory_space<vmem>>, vector<8x512xf32>
      %c0_11 = arith.constant 0 : index
      %c0_12 = arith.constant 0 : index
      %13 = vector.load %arg4[%c0_11, %c0_12] : memref<1x512xf32, #tpu.memory_space<vmem>>, vector<1x512xf32>
      %14 = vector.broadcast %13 : vector<1x512xf32> to vector<8x512xf32>
      %15 = arith.addf %12, %14 : vector<8x512xf32>
      %cst_13 = arith.constant 0.000000e+00 : f32
      %16 = vector.broadcast %cst_13 : f32 to vector<8x512xf32>
      %17 = arith.maximumf %15, %16 : vector<8x512xf32>
      %18 = arith.truncf %17 : vector<8x512xf32> to vector<8x512xbf16>
      %c0_14 = arith.constant 0 : index
      %c0_15 = arith.constant 0 : index
      %19 = vector.load %arg5[%c0_14, %c0_15] : memref<512x512xbf16, #tpu.memory_space<vmem>>, vector<512x512xbf16>
      %cst_16 = arith.constant dense<0.000000e+00> : vector<8x512xf32>
      %20 = tpu.matmul %18, %19, %cst_16 {dimension_numbers = #tpu.dot_dimension_numbers<[1], [0], [0], [1], [0, 0, 1, 1], [], []>} : vector<8x512xbf16>, vector<512x512xbf16>, vector<8x512xf32> -> vector<8x512xf32>
      %c0_17 = arith.constant 0 : index
      %c0_18 = arith.constant 0 : index
      %21 = vector.load %arg6[%c0_17, %c0_18] : memref<1x512xf32, #tpu.memory_space<vmem>>, vector<1x512xf32>
      %22 = vector.broadcast %21 : vector<1x512xf32> to vector<8x512xf32>
      %23 = arith.addf %20, %22 : vector<8x512xf32>
      %cst_19 = arith.constant 0.000000e+00 : f32
      %24 = vector.broadcast %cst_19 : f32 to vector<8x512xf32>
      %25 = arith.maximumf %23, %24 : vector<8x512xf32>
      %26 = arith.truncf %25 : vector<8x512xf32> to vector<8x512xbf16>
      %c0_20 = arith.constant 0 : index
      %c0_21 = arith.constant 0 : index
      %27 = vector.load %arg7[%c0_20, %c0_21] : memref<512x256xbf16, #tpu.memory_space<vmem>>, vector<512x256xbf16>
      %cst_22 = arith.constant dense<0.000000e+00> : vector<8x256xf32>
      %28 = tpu.matmul %26, %27, %cst_22 {dimension_numbers = #tpu.dot_dimension_numbers<[1], [0], [0], [1], [0, 0, 1, 1], [], []>} : vector<8x512xbf16>, vector<512x256xbf16>, vector<8x256xf32> -> vector<8x256xf32>
      %c0_23 = arith.constant 0 : index
      %c0_24 = arith.constant 0 : index
      %29 = vector.load %arg8[%c0_23, %c0_24] : memref<1x256xf32, #tpu.memory_space<vmem>>, vector<1x256xf32>
      %30 = vector.broadcast %29 : vector<1x256xf32> to vector<8x256xf32>
      %31 = arith.addf %28, %30 : vector<8x256xf32>
      %cst_25 = arith.constant 0.000000e+00 : f32
      %32 = vector.broadcast %cst_25 : f32 to vector<8x256xf32>
      %33 = arith.maximumf %31, %32 : vector<8x256xf32>
      %34 = arith.truncf %33 : vector<8x256xf32> to vector<8x256xbf16>
      %c0_26 = arith.constant 0 : index
      %c0_27 = arith.constant 0 : index
      %35 = vector.load %arg9[%c0_26, %c0_27] : memref<256x128xbf16, #tpu.memory_space<vmem>>, vector<256x128xbf16>
      %cst_28 = arith.constant dense<0.000000e+00> : vector<8x128xf32>
      %36 = tpu.matmul %34, %35, %cst_28 {dimension_numbers = #tpu.dot_dimension_numbers<[1], [0], [0], [1], [0, 0, 1, 1], [], []>} : vector<8x256xbf16>, vector<256x128xbf16>, vector<8x128xf32> -> vector<8x128xf32>
      %c0_29 = arith.constant 0 : index
      %c0_30 = arith.constant 0 : index
      %37 = vector.load %arg10[%c0_29, %c0_30] : memref<1x128xf32, #tpu.memory_space<vmem>>, vector<1x128xf32>
      %38 = vector.broadcast %37 : vector<1x128xf32> to vector<8x128xf32>
      %39 = arith.addf %36, %38 : vector<8x128xf32>
      %c0_31 = arith.constant 0 : index
      %c0_32 = arith.constant 0 : index
      %40 = vector.load %arg11[%c0_31, %c0_32] : memref<8x128xf32, #tpu.memory_space<vmem>>, vector<8x128xf32>
      tpu.vector_store %arg11[%c0_31, %c0_32], %39 {strides = array<i32>} : memref<8x128xf32, #tpu.memory_space<vmem>>, vector<8x128xf32>,
    } else {
    }
    return
  }
  func.func @transform_0(%arg0: i32, %arg1: i32) -> (i32, i32) {
    %c0_i32 = arith.constant 0 : i32
    return %arg0, %arg1 : i32, i32
  }
  func.func @transform_1(%arg0: i32, %arg1: i32) -> (i32, i32) {
    %c0_i32 = arith.constant 0 : i32
    %c0_i32_0 = arith.constant 0 : i32
    return %arg1, %c0_i32 : i32, i32
  }
  func.func @transform_2(%arg0: i32, %arg1: i32) -> (i32, i32) {
    %c0_i32 = arith.constant 0 : i32
    %c0_i32_0 = arith.constant 0 : i32
    %c0_i32_1 = arith.constant 0 : i32
    return %c0_i32, %c0_i32_0 : i32, i32
  }
  func.func @transform_3(%arg0: i32, %arg1: i32) -> (i32, i32) {
    %c0_i32 = arith.constant 0 : i32
    %c0_i32_0 = arith.constant 0 : i32
    %c0_i32_1 = arith.constant 0 : i32
    return %c0_i32, %c0_i32_0 : i32, i32
  }
  func.func @transform_4(%arg0: i32, %arg1: i32) -> (i32, i32) {
    %c0_i32 = arith.constant 0 : i32
    %c0_i32_0 = arith.constant 0 : i32
    %c0_i32_1 = arith.constant 0 : i32
    return %c0_i32, %c0_i32_0 : i32, i32
  }
  func.func @transform_5(%arg0: i32, %arg1: i32) -> (i32, i32) {
    %c0_i32 = arith.constant 0 : i32
    %c0_i32_0 = arith.constant 0 : i32
    %c0_i32_1 = arith.constant 0 : i32
    return %c0_i32, %c0_i32_0 : i32, i32
  }
  func.func @transform_6(%arg0: i32, %arg1: i32) -> (i32, i32) {
    %c0_i32 = arith.constant 0 : i32
    %c0_i32_0 = arith.constant 0 : i32
    %c0_i32_1 = arith.constant 0 : i32
    return %c0_i32, %c0_i32_0 : i32, i32
  }
  func.func @transform_7(%arg0: i32, %arg1: i32) -> (i32, i32) {
    %c0_i32 = arith.constant 0 : i32
    %c0_i32_0 = arith.constant 0 : i32
    %c0_i32_1 = arith.constant 0 : i32
    return %c0_i32, %c0_i32_0 : i32, i32
  }
  func.func @transform_8(%arg0: i32, %arg1: i32) -> (i32, i32) {
    %c0_i32 = arith.constant 0 : i32
    %c0_i32_0 = arith.constant 0 : i32
    %c0_i32_1 = arith.constant 0 : i32
    return %c0_i32, %c0_i32_0 : i32, i32
  }
  func.func @transform_9(%arg0: i32, %arg1: i32) -> (i32, i32) {
    %c0_i32 = arith.constant 0 : i32
    %c0_i32_0 = arith.constant 0 : i32
    return %arg0, %c0_i32 : i32, i32
  }
}

</mosaic_0001>

<llo_original>
// kernel: mlp_forward.1
$region0: #{mlp_forward.1}
  #allocation0 [shape = 'u32[]', space=smem, size = 0x4, offset = 0x4, fixed_abs, tag = 'smem constant byte address 0x4 - core index']
  #allocation1 [shape = 'u32[144,128]{1,0:T(1,128)}', space=vmem, size = 0x12000, scoped, tag = 'internal scratch']
  #allocation2 [shape = 'f32[8,512]{1,0:T(8,128)}', space=vmem, size = 0x4000, scoped, tag = 'scratch operand']
  %s0 = inlined_call_operand.vmem [shape: bf16[8,4096], index: 0, kind: input, shape index: {}]
  %s1 = inlined_call_operand.hbm [shape: bf16[4096,512], index: 1, kind: input, shape index: {}]
  %s2 = inlined_call_operand.hbm [shape: f32[1,512], index: 2, kind: input, shape index: {}]
  %s3 = inlined_call_operand.hbm [shape: bf16[512,512], index: 3, kind: input, shape index: {}]
  %s4 = inlined_call_operand.hbm [shape: f32[1,512], index: 4, kind: input, shape index: {}]
  %s5 = inlined_call_operand.hbm [shape: bf16[512,256], index: 5, kind: input, shape index: {}]
  %s6 = inlined_call_operand.hbm [shape: f32[1,256], index: 6, kind: input, shape index: {}]
  %s7 = inlined_call_operand.hbm [shape: bf16[256,128], index: 7, kind: input, shape index: {}]
  %s8 = inlined_call_operand.hbm [shape: f32[1,128], index: 8, kind: input, shape index: {}]
  %s9 = inlined_call_operand.hbm [shape: f32[8,128], index: 9, kind: output, shape index: {}]
  %s10 = sld [smem:[#allocation0]]
  $region109: #{mlp_forward.1} parent=0
    _
  %s12 = ssub.s32 1, %s10
  %s13 = scalar_select 0, %s12, %s10
  $region1: #{mlp_forward.1} parent=0
    #allocation3 [shape = 'u8[4194304]{0}', space=vmem, size = 0x400000, scoped, tag = 'input window, operand 1']
    #allocation4 [shape = 's32[2]{0}', space=sflag, size = 0x8, scoped, tag = 'scoped memory for mlp_forward.1']
    #allocation5 [shape = 's32[2]{0}', space=sflag, size = 0x8, scoped, tag = 'scoped memory for mlp_forward.1']
    #allocation6 [shape = 'u8[2048]{0}', space=vmem, size = 0x800, scoped, tag = 'input window, operand 2, single buffered']
    #allocation7 [shape = 's32[1]{0}', space=sflag, size = 0x4, scoped, tag = 'scoped memory for mlp_forward.1']
    #allocation8 [shape = 'u8[524288]{0}', space=vmem, size = 0x80000, scoped, tag = 'input window, operand 3, single buffered']
    #allocation9 [shape = 'u8[2048]{0}', space=vmem, size = 0x800, scoped, tag = 'input window, operand 4, single buffered']
    #allocation10 [shape = 's32[1]{0}', space=sflag, size = 0x4, scoped, tag = 'scoped memory for mlp_forward.1']
    #allocation11 [shape = 'u8[262144]{0}', space=vmem, size = 0x40000, scoped, tag = 'input window, operand 5, single buffered']
    #allocation12 [shape = 'u8[1024]{0}', space=vmem, size = 0x400, scoped, tag = 'input window, operand 6, single buffered']
    #allocation13 [shape = 's32[1]{0}', space=sflag, size = 0x4, scoped, tag = 'scoped memory for mlp_forward.1']
    #allocation14 [shape = 'u8[65536]{0}', space=vmem, size = 0x10000, scoped, tag = 'input window, operand 7, single buffered']
    #allocation15 [shape = 'u8[512]{0}', space=vmem, size = 0x400, scoped, tag = 'input window, operand 8, single buffered']
    #allocation16 [shape = 's32[1]{0}', space=sflag, size = 0x4, scoped, tag = 'scoped memory for mlp_forward.1']
    #allocation17 [shape = 'u8[4096]{0}', space=vmem, size = 0x1000, scoped, tag = 'output window, operand 0, single buffered']
    %14 = vsyncpa [#allocation4], 0
    %s15 = scalar_lea.sflag [#allocation4], 1
    %16 = vsyncpa %s15, 0
    %17 = vsyncpa [#allocation7], 0
    %18 = vsyncpa [#allocation10], 0
    %19 = vsyncpa [#allocation13], 0
    %20 = vsyncpa [#allocation16], 0
    %21 = vsyncpa [#allocation5], 0
    loop: start=0, step=1, limit=4
    $region2: #{mlp_forward.1} parent=1 // loop_pre_header
      _
    $region3: #{mlp_forward.1} parent=1 // loop_header
      %s23 = sphi 0, %s27
      %p24 = scmp.ge.s32.totalorder %s23, 4
      %s30 = sphi 0, %s42
      %s31 = sphi 0, %s38
      %s32 = sphi 0, %s30
      %s33 = sphi 0, %s31
      %s34 = sphi 0, %s32
      %s35 = sphi 0, %s33
      %s47 = sphi 0, %s49
      %s50 = sphi 0, %s47
      %s51 = sphi 0, %s50
      %s67 = sphi 0, %s51
      %s73 = sphi 0, %s75
      %s76 = sphi 0, %s73
      %s77 = sphi 0, %s76
      %s93 = sphi 0, %s77
      %s97 = sphi 0, %s97
      %s99 = sphi 0, %s97
      %s100 = sphi 0, %s99
      %s114 = sphi 0, %s100
      %s118 = sphi 0, %s118
      %s120 = sphi 0, %s118
      %s121 = sphi 0, %s120
      %s135 = sphi 0, %s121
      %s139 = sphi 0, %s139
      %s141 = sphi 0, %s139
      %s142 = sphi 0, %s141
      %s156 = sphi 0, %s142
      %s160 = sphi 0, %s160
      %s162 = sphi 0, %s160
      %s163 = sphi 0, %s162
      %s177 = sphi 0, %s163
      %s181 = sphi 0, %s181
      %s183 = sphi 0, %s181
      %s184 = sphi 0, %s183
      %s198 = sphi 0, %s184
      %s202 = sphi 0, %s202
      %s204 = sphi 0, %s202
      %s205 = sphi 0, %s204
      %s219 = sphi 0, %s205
      %s223 = sphi 0, %s223
      %s225 = sphi 0, %s223
      %s226 = sphi 0, %s225
      %s240 = sphi 0, %s226
      %s246 = sphi 0, %s248
      %s249 = sphi 0, %s246
      %s250 = sphi 0, %s249
      %s266 = sphi 0, %s250
    $region4: #{mlp_forward.1} parent=1 // loop_header_branch
      %26 = sbr.rel (%p24) target = $region8
    $region5: #{mlp_forward.1} parent=1 // loop_body
      %s28 = ssub.s32 %s23, 1
      %s29 = ssub.s32 %s23, 2
      %s36 = sadd.s32 1, %s31
      %p37 = scmp.ge.s32.totalorder %s36, 2
      %s38 = scalar_select %p37, 0, %s36
      %s39 = sadd.s32 1, %s30
      %s40 = scalar_select %p37, %s39, %s30
      %p41 = scmp.ge.s32.totalorder %s40, 1
      %s42 = scalar_select %p41, 0, %s40
      %s43 = ssub.s32 %s30, %s42
      %s44 = ssub.s32 %s31, %s38
      %s45 = sor.u32 %s43, %s44
      %p46 = scmp.eq.s32.totalorder %s45, 0
      %s48 = sadd.s32 %s47, 1
      %s49 = scalar_select %p46, %s47, %s48
      %p52 = pneg %p46
      %p53 = scmp.eq.s32.totalorder %s23, 1
      %p54 = por %p52, %p53
      %p55 = scmp.ne.s32.totalorder %s47, %s50
      %p56 = scmp.eq.s32.totalorder %s23, 0
      %p57 = por %p55, %p56
      %p58 = scmp.ne.s32.totalorder %s47, %s50
      %p59 = scmp.eq.s32.totalorder %s28, 1
      %p60 = por %p58, %p59
      %p61 = scmp.ne.s32.totalorder %s50, %s51
      %p62 = scmp.eq.s32.totalorder %s28, 0
      %p63 = por %p61, %p62
      %p64 = scmp.ne.s32.totalorder %s50, %s51
      %p65 = scmp.eq.s32.totalorder %s29, 1
      %p66 = por %p64, %p65
      %p68 = scmp.ne.s32.totalorder %s51, %s67
      %p69 = scmp.eq.s32.totalorder %s29, 0
      %p70 = por %p68, %p69
      %s71 = ssub.s32 %s31, %s38
      %p72 = scmp.eq.s32.totalorder %s71, 0
      %s74 = sadd.s32 %s73, 1
      %s75 = scalar_select %p72, %s73, %s74
      %p78 = pneg %p72
      %p79 = scmp.eq.s32.totalorder %s23, 1
      %p80 = por %p78, %p79
      %p81 = scmp.ne.s32.totalorder %s73, %s76
      %p82 = scmp.eq.s32.totalorder %s23, 0
      %p83 = por %p81, %p82
      %p84 = scmp.ne.s32.totalorder %s73, %s76
      %p85 = scmp.eq.s32.totalorder %s28, 1
      %p86 = por %p84, %p85
      %p87 = scmp.ne.s32.totalorder %s76, %s77
      %p88 = scmp.eq.s32.totalorder %s28, 0
      %p89 = por %p87, %p88
      %p90 = scmp.ne.s32.totalorder %s76, %s77
      %p91 = scmp.eq.s32.totalorder %s29, 1
      %p92 = por %p90, %p91
      %p94 = scmp.ne.s32.totalorder %s77, %s93
      %p95 = scmp.eq.s32.totalorder %s29, 0
      %p96 = por %p94, %p95
      %s98 = sadd.s32 %s97, 1
      %p101 = scmp.eq.s32.totalorder %s23, 1
      %p102 = scmp.ne.s32.totalorder %s97, %s99
      %p103 = scmp.eq.s32.totalorder %s23, 0
      %p104 = por %p102, %p103
      %p105 = scmp.ne.s32.totalorder %s97, %s99
      %p106 = scmp.eq.s32.totalorder %s28, 1
      %p107 = por %p105, %p106
      %p108 = scmp.ne.s32.totalorder %s99, %s100
      %p109 = scmp.eq.s32.totalorder %s28, 0
      %p110 = por %p108, %p109
      %p111 = scmp.ne.s32.totalorder %s99, %s100
      %p112 = scmp.eq.s32.totalorder %s29, 1
      %p113 = por %p111, %p112
      %p115 = scmp.ne.s32.totalorder %s100, %s114
      %p116 = scmp.eq.s32.totalorder %s29, 0
      %p117 = por %p115, %p116
      %s119 = sadd.s32 %s118, 1
      %p122 = scmp.eq.s32.totalorder %s23, 1
      %p123 = scmp.ne.s32.totalorder %s118, %s120
      %p124 = scmp.eq.s32.totalorder %s23, 0
      %p125 = por %p123, %p124
      %p126 = scmp.ne.s32.totalorder %s118, %s120
      %p127 = scmp.eq.s32.totalorder %s28, 1
      %p128 = por %p126, %p127
      %p129 = scmp.ne.s32.totalorder %s120, %s121
      %p130 = scmp.eq.s32.totalorder %s28, 0
      %p131 = por %p129, %p130
      %p132 = scmp.ne.s32.totalorder %s120, %s121
      %p133 = scmp.eq.s32.totalorder %s29, 1
      %p134 = por %p132, %p133
      %p136 = scmp.ne.s32.totalorder %s121, %s135
      %p137 = scmp.eq.s32.totalorder %s29, 0
      %p138 = por %p136, %p137
      %s140 = sadd.s32 %s139, 1
      %p143 = scmp.eq.s32.totalorder %s23, 1
      %p144 = scmp.ne.s32.totalorder %s139, %s141
      %p145 = scmp.eq.s32.totalorder %s23, 0
      %p146 = por %p144, %p145
      %p147 = scmp.ne.s32.totalorder %s139, %s141
      %p148 = scmp.eq.s32.totalorder %s28, 1
      %p149 = por %p147, %p148
      %p150 = scmp.ne.s32.totalorder %s141, %s142
      %p151 = scmp.eq.s32.totalorder %s28, 0
      %p152 = por %p150, %p151
      %p153 = scmp.ne.s32.totalorder %s141, %s142
      %p154 = scmp.eq.s32.totalorder %s29, 1
      %p155 = por %p153, %p154
      %p157 = scmp.ne.s32.totalorder %s142, %s156
      %p158 = scmp.eq.s32.totalorder %s29, 0
      %p159 = por %p157, %p158
      %s161 = sadd.s32 %s160, 1
      %p164 = scmp.eq.s32.totalorder %s23, 1
      %p165 = scmp.ne.s32.totalorder %s160, %s162
      %p166 = scmp.eq.s32.totalorder %s23, 0
      %p167 = por %p165, %p166
      %p168 = scmp.ne.s32.totalorder %s160, %s162
      %p169 = scmp.eq.s32.totalorder %s28, 1
      %p170 = por %p168, %p169
      %p171 = scmp.ne.s32.totalorder %s162, %s163
      %p172 = scmp.eq.s32.totalorder %s28, 0
      %p173 = por %p171, %p172
      %p174 = scmp.ne.s32.totalorder %s162, %s163
      %p175 = scmp.eq.s32.totalorder %s29, 1
      %p176 = por %p174, %p175
      %p178 = scmp.ne.s32.totalorder %s163, %s177
      %p179 = scmp.eq.s32.totalorder %s29, 0
      %p180 = por %p178, %p179
      %s182 = sadd.s32 %s181, 1
      %p185 = scmp.eq.s32.totalorder %s23, 1
      %p186 = scmp.ne.s32.totalorder %s181, %s183
      %p187 = scmp.eq.s32.totalorder %s23, 0
      %p188 = por %p186, %p187
      %p189 = scmp.ne.s32.totalorder %s181, %s183
      %p190 = scmp.eq.s32.totalorder %s28, 1
      %p191 = por %p189, %p190
      %p192 = scmp.ne.s32.totalorder %s183, %s184
      %p193 = scmp.eq.s32.totalorder %s28, 0
      %p194 = por %p192, %p193
      %p195 = scmp.ne.s32.totalorder %s183, %s184
      %p196 = scmp.eq.s32.totalorder %s29, 1
      %p197 = por %p195, %p196
      %p199 = scmp.ne.s32.totalorder %s184, %s198
      %p200 = scmp.eq.s32.totalorder %s29, 0
      %p201 = por %p199, %p200
      %s203 = sadd.s32 %s202, 1
      %p206 = scmp.eq.s32.totalorder %s23, 1
      %p207 = scmp.ne.s32.totalorder %s202, %s204
      %p208 = scmp.eq.s32.totalorder %s23, 0
      %p209 = por %p207, %p208
      %p210 = scmp.ne.s32.totalorder %s202, %s204
      %p211 = scmp.eq.s32.totalorder %s28, 1
      %p212 = por %p210, %p211
      %p213 = scmp.ne.s32.totalorder %s204, %s205
      %p214 = scmp.eq.s32.totalorder %s28, 0
      %p215 = por %p213, %p214
      %p216 = scmp.ne.s32.totalorder %s204, %s205
      %p217 = scmp.eq.s32.totalorder %s29, 1
      %p218 = por %p216, %p217
      %p220 = scmp.ne.s32.totalorder %s205, %s219
      %p221 = scmp.eq.s32.totalorder %s29, 0
      %p222 = por %p220, %p221
      %s224 = sadd.s32 %s223, 1
      %p227 = scmp.eq.s32.totalorder %s23, 1
      %p228 = scmp.ne.s32.totalorder %s223, %s225
      %p229 = scmp.eq.s32.totalorder %s23, 0
      %p230 = por %p228, %p229
      %p231 = scmp.ne.s32.totalorder %s223, %s225
      %p232 = scmp.eq.s32.totalorder %s28, 1
      %p233 = por %p231, %p232
      %p234 = scmp.ne.s32.totalorder %s225, %s226
      %p235 = scmp.eq.s32.totalorder %s28, 0
      %p236 = por %p234, %p235
      %p237 = scmp.ne.s32.totalorder %s225, %s226
      %p238 = scmp.eq.s32.totalorder %s29, 1
      %p239 = por %p237, %p238
      %p241 = scmp.ne.s32.totalorder %s226, %s240
      %p242 = scmp.eq.s32.totalorder %s29, 0
      %p243 = por %p241, %p242
      %s244 = ssub.s32 %s30, %s42
      %p245 = scmp.eq.s32.totalorder %s244, 0
      %s247 = sadd.s32 %s246, 1
      %s248 = scalar_select %p245, %s246, %s247
      %p251 = pneg %p245
      %p252 = scmp.eq.s32.totalorder %s23, 1
      %p253 = por %p251, %p252
      %p254 = scmp.ne.s32.totalorder %s246, %s249
      %p255 = scmp.eq.s32.totalorder %s23, 0
      %p256 = por %p254, %p255
      %p257 = scmp.ne.s32.totalorder %s246, %s249
      %p258 = scmp.eq.s32.totalorder %s28, 1
      %p259 = por %p257, %p258
      %p260 = scmp.ne.s32.totalorder %s249, %s250
      %p261 = scmp.eq.s32.totalorder %s28, 0
      %p262 = por %p260, %p261
      %p263 = scmp.ne.s32.totalorder %s249, %s250
      %p264 = scmp.eq.s32.totalorder %s29, 1
      %p265 = por %p263, %p264
      %p267 = scmp.ne.s32.totalorder %s250, %s266
      %p268 = scmp.eq.s32.totalorder %s29, 0
      %p269 = por %p267, %p268
      %p270 = scmp.le.s32.totalorder 1, %s23
      %p271 = scmp.lt.s32.totalorder %s23, 3
      %p272 = pnand %p270, %p271
      %p273 = pneg %p272
      // Predicated region
      $region9: #{mlp_forward.1} parent=5 // pred_check
        _
      $region10: #{mlp_forward.1} parent=5 // pred_check_branch
        %275 = sbr.rel (%p272) target = $region12
      $region11: #{mlp_forward.1} parent=5 // pred_region
        %s276 = ssub.s32 %s23, 1
        // Predicated region
        $region13: #{mlp_forward.1} parent=11 // pred_check
          %p277 = pneg %p110
        $region14: #{mlp_forward.1} parent=11 // pred_check_branch
          %279 = sbr.rel (%p277) target = $region16
        $region15: #{mlp_forward.1} parent=11 // pred_region
          %s281 = ssub.s32 64, 64
          %282 = vsyncadd [#allocation7], %s281
          %s284 = sshll.u32 [#allocation6], 4
          %s285 = int_to_ptr.vmem [resolvable:$true] %s284
          %287 = dma.hbm_to_vmem [thread:$0]  %s2, 64, %s285, [#allocation7]
        $region16: #{mlp_forward.1} parent=11 // pred_fallthru
          _
        // Predicated region
        $region17: #{mlp_forward.1} parent=11 // pred_check
          %p288 = pneg %p131
        $region18: #{mlp_forward.1} parent=11 // pred_check_branch
          %290 = sbr.rel (%p288) target = $region20
        $region19: #{mlp_forward.1} parent=11 // pred_region
          %s292 = ssub.s32 16384, 16384
          %293 = vsyncadd [#allocation7], %s292
          %s294 = sshll.u32 [#allocation8], 4
          %s295 = int_to_ptr.vmem [resolvable:$true] %s294
          %300 = dma.hbm_to_vmem [thread:$0]  %s3, 16384, %s295, [#allocation7], 256, 256, 16
        $region20: #{mlp_forward.1} parent=11 // pred_fallthru
          _
        // Predicated region
        $region21: #{mlp_forward.1} parent=11 // pred_check
          %p301 = pneg %p152
        $region22: #{mlp_forward.1} parent=11 // pred_check_branch
          %303 = sbr.rel (%p301) target = $region24
        $region23: #{mlp_forward.1} parent=11 // pred_region
          %s305 = ssub.s32 64, 64
          %306 = vsyncadd [#allocation10], %s305
          %s308 = sshll.u32 [#allocation9], 4
          %s309 = int_to_ptr.vmem [resolvable:$true] %s308
          %311 = dma.hbm_to_vmem [thread:$0]  %s4, 64, %s309, [#allocation10]
        $region24: #{mlp_forward.1} parent=11 // pred_fallthru
          _
        // Predicated region
        $region25: #{mlp_forward.1} parent=11 // pred_check
          %p312 = pneg %p173
        $region26: #{mlp_forward.1} parent=11 // pred_check_branch
          %314 = sbr.rel (%p312) target = $region28
        $region27: #{mlp_forward.1} parent=11 // pred_region
          %s316 = ssub.s32 8192, 8192
          %317 = vsyncadd [#allocation10], %s316
          %s318 = sshll.u32 [#allocation11], 4
          %s319 = int_to_ptr.vmem [resolvable:$true] %s318
          %324 = dma.hbm_to_vmem [thread:$0]  %s5, 8192, %s319, [#allocation10], 128, 128, 8
        $region28: #{mlp_forward.1} parent=11 // pred_fallthru
          _
        // Predicated region
        $region29: #{mlp_forward.1} parent=11 // pred_check
          %p325 = pneg %p194
        $region30: #{mlp_forward.1} parent=11 // pred_check_branch
          %327 = sbr.rel (%p325) target = $region32
        $region31: #{mlp_forward.1} parent=11 // pred_region
          %s329 = ssub.s32 32, 32
          %330 = vsyncadd [#allocation13], %s329
          %s332 = sshll.u32 [#allocation12], 4
          %s333 = int_to_ptr.vmem [resolvable:$true] %s332
          %335 = dma.hbm_to_vmem [thread:$0]  %s6, 32, %s333, [#allocation13]
        $region32: #{mlp_forward.1} parent=11 // pred_fallthru
          _
        // Predicated region
        $region33: #{mlp_forward.1} parent=11 // pred_check
          %p336 = pneg %p215
        $region34: #{mlp_forward.1} parent=11 // pred_check_branch
          %338 = sbr.rel (%p336) target = $region36
        $region35: #{mlp_forward.1} parent=11 // pred_region
          %s340 = ssub.s32 2048, 2048
          %341 = vsyncadd [#allocation13], %s340
          %s342 = sshll.u32 [#allocation14], 4
          %s343 = int_to_ptr.vmem [resolvable:$true] %s342
          %348 = dma.hbm_to_vmem [thread:$0]  %s7, 2048, %s343, [#allocation13], 64, 64, 4
        $region36: #{mlp_forward.1} parent=11 // pred_fallthru
          _
        // Predicated region
        $region37: #{mlp_forward.1} parent=11 // pred_check
          %p349 = pneg %p236
        $region38: #{mlp_forward.1} parent=11 // pred_check_branch
          %351 = sbr.rel (%p349) target = $region40
        $region39: #{mlp_forward.1} parent=11 // pred_region
          %s353 = ssub.s32 16, 16
          %354 = vsyncadd [#allocation16], %s353
          %s356 = sshll.u32 [#allocation15], 4
          %s357 = int_to_ptr.vmem [resolvable:$true] %s356
          %359 = dma.hbm_to_vmem [thread:$0]  %s8, 16, %s357, [#allocation16]
        $region40: #{mlp_forward.1} parent=11 // pred_fallthru
          _
      $region12: #{mlp_forward.1} parent=5 // pred_fallthru
        _
      %p360 = scmp.lt.s32.totalorder %s23, 2
      // Predicated region
      $region41: #{mlp_forward.1} parent=5 // pred_check
        %p361 = pneg %p360
      $region42: #{mlp_forward.1} parent=5 // pred_check_branch
        %363 = sbr.rel (%p361) target = $region44
      $region43: #{mlp_forward.1} parent=5 // pred_region
        // Predicated region
        $region45: #{mlp_forward.1} parent=43 // pred_check
          %p364 = pneg %p57
        $region46: #{mlp_forward.1} parent=43 // pred_check_branch
          %366 = sbr.rel (%p364) target = $region48
        $region47: #{mlp_forward.1} parent=43 // pred_region
          %s367 = smul.u32 16, %s31
          %p368 = scmp.lt.s32.totalorder %s30, 0
          %s369 = scalar_select %p368, %s30, 0
          %p370 = scmp.lt.s32.totalorder %s367, 31
          %s371 = scalar_select %p370, %s367, 31
          %s372 = smul.addr %s369, 32
          %s373 = sadd.s32 %s371, %s372
          %s374 = smul.addr %s373, 4
          %s375 = scalar_lea.vmem %s0, %s374
          %s376 = smul.u32 16, %s31
        $region48: #{mlp_forward.1} parent=43 // pred_fallthru
          _
        // Predicated region
        $region49: #{mlp_forward.1} parent=43 // pred_check
          %p377 = pneg %p83
        $region50: #{mlp_forward.1} parent=43 // pred_check_branch
          %379 = sbr.rel (%p377) target = $region52
        $region51: #{mlp_forward.1} parent=43 // pred_region
          %s380 = sand.u32 %s73, 1
          %s381 = scalar_lea.sflag [#allocation4], %s380
          %s382 = sand.u32 %s73, 1
          %s383 = smul.addr %s382, 4096
          %s384 = scalar_lea.vmem [#allocation3], %s383
          %s385 = smul.u32 256, %s31
          %s387 = ssub.s32 65536, 65536
          %388 = vsyncadd %s381, %s387
          %s389 = smul.addr %s385, 4
          %s390 = smul.addr %s389, 64
          %s391 = scalar_lea.hbm %s1, %s390
          %s392 = sshll.u32 %s384, 4
          %s393 = int_to_ptr.vmem [resolvable:$true] %s392
          %398 = dma.hbm_to_vmem [thread:$0]  %s391, 65536, %s393, %s381, 256, 256, 16
        $region52: #{mlp_forward.1} parent=43 // pred_fallthru
          _
      $region44: #{mlp_forward.1} parent=5 // pred_fallthru
        _
      %p399 = scmp.le.s32.totalorder 1, %s23
      %p400 = scmp.lt.s32.totalorder %s23, 3
      %p401 = pnand %p399, %p400
      %p402 = pneg %p401
      // Predicated region
      $region53: #{mlp_forward.1} parent=5 // pred_check
        _
      $region54: #{mlp_forward.1} parent=5 // pred_check_branch
        %404 = sbr.rel (%p401) target = $region56
      $region55: #{mlp_forward.1} parent=5 // pred_region
        %s405 = ssub.s32 %s23, 1
        %s406 = sand.u32 %s76, 1
        %s407 = scalar_lea.sflag [#allocation4], %s406
        %s408 = sand.u32 %s76, 1
        %s409 = smul.addr %s408, 4096
        %s410 = scalar_lea.vmem [#allocation3], %s409
        // Predicated region
        $region57: #{mlp_forward.1} parent=55 // pred_check
          %p411 = pneg %p89
        $region58: #{mlp_forward.1} parent=55 // pred_check_branch
          %413 = sbr.rel (%p411) target = $region60
        $region59: #{mlp_forward.1} parent=55 // pred_region
          %414 = dma.done %s407, 65536
        $region60: #{mlp_forward.1} parent=55 // pred_fallthru
          _
        // Predicated region
        $region61: #{mlp_forward.1} parent=55 // pred_check
          %p415 = pneg %p110
        $region62: #{mlp_forward.1} parent=55 // pred_check_branch
          %417 = sbr.rel (%p415) target = $region64
        $region63: #{mlp_forward.1} parent=55 // pred_region
          %418 = dma.done [#allocation7], 64
        $region64: #{mlp_forward.1} parent=55 // pred_fallthru
          _
        // Predicated region
        $region65: #{mlp_forward.1} parent=55 // pred_check
          %p419 = pneg %p131
        $region66: #{mlp_forward.1} parent=55 // pred_check_branch
          %421 = sbr.rel (%p419) target = $region68
        $region67: #{mlp_forward.1} parent=55 // pred_region
          %422 = dma.done [#allocation7], 16384
        $region68: #{mlp_forward.1} parent=55 // pred_fallthru
          _
        // Predicated region
        $region69: #{mlp_forward.1} parent=55 // pred_check
          %p423 = pneg %p152
        $region70: #{mlp_forward.1} parent=55 // pred_check_branch
          %425 = sbr.rel (%p423) target = $region72
        $region71: #{mlp_forward.1} parent=55 // pred_region
          %426 = dma.done [#allocation10], 64
        $region72: #{mlp_forward.1} parent=55 // pred_fallthru
          _
        // Predicated region
        $region73: #{mlp_forward.1} parent=55 // pred_check
          %p427 = pneg %p173
        $region74: #{mlp_forward.1} parent=55 // pred_check_branch
          %429 = sbr.rel (%p427) target = $region76
        $region75: #{mlp_forward.1} parent=55 // pred_region
          %430 = dma.done [#allocation10], 8192
        $region76: #{mlp_forward.1} parent=55 // pred_fallthru
          _
        // Predicated region
        $region77: #{mlp_forward.1} parent=55 // pred_check
          %p431 = pneg %p194
        $region78: #{mlp_forward.1} parent=55 // pred_check_branch
          %433 = sbr.rel (%p431) target = $region80
        $region79: #{mlp_forward.1} parent=55 // pred_region
          %434 = dma.done [#allocation13], 32
        $region80: #{mlp_forward.1} parent=55 // pred_fallthru
          _
        // Predicated region
        $region81: #{mlp_forward.1} parent=55 // pred_check
          %p435 = pneg %p215
        $region82: #{mlp_forward.1} parent=55 // pred_check_branch
          %437 = sbr.rel (%p435) target = $region84
        $region83: #{mlp_forward.1} parent=55 // pred_region
          %438 = dma.done [#allocation13], 2048
        $region84: #{mlp_forward.1} parent=55 // pred_fallthru
          _
        // Predicated region
        $region85: #{mlp_forward.1} parent=55 // pred_check
          %p439 = pneg %p236
        $region86: #{mlp_forward.1} parent=55 // pred_check_branch
          %441 = sbr.rel (%p439) target = $region88
        $region87: #{mlp_forward.1} parent=55 // pred_region
          %442 = dma.done [#allocation16], 16
        $region88: #{mlp_forward.1} parent=55 // pred_fallthru
          _
        %s443 = smul.u32 16, %s33
        %p444 = scmp.lt.s32.totalorder %s32, 0
        %s445 = scalar_select %p444, %s32, 0
        %p446 = scmp.lt.s32.totalorder %s443, 31
        %s447 = scalar_select %p446, %s443, 31
        %s448 = smul.addr %s445, 32
        %s449 = sadd.s32 %s447, %s448
        %s450 = smul.addr %s449, 4
        %s451 = scalar_lea.vmem %s0, %s450
        %p452 = pneg %p63
        %p453 = pneg %p60
        %s454 = sand.u32 %s76, 1
        %s455 = scalar_lea.sflag [#allocation4], %s454
        %s456 = sand.u32 %s76, 1
        %s457 = smul.addr %s456, 4096
        %s458 = scalar_lea.vmem [#allocation3], %s457
        %p459 = pneg %p89
        %p460 = pneg %p86
        %p461 = pneg %p110
        %p462 = pneg %p107
        %p463 = pneg %p131
        %p464 = pneg %p128
        %p465 = pneg %p152
        %p466 = pneg %p149
        %p467 = pneg %p173
        %p468 = pneg %p170
        %p469 = pneg %p194
        %p470 = pneg %p191
        %p471 = pneg %p215
        %p472 = pneg %p212
        %p473 = pneg %p236
        %p474 = pneg %p233
        %p475 = pneg %p262
        %p476 = pneg %p259
        %s477 = smul.u32 16, %s33
        %p478 = scmp.lt.s32.totalorder %s32, 0
        %s479 = scalar_select %p478, %s32, 0
        %p480 = scmp.lt.s32.totalorder %s477, 31
        %s481 = scalar_select %p480, %s477, 31
        %s482 = smul.addr %s479, 32
        %s483 = sadd.s32 %s481, %s482
        %s484 = smul.addr %s483, 4
        %s485 = scalar_lea.vmem %s0, %s484
        %s486 = smul.u32 16, %s33
        %s487 = smul.u32 256, %s33
        %p489 = scmp.eq.s32.totalorder %s33, 0
        // Predicated region
        $region89: #{mlp_forward.1} parent=55 // pred_check
          %p490 = pneg %p489
        $region90: #{mlp_forward.1} parent=55 // pred_check_branch
          %492 = sbr.rel (%p490) target = $region92
        $region91: #{mlp_forward.1} parent=55 // pred_region
          %493 = vst [vmem:[#allocation2] sm:$0xff] 0.0
          %494 = vst [vmem:[#allocation2 + $0x8] sm:$0xff] 0.0
          %495 = vst [vmem:[#allocation2 + $0x10] sm:$0xff] 0.0
          %496 = vst [vmem:[#allocation2 + $0x18] sm:$0xff] 0.0
        $region92: #{mlp_forward.1} parent=55 // pred_fallthru
          _
        %v497 = vld [vmem:[#allocation2] sm:$0xff]
        %v498 = vld [vmem:[#allocation2 + $0x8] sm:$0xff]
        %v499 = vld [vmem:[#allocation2 + $0x10] sm:$0xff]
        %v500 = vld [vmem:[#allocation2 + $0x18] sm:$0xff]
        %v501 = vld [vmem:[%s485] sm:$0xff]
        %v502 = vld [vmem:[%s485 + $0x8] sm:$0xff]
        %v503 = vld [vmem:[%s485 + $0x10] sm:$0xff]
        %v504 = vld [vmem:[%s485 + $0x18] sm:$0xff]
        %v505 = vld [vmem:[%s485 + $0x20] sm:$0xff]
        %v506 = vld [vmem:[%s485 + $0x28] sm:$0xff]
        %v507 = vld [vmem:[%s485 + $0x30] sm:$0xff]
        %v508 = vld [vmem:[%s485 + $0x38] sm:$0xff]
        %v509 = vld [vmem:[%s410] sm:$0xff]
        %v510 = vld [vmem:[%s410 + $0x8] sm:$0xff]
        %v511 = vld [vmem:[%s410 + $0x10] sm:$0xff]
        %v512 = vld [vmem:[%s410 + $0x18] sm:$0xff]
        %v513 = vld [vmem:[%s410 + $0x20] sm:$0xff]
        %v514 = vld [vmem:[%s410 + $0x28] sm:$0xff]
        %v515 = vld [vmem:[%s410 + $0x30] sm:$0xff]
        %v516 = vld [vmem:[%s410 + $0x38] sm:$0xff]
        %v517 = vld [vmem:[%s410 + $0x40] sm:$0xff]
        %v518 = vld [vmem:[%s410 + $0x48] sm:$0xff]
        %v519 = vld [vmem:[%s410 + $0x50] sm:$0xff]
        %v520 = vld [vmem:[%s410 + $0x58] sm:$0xff]
        %v521 = vld [vmem:[%s410 + $0x60] sm:$0xff]
        %v522 = vld [vmem:[%s410 + $0x68] sm:$0xff]
        %v523 = vld [vmem:[%s410 + $0x70] sm:$0xff]
        %v524 = vld [vmem:[%s410 + $0x78] sm:$0xff]
        %v525 = vld [vmem:[%s410 + $0x80] sm:$0xff]
        %v526 = vld [vmem:[%s410 + $0x88] sm:$0xff]
        %v527 = vld [vmem:[%s410 + $0x90] sm:$0xff]
        %v528 = vld [vmem:[%s410 + $0x98] sm:$0xff]
        %v529 = vld [vmem:[%s410 + $0xa0] sm:$0xff]
        %v530 = vld [vmem:[%s410 + $0xa8] sm:$0xff]
        %v531 = vld [vmem:[%s410 + $0xb0] sm:$0xff]
        %v532 = vld [vmem:[%s410 + $0xb8] sm:$0xff]
        %v533 = vld [vmem:[%s410 + $0xc0] sm:$0xff]
        %v534 = vld [vmem:[%s410 + $0xc8] sm:$0xff]
        %v535 = vld [vmem:[%s410 + $0xd0] sm:$0xff]
        %v536 = vld [vmem:[%s410 + $0xd8] sm:$0xff]
        %v537 = vld [vmem:[%s410 + $0xe0] sm:$0xff]
        %v538 = vld [vmem:[%s410 + $0xe8] sm:$0xff]
        %v539 = vld [vmem:[%s410 + $0xf0] sm:$0xff]
        %v540 = vld [vmem:[%s410 + $0xf8] sm:$0xff]
        %v541 = vld [vmem:[%s410 + $0x100] sm:$0xff]
        %v542 = vld [vmem:[%s410 + $0x108] sm:$0xff]
        %v543 = vld [vmem:[%s410 + $0x110] sm:$0xff]
        %v544 = vld [vmem:[%s410 + $0x118] sm:$0xff]
        %v545 = vld [vmem:[%s410 + $0x120] sm:$0xff]
        %v546 = vld [vmem:[%s410 + $0x128] sm:$0xff]
        %v547 = vld [vmem:[%s410 + $0x130] sm:$0xff]
        %v548 = vld [vmem:[%s410 + $0x138] sm:$0xff]
        %v549 = vld [vmem:[%s410 + $0x140] sm:$0xff]
        %v550 = vld [vmem:[%s410 + $0x148] sm:$0xff]
        %v551 = vld [vmem:[%s410 + $0x150] sm:$0xff]
        %v552 = vld [vmem:[%s410 + $0x158] sm:$0xff]
        %v553 = vld [vmem:[%s410 + $0x160] sm:$0xff]
        %v554 = vld [vmem:[%s410 + $0x168] sm:$0xff]
        %v555 = vld [vmem:[%s410 + $0x170] sm:$0xff]
        %v556 = vld [vmem:[%s410 + $0x178] sm:$0xff]
        %v557 = vld [vmem:[%s410 + $0x180] sm:$0xff]
        %v558 = vld [vmem:[%s410 + $0x188] sm:$0xff]
        %v559 = vld [vmem:[%s410 + $0x190] sm:$0xff]
        %v560 = vld [vmem:[%s410 + $0x198] sm:$0xff]
        %v561 = vld [vmem:[%s410 + $0x1a0] sm:$0xff]
        %v562 = vld [vmem:[%s410 + $0x1a8] sm:$0xff]
        %v563 = vld [vmem:[%s410 + $0x1b0] sm:$0xff]
        %v564 = vld [vmem:[%s410 + $0x1b8] sm:$0xff]
        %v565 = vld [vmem:[%s410 + $0x1c0] sm:$0xff]
        %v566 = vld [vmem:[%s410 + $0x1c8] sm:$0xff]
        %v567 = vld [vmem:[%s410 + $0x1d0] sm:$0xff]
        %v568 = vld [vmem:[%s410 + $0x1d8] sm:$0xff]
        %v569 = vld [vmem:[%s410 + $0x1e0] sm:$0xff]
        %v570 = vld [vmem:[%s410 + $0x1e8] sm:$0xff]
        %v571 = vld [vmem:[%s410 + $0x1f0] sm:$0xff]
        %v572 = vld [vmem:[%s410 + $0x1f8] sm:$0xff]
        %v573 = vld [vmem:[%s410 + $0x200] sm:$0xff]
        %v574 = vld [vmem:[%s410 + $0x208] sm:$0xff]
        %v575 = vld [vmem:[%s410 + $0x210] sm:$0xff]
        %v576 = vld [vmem:[%s410 + $0x218] sm:$0xff]
        %v577 = vld [vmem:[%s410 + $0x220] sm:$0xff]
        %v578 = vld [vmem:[%s410 + $0x228] sm:$0xff]
        %v579 = vld [vmem:[%s410 + $0x230] sm:$0xff]
        %v580 = vld [vmem:[%s410 + $0x238] sm:$0xff]
        %v581 = vld [vmem:[%s410 + $0x240] sm:$0xff]
        %v582 = vld [vmem:[%s410 + $0x248] sm:$0xff]
        %v583 = vld [vmem:[%s410 + $0x250] sm:$0xff]
        %v584 = vld [vmem:[%s410 + $0x258] sm:$0xff]
        %v585 = vld [vmem:[%s410 + $0x260] sm:$0xff]
        %v586 = vld [vmem:[%s410 + $0x268] sm:$0xff]
        %v587 = vld [vmem:[%s410 + $0x270] sm:$0xff]
        %v588 = vld [vmem:[%s410 + $0x278] sm:$0xff]
        %v589 = vld [vmem:[%s410 + $0x280] sm:$0xff]
        %v590 = vld [vmem:[%s410 + $0x288] sm:$0xff]
        %v591 = vld [vmem:[%s410 + $0x290] sm:$0xff]
        %v592 = vld [vmem:[%s410 + $0x298] sm:$0xff]
        %v593 = vld [vmem:[%s410 + $0x2a0] sm:$0xff]
        %v594 = vld [vmem:[%s410 + $0x2a8] sm:$0xff]
        %v595 = vld [vmem:[%s410 + $0x2b0] sm:$0xff]
        %v596 = vld [vmem:[%s410 + $0x2b8] sm:$0xff]
        %v597 = vld [vmem:[%s410 + $0x2c0] sm:$0xff]
        %v598 = vld [vmem:[%s410 + $0x2c8] sm:$0xff]
        %v599 = vld [vmem:[%s410 + $0x2d0] sm:$0xff]
        %v600 = vld [vmem:[%s410 + $0x2d8] sm:$0xff]
        %v601 = vld [vmem:[%s410 + $0x2e0] sm:$0xff]
        %v602 = vld [vmem:[%s410 + $0x2e8] sm:$0xff]
        %v603 = vld [vmem:[%s410 + $0x2f0] sm:$0xff]
        %v604 = vld [vmem:[%s410 + $0x2f8] sm:$0xff]
        %v605 = vld [vmem:[%s410 + $0x300] sm:$0xff]
        %v606 = vld [vmem:[%s410 + $0x308] sm:$0xff]
        %v607 = vld [vmem:[%s410 + $0x310] sm:$0xff]
        %v608 = vld [vmem:[%s410 + $0x318] sm:$0xff]
        %v609 = vld [vmem:[%s410 + $0x320] sm:$0xff]
        %v610 = vld [vmem:[%s410 + $0x328] sm:$0xff]
        %v611 = vld [vmem:[%s410 + $0x330] sm:$0xff]
        %v612 = vld [vmem:[%s410 + $0x338] sm:$0xff]
        %v613 = vld [vmem:[%s410 + $0x340] sm:$0xff]
        %v614 = vld [vmem:[%s410 + $0x348] sm:$0xff]
        %v615 = vld [vmem:[%s410 + $0x350] sm:$0xff]
        %v616 = vld [vmem:[%s410 + $0x358] sm:$0xff]
        %v617 = vld [vmem:[%s410 + $0x360] sm:$0xff]
        %v618 = vld [vmem:[%s410 + $0x368] sm:$0xff]
        %v619 = vld [vmem:[%s410 + $0x370] sm:$0xff]
        %v620 = vld [vmem:[%s410 + $0x378] sm:$0xff]
        %v621 = vld [vmem:[%s410 + $0x380] sm:$0xff]
        %v622 = vld [vmem:[%s410 + $0x388] sm:$0xff]
        %v623 = vld [vmem:[%s410 + $0x390] sm:$0xff]
        %v624 = vld [vmem:[%s410 + $0x398] sm:$0xff]
        %v625 = vld [vmem:[%s410 + $0x3a0] sm:$0xff]
        %v626 = vld [vmem:[%s410 + $0x3a8] sm:$0xff]
        %v627 = vld [vmem:[%s410 + $0x3b0] sm:$0xff]
        %v628 = vld [vmem:[%s410 + $0x3b8] sm:$0xff]
        %v629 = vld [vmem:[%s410 + $0x3c0] sm:$0xff]
        %v630 = vld [vmem:[%s410 + $0x3c8] sm:$0xff]
        %v631 = vld [vmem:[%s410 + $0x3d0] sm:$0xff]
        %v632 = vld [vmem:[%s410 + $0x3d8] sm:$0xff]
        %v633 = vld [vmem:[%s410 + $0x3e0] sm:$0xff]
        %v634 = vld [vmem:[%s410 + $0x3e8] sm:$0xff]
        %v635 = vld [vmem:[%s410 + $0x3f0] sm:$0xff]
        %v636 = vld [vmem:[%s410 + $0x3f8] sm:$0xff]
        %v637 = vld [vmem:[%s410 + $0x400] sm:$0xff]
        %v638 = vld [vmem:[%s410 + $0x408] sm:$0xff]
        %v639 = vld [vmem:[%s410 + $0x410] sm:$0xff]
        %v640 = vld [vmem:[%s410 + $0x418] sm:$0xff]
        %v641 = vld [vmem:[%s410 + $0x420] sm:$0xff]
        %v642 = vld [vmem:[%s410 + $0x428] sm:$0xff]
        %v643 = vld [vmem:[%s410 + $0x430] sm:$0xff]
        %v644 = vld [vmem:[%s410 + $0x438] sm:$0xff]
        %v645 = vld [vmem:[%s410 + $0x440] sm:$0xff]
        %v646 = vld [vmem:[%s410 + $0x448] sm:$0xff]
        %v647 = vld [vmem:[%s410 + $0x450] sm:$0xff]
        %v648 = vld [vmem:[%s410 + $0x458] sm:$0xff]
        %v649 = vld [vmem:[%s410 + $0x460] sm:$0xff]
        %v650 = vld [vmem:[%s410 + $0x468] sm:$0xff]
        %v651 = vld [vmem:[%s410 + $0x470] sm:$0xff]
        %v652 = vld [vmem:[%s410 + $0x478] sm:$0xff]
        %v653 = vld [vmem:[%s410 + $0x480] sm:$0xff]
        %v654 = vld [vmem:[%s410 + $0x488] sm:$0xff]
        %v655 = vld [vmem:[%s410 + $0x490] sm:$0xff]
        %v656 = vld [vmem:[%s410 + $0x498] sm:$0xff]
        %v657 = vld [vmem:[%s410 + $0x4a0] sm:$0xff]
        %v658 = vld [vmem:[%s410 + $0x4a8] sm:$0xff]
        %v659 = vld [vmem:[%s410 + $0x4b0] sm:$0xff]
        %v660 = vld [vmem:[%s410 + $0x4b8] sm:$0xff]
        %v661 = vld [vmem:[%s410 + $0x4c0] sm:$0xff]
        %v662 = vld [vmem:[%s410 + $0x4c8] sm:$0xff]
        %v663 = vld [vmem:[%s410 + $0x4d0] sm:$0xff]
        %v664 = vld [vmem:[%s410 + $0x4d8] sm:$0xff]
        %v665 = vld [vmem:[%s410 + $0x4e0] sm:$0xff]
        %v666 = vld [vmem:[%s410 + $0x4e8] sm:$0xff]
        %v667 = vld [vmem:[%s410 + $0x4f0] sm:$0xff]
        %v668 = vld [vmem:[%s410 + $0x4f8] sm:$0xff]
        %v669 = vld [vmem:[%s410 + $0x500] sm:$0xff]
        %v670 = vld [vmem:[%s410 + $0x508] sm:$0xff]
        %v671 = vld [vmem:[%s410 + $0x510] sm:$0xff]
        %v672 = vld [vmem:[%s410 + $0x518] sm:$0xff]
        %v673 = vld [vmem:[%s410 + $0x520] sm:$0xff]
        %v674 = vld [vmem:[%s410 + $0x528] sm:$0xff]
        %v675 = vld [vmem:[%s410 + $0x530] sm:$0xff]
        %v676 = vld [vmem:[%s410 + $0x538] sm:$0xff]
        %v677 = vld [vmem:[%s410 + $0x540] sm:$0xff]
        %v678 = vld [vmem:[%s410 + $0x548] sm:$0xff]
        %v679 = vld [vmem:[%s410 + $0x550] sm:$0xff]
        %v680 = vld [vmem:[%s410 + $0x558] sm:$0xff]
        %v681 = vld [vmem:[%s410 + $0x560] sm:$0xff]
        %v682 = vld [vmem:[%s410 + $0x568] sm:$0xff]
        %v683 = vld [vmem:[%s410 + $0x570] sm:$0xff]
        %v684 = vld [vmem:[%s410 + $0x578] sm:$0xff]
        %v685 = vld [vmem:[%s410 + $0x580] sm:$0xff]
        %v686 = vld [vmem:[%s410 + $0x588] sm:$0xff]
        %v687 = vld [vmem:[%s410 + $0x590] sm:$0xff]
        %v688 = vld [vmem:[%s410 + $0x598] sm:$0xff]
        %v689 = vld [vmem:[%s410 + $0x5a0] sm:$0xff]
        %v690 = vld [vmem:[%s410 + $0x5a8] sm:$0xff]
        %v691 = vld [vmem:[%s410 + $0x5b0] sm:$0xff]
        %v692 = vld [vmem:[%s410 + $0x5b8] sm:$0xff]
        %v693 = vld [vmem:[%s410 + $0x5c0] sm:$0xff]
        %v694 = vld [vmem:[%s410 + $0x5c8] sm:$0xff]
        %v695 = vld [vmem:[%s410 + $0x5d0] sm:$0xff]
        %v696 = vld [vmem:[%s410 + $0x5d8] sm:$0xff]
        %v697 = vld [vmem:[%s410 + $0x5e0] sm:$0xff]
        %v698 = vld [vmem:[%s410 + $0x5e8] sm:$0xff]
        %v699 = vld [vmem:[%s410 + $0x5f0] sm:$0xff]
        %v700 = vld [vmem:[%s410 + $0x5f8] sm:$0xff]
        %v701 = vld [vmem:[%s410 + $0x600] sm:$0xff]
        %v702 = vld [vmem:[%s410 + $0x608] sm:$0xff]
        %v703 = vld [vmem:[%s410 + $0x610] sm:$0xff]
        %v704 = vld [vmem:[%s410 + $0x618] sm:$0xff]
        %v705 = vld [vmem:[%s410 + $0x620] sm:$0xff]
        %v706 = vld [vmem:[%s410 + $0x628] sm:$0xff]
        %v707 = vld [vmem:[%s410 + $0x630] sm:$0xff]
        %v708 = vld [vmem:[%s410 + $0x638] sm:$0xff]
        %v709 = vld [vmem:[%s410 + $0x640] sm:$0xff]
        %v710 = vld [vmem:[%s410 + $0x648] sm:$0xff]
        %v711 = vld [vmem:[%s410 + $0x650] sm:$0xff]
        %v712 = vld [vmem:[%s410 + $0x658] sm:$0xff]
        %v713 = vld [vmem:[%s410 + $0x660] sm:$0xff]
        %v714 = vld [vmem:[%s410 + $0x668] sm:$0xff]
        %v715 = vld [vmem:[%s410 + $0x670] sm:$0xff]
        %v716 = vld [vmem:[%s410 + $0x678] sm:$0xff]
        %v717 = vld [vmem:[%s410 + $0x680] sm:$0xff]
        %v718 = vld [vmem:[%s410 + $0x688] sm:$0xff]
        %v719 = vld [vmem:[%s410 + $0x690] sm:$0xff]
        %v720 = vld [vmem:[%s410 + $0x698] sm:$0xff]
        %v721 = vld [vmem:[%s410 + $0x6a0] sm:$0xff]
        %v722 = vld [vmem:[%s410 + $0x6a8] sm:$0xff]
        %v723 = vld [vmem:[%s410 + $0x6b0] sm:$0xff]
        %v724 = vld [vmem:[%s410 + $0x6b8] sm:$0xff]
        %v725 = vld [vmem:[%s410 + $0x6c0] sm:$0xff]
        %v726 = vld [vmem:[%s410 + $0x6c8] sm:$0xff]
        %v727 = vld [vmem:[%s410 + $0x6d0] sm:$0xff]
        %v728 = vld [vmem:[%s410 + $0x6d8] sm:$0xff]
        %v729 = vld [vmem:[%s410 + $0x6e0] sm:$0xff]
        %v730 = vld [vmem:[%s410 + $0x6e8] sm:$0xff]
        %v731 = vld [vmem:[%s410 + $0x6f0] sm:$0xff]
        %v732 = vld [vmem:[%s410 + $0x6f8] sm:$0xff]
        %v733 = vld [vmem:[%s410 + $0x700] sm:$0xff]
        %v734 = vld [vmem:[%s410 + $0x708] sm:$0xff]
        %v735 = vld [vmem:[%s410 + $0x710] sm:$0xff]
        %v736 = vld [vmem:[%s410 + $0x718] sm:$0xff]
        %v737 = vld [vmem:[%s410 + $0x720] sm:$0xff]
        %v738 = vld [vmem:[%s410 + $0x728] sm:$0xff]
        %v739 = vld [vmem:[%s410 + $0x730] sm:$0xff]
        %v740 = vld [vmem:[%s410 + $0x738] sm:$0xff]
        %v741 = vld [vmem:[%s410 + $0x740] sm:$0xff]
        %v742 = vld [vmem:[%s410 + $0x748] sm:$0xff]
        %v743 = vld [vmem:[%s410 + $0x750] sm:$0xff]
        %v744 = vld [vmem:[%s410 + $0x758] sm:$0xff]
        %v745 = vld [vmem:[%s410 + $0x760] sm:$0xff]
        %v746 = vld [vmem:[%s410 + $0x768] sm:$0xff]
        %v747 = vld [vmem:[%s410 + $0x770] sm:$0xff]
        %v748 = vld [vmem:[%s410 + $0x778] sm:$0xff]
        %v749 = vld [vmem:[%s410 + $0x780] sm:$0xff]
        %v750 = vld [vmem:[%s410 + $0x788] sm:$0xff]
        %v751 = vld [vmem:[%s410 + $0x790] sm:$0xff]
        %v752 = vld [vmem:[%s410 + $0x798] sm:$0xff]
        %v753 = vld [vmem:[%s410 + $0x7a0] sm:$0xff]
        %v754 = vld [vmem:[%s410 + $0x7a8] sm:$0xff]
        %v755 = vld [vmem:[%s410 + $0x7b0] sm:$0xff]
        %v756 = vld [vmem:[%s410 + $0x7b8] sm:$0xff]
        %v757 = vld [vmem:[%s410 + $0x7c0] sm:$0xff]
        %v758 = vld [vmem:[%s410 + $0x7c8] sm:$0xff]
        %v759 = vld [vmem:[%s410 + $0x7d0] sm:$0xff]
        %v760 = vld [vmem:[%s410 + $0x7d8] sm:$0xff]
        %v761 = vld [vmem:[%s410 + $0x7e0] sm:$0xff]
        %v762 = vld [vmem:[%s410 + $0x7e8] sm:$0xff]
        %v763 = vld [vmem:[%s410 + $0x7f0] sm:$0xff]
        %v764 = vld [vmem:[%s410 + $0x7f8] sm:$0xff]
        %v765 = vld [vmem:[%s410 + $0x800] sm:$0xff]
        %v766 = vld [vmem:[%s410 + $0x808] sm:$0xff]
        %v767 = vld [vmem:[%s410 + $0x810] sm:$0xff]
        %v768 = vld [vmem:[%s410 + $0x818] sm:$0xff]
        %v769 = vld [vmem:[%s410 + $0x820] sm:$0xff]
        %v770 = vld [vmem:[%s410 + $0x828] sm:$0xff]
        %v771 = vld [vmem:[%s410 + $0x830] sm:$0xff]
        %v772 = vld [vmem:[%s410 + $0x838] sm:$0xff]
        %v773 = vld [vmem:[%s410 + $0x840] sm:$0xff]
        %v774 = vld [vmem:[%s410 + $0x848] sm:$0xff]
        %v775 = vld [vmem:[%s410 + $0x850] sm:$0xff]
        %v776 = vld [vmem:[%s410 + $0x858] sm:$0xff]
        %v777 = vld [vmem:[%s410 + $0x860] sm:$0xff]
        %v778 = vld [vmem:[%s410 + $0x868] sm:$0xff]
        %v779 = vld [vmem:[%s410 + $0x870] sm:$0xff]
        %v780 = vld [vmem:[%s410 + $0x878] sm:$0xff]
        %v781 = vld [vmem:[%s410 + $0x880] sm:$0xff]
        %v782 = vld [vmem:[%s410 + $0x888] sm:$0xff]
        %v783 = vld [vmem:[%s410 + $0x890] sm:$0xff]
        %v784 = vld [vmem:[%s410 + $0x898] sm:$0xff]
        %v785 = vld [vmem:[%s410 + $0x8a0] sm:$0xff]
        %v786 = vld [vmem:[%s410 + $0x8a8] sm:$0xff]
        %v787 = vld [vmem:[%s410 + $0x8b0] sm:$0xff]
        %v788 = vld [vmem:[%s410 + $0x8b8] sm:$0xff]
        %v789 = vld [vmem:[%s410 + $0x8c0] sm:$0xff]
        %v790 = vld [vmem:[%s410 + $0x8c8] sm:$0xff]
        %v791 = vld [vmem:[%s410 + $0x8d0] sm:$0xff]
        %v792 = vld [vmem:[%s410 + $0x8d8] sm:$0xff]
        %v793 = vld [vmem:[%s410 + $0x8e0] sm:$0xff]
        %v794 = vld [vmem:[%s410 + $0x8e8] sm:$0xff]
        %v795 = vld [vmem:[%s410 + $0x8f0] sm:$0xff]
        %v796 = vld [vmem:[%s410 + $0x8f8] sm:$0xff]
        %v797 = vld [vmem:[%s410 + $0x900] sm:$0xff]
        %v798 = vld [vmem:[%s410 + $0x908] sm:$0xff]
        %v799 = vld [vmem:[%s410 + $0x910] sm:$0xff]
        %v800 = vld [vmem:[%s410 + $0x918] sm:$0xff]
        %v801 = vld [vmem:[%s410 + $0x920] sm:$0xff]
        %v802 = vld [vmem:[%s410 + $0x928] sm:$0xff]
        %v803 = vld [vmem:[%s410 + $0x930] sm:$0xff]
        %v804 = vld [vmem:[%s410 + $0x938] sm:$0xff]
        %v805 = vld [vmem:[%s410 + $0x940] sm:$0xff]
        %v806 = vld [vmem:[%s410 + $0x948] sm:$0xff]
        %v807 = vld [vmem:[%s410 + $0x950] sm:$0xff]
        %v808 = vld [vmem:[%s410 + $0x958] sm:$0xff]
        %v809 = vld [vmem:[%s410 + $0x960] sm:$0xff]
        %v810 = vld [vmem:[%s410 + $0x968] sm:$0xff]
        %v811 = vld [vmem:[%s410 + $0x970] sm:$0xff]
        %v812 = vld [vmem:[%s410 + $0x978] sm:$0xff]
        %v813 = vld [vmem:[%s410 + $0x980] sm:$0xff]
        %v814 = vld [vmem:[%s410 + $0x988] sm:$0xff]
        %v815 = vld [vmem:[%s410 + $0x990] sm:$0xff]
        %v816 = vld [vmem:[%s410 + $0x998] sm:$0xff]
        %v817 = vld [vmem:[%s410 + $0x9a0] sm:$0xff]
        %v818 = vld [vmem:[%s410 + $0x9a8] sm:$0xff]
        %v819 = vld [vmem:[%s410 + $0x9b0] sm:$0xff]
        %v820 = vld [vmem:[%s410 + $0x9b8] sm:$0xff]
        %v821 = vld [vmem:[%s410 + $0x9c0] sm:$0xff]
        %v822 = vld [vmem:[%s410 + $0x9c8] sm:$0xff]
        %v823 = vld [vmem:[%s410 + $0x9d0] sm:$0xff]
        %v824 = vld [vmem:[%s410 + $0x9d8] sm:$0xff]
        %v825 = vld [vmem:[%s410 + $0x9e0] sm:$0xff]
        %v826 = vld [vmem:[%s410 + $0x9e8] sm:$0xff]
        %v827 = vld [vmem:[%s410 + $0x9f0] sm:$0xff]
        %v828 = vld [vmem:[%s410 + $0x9f8] sm:$0xff]
        %v829 = vld [vmem:[%s410 + $0xa00] sm:$0xff]
        %v830 = vld [vmem:[%s410 + $0xa08] sm:$0xff]
        %v831 = vld [vmem:[%s410 + $0xa10] sm:$0xff]
        %v832 = vld [vmem:[%s410 + $0xa18] sm:$0xff]
        %v833 = vld [vmem:[%s410 + $0xa20] sm:$0xff]
        %v834 = vld [vmem:[%s410 + $0xa28] sm:$0xff]
        %v835 = vld [vmem:[%s410 + $0xa30] sm:$0xff]
        %v836 = vld [vmem:[%s410 + $0xa38] sm:$0xff]
        %v837 = vld [vmem:[%s410 + $0xa40] sm:$0xff]
        %v838 = vld [vmem:[%s410 + $0xa48] sm:$0xff]
        %v839 = vld [vmem:[%s410 + $0xa50] sm:$0xff]
        %v840 = vld [vmem:[%s410 + $0xa58] sm:$0xff]
        %v841 = vld [vmem:[%s410 + $0xa60] sm:$0xff]
        %v842 = vld [vmem:[%s410 + $0xa68] sm:$0xff]
        %v843 = vld [vmem:[%s410 + $0xa70] sm:$0xff]
        %v844 = vld [vmem:[%s410 + $0xa78] sm:$0xff]
        %v845 = vld [vmem:[%s410 + $0xa80] sm:$0xff]
        %v846 = vld [vmem:[%s410 + $0xa88] sm:$0xff]
        %v847 = vld [vmem:[%s410 + $0xa90] sm:$0xff]
        %v848 = vld [vmem:[%s410 + $0xa98] sm:$0xff]
        %v849 = vld [vmem:[%s410 + $0xaa0] sm:$0xff]
        %v850 = vld [vmem:[%s410 + $0xaa8] sm:$0xff]
        %v851 = vld [vmem:[%s410 + $0xab0] sm:$0xff]
        %v852 = vld [vmem:[%s410 + $0xab8] sm:$0xff]
        %v853 = vld [vmem:[%s410 + $0xac0] sm:$0xff]
        %v854 = vld [vmem:[%s410 + $0xac8] sm:$0xff]
        %v855 = vld [vmem:[%s410 + $0xad0] sm:$0xff]
        %v856 = vld [vmem:[%s410 + $0xad8] sm:$0xff]
        %v857 = vld [vmem:[%s410 + $0xae0] sm:$0xff]
        %v858 = vld [vmem:[%s410 + $0xae8] sm:$0xff]
        %v859 = vld [vmem:[%s410 + $0xaf0] sm:$0xff]
        %v860 = vld [vmem:[%s410 + $0xaf8] sm:$0xff]
        %v861 = vld [vmem:[%s410 + $0xb00] sm:$0xff]
        %v862 = vld [vmem:[%s410 + $0xb08] sm:$0xff]
        %v863 = vld [vmem:[%s410 + $0xb10] sm:$0xff]
        %v864 = vld [vmem:[%s410 + $0xb18] sm:$0xff]
        %v865 = vld [vmem:[%s410 + $0xb20] sm:$0xff]
        %v866 = vld [vmem:[%s410 + $0xb28] sm:$0xff]
        %v867 = vld [vmem:[%s410 + $0xb30] sm:$0xff]
        %v868 = vld [vmem:[%s410 + $0xb38] sm:$0xff]
        %v869 = vld [vmem:[%s410 + $0xb40] sm:$0xff]
        %v870 = vld [vmem:[%s410 + $0xb48] sm:$0xff]
        %v871 = vld [vmem:[%s410 + $0xb50] sm:$0xff]
        %v872 = vld [vmem:[%s410 + $0xb58] sm:$0xff]
        %v873 = vld [vmem:[%s410 + $0xb60] sm:$0xff]
        %v874 = vld [vmem:[%s410 + $0xb68] sm:$0xff]
        %v875 = vld [vmem:[%s410 + $0xb70] sm:$0xff]
        %v876 = vld [vmem:[%s410 + $0xb78] sm:$0xff]
        %v877 = vld [vmem:[%s410 + $0xb80] sm:$0xff]
        %v878 = vld [vmem:[%s410 + $0xb88] sm:$0xff]
        %v879 = vld [vmem:[%s410 + $0xb90] sm:$0xff]
        %v880 = vld [vmem:[%s410 + $0xb98] sm:$0xff]
        %v881 = vld [vmem:[%s410 + $0xba0] sm:$0xff]
        %v882 = vld [vmem:[%s410 + $0xba8] sm:$0xff]
        %v883 = vld [vmem:[%s410 + $0xbb0] sm:$0xff]
        %v884 = vld [vmem:[%s410 + $0xbb8] sm:$0xff]
        %v885 = vld [vmem:[%s410 + $0xbc0] sm:$0xff]
        %v886 = vld [vmem:[%s410 + $0xbc8] sm:$0xff]
        %v887 = vld [vmem:[%s410 + $0xbd0] sm:$0xff]
        %v888 = vld [vmem:[%s410 + $0xbd8] sm:$0xff]
        %v889 = vld [vmem:[%s410 + $0xbe0] sm:$0xff]
        %v890 = vld [vmem:[%s410 + $0xbe8] sm:$0xff]
        %v891 = vld [vmem:[%s410 + $0xbf0] sm:$0xff]
        %v892 = vld [vmem:[%s410 + $0xbf8] sm:$0xff]
        %v893 = vld [vmem:[%s410 + $0xc00] sm:$0xff]
        %v894 = vld [vmem:[%s410 + $0xc08] sm:$0xff]
        %v895 = vld [vmem:[%s410 + $0xc10] sm:$0xff]
        %v896 = vld [vmem:[%s410 + $0xc18] sm:$0xff]
        %v897 = vld [vmem:[%s410 + $0xc20] sm:$0xff]
        %v898 = vld [vmem:[%s410 + $0xc28] sm:$0xff]
        %v899 = vld [vmem:[%s410 + $0xc30] sm:$0xff]
        %v900 = vld [vmem:[%s410 + $0xc38] sm:$0xff]
        %v901 = vld [vmem:[%s410 + $0xc40] sm:$0xff]
        %v902 = vld [vmem:[%s410 + $0xc48] sm:$0xff]
        %v903 = vld [vmem:[%s410 + $0xc50] sm:$0xff]
        %v904 = vld [vmem:[%s410 + $0xc58] sm:$0xff]
        %v905 = vld [vmem:[%s410 + $0xc60] sm:$0xff]
        %v906 = vld [vmem:[%s410 + $0xc68] sm:$0xff]
        %v907 = vld [vmem:[%s410 + $0xc70] sm:$0xff]
        %v908 = vld [vmem:[%s410 + $0xc78] sm:$0xff]
        %v909 = vld [vmem:[%s410 + $0xc80] sm:$0xff]
        %v910 = vld [vmem:[%s410 + $0xc88] sm:$0xff]
        %v911 = vld [vmem:[%s410 + $0xc90] sm:$0xff]
        %v912 = vld [vmem:[%s410 + $0xc98] sm:$0xff]
        %v913 = vld [vmem:[%s410 + $0xca0] sm:$0xff]
        %v914 = vld [vmem:[%s410 + $0xca8] sm:$0xff]
        %v915 = vld [vmem:[%s410 + $0xcb0] sm:$0xff]
        %v916 = vld [vmem:[%s410 + $0xcb8] sm:$0xff]
        %v917 = vld [vmem:[%s410 + $0xcc0] sm:$0xff]
        %v918 = vld [vmem:[%s410 + $0xcc8] sm:$0xff]
        %v919 = vld [vmem:[%s410 + $0xcd0] sm:$0xff]
        %v920 = vld [vmem:[%s410 + $0xcd8] sm:$0xff]
        %v921 = vld [vmem:[%s410 + $0xce0] sm:$0xff]
        %v922 = vld [vmem:[%s410 + $0xce8] sm:$0xff]
        %v923 = vld [vmem:[%s410 + $0xcf0] sm:$0xff]
        %v924 = vld [vmem:[%s410 + $0xcf8] sm:$0xff]
        %v925 = vld [vmem:[%s410 + $0xd00] sm:$0xff]
        %v926 = vld [vmem:[%s410 + $0xd08] sm:$0xff]
        %v927 = vld [vmem:[%s410 + $0xd10] sm:$0xff]
        %v928 = vld [vmem:[%s410 + $0xd18] sm:$0xff]
        %v929 = vld [vmem:[%s410 + $0xd20] sm:$0xff]
        %v930 = vld [vmem:[%s410 + $0xd28] sm:$0xff]
        %v931 = vld [vmem:[%s410 + $0xd30] sm:$0xff]
        %v932 = vld [vmem:[%s410 + $0xd38] sm:$0xff]
        %v933 = vld [vmem:[%s410 + $0xd40] sm:$0xff]
        %v934 = vld [vmem:[%s410 + $0xd48] sm:$0xff]
        %v935 = vld [vmem:[%s410 + $0xd50] sm:$0xff]
        %v936 = vld [vmem:[%s410 + $0xd58] sm:$0xff]
        %v937 = vld [vmem:[%s410 + $0xd60] sm:$0xff]
        %v938 = vld [vmem:[%s410 + $0xd68] sm:$0xff]
        %v939 = vld [vmem:[%s410 + $0xd70] sm:$0xff]
        %v940 = vld [vmem:[%s410 + $0xd78] sm:$0xff]
        %v941 = vld [vmem:[%s410 + $0xd80] sm:$0xff]
        %v942 = vld [vmem:[%s410 + $0xd88] sm:$0xff]
        %v943 = vld [vmem:[%s410 + $0xd90] sm:$0xff]
        %v944 = vld [vmem:[%s410 + $0xd98] sm:$0xff]
        %v945 = vld [vmem:[%s410 + $0xda0] sm:$0xff]
        %v946 = vld [vmem:[%s410 + $0xda8] sm:$0xff]
        %v947 = vld [vmem:[%s410 + $0xdb0] sm:$0xff]
        %v948 = vld [vmem:[%s410 + $0xdb8] sm:$0xff]
        %v949 = vld [vmem:[%s410 + $0xdc0] sm:$0xff]
        %v950 = vld [vmem:[%s410 + $0xdc8] sm:$0xff]
        %v951 = vld [vmem:[%s410 + $0xdd0] sm:$0xff]
        %v952 = vld [vmem:[%s410 + $0xdd8] sm:$0xff]
        %v953 = vld [vmem:[%s410 + $0xde0] sm:$0xff]
        %v954 = vld [vmem:[%s410 + $0xde8] sm:$0xff]
        %v955 = vld [vmem:[%s410 + $0xdf0] sm:$0xff]
        %v956 = vld [vmem:[%s410 + $0xdf8] sm:$0xff]
        %v957 = vld [vmem:[%s410 + $0xe00] sm:$0xff]
        %v958 = vld [vmem:[%s410 + $0xe08] sm:$0xff]
        %v959 = vld [vmem:[%s410 + $0xe10] sm:$0xff]
        %v960 = vld [vmem:[%s410 + $0xe18] sm:$0xff]
        %v961 = vld [vmem:[%s410 + $0xe20] sm:$0xff]
        %v962 = vld [vmem:[%s410 + $0xe28] sm:$0xff]
        %v963 = vld [vmem:[%s410 + $0xe30] sm:$0xff]
        %v964 = vld [vmem:[%s410 + $0xe38] sm:$0xff]
        %v965 = vld [vmem:[%s410 + $0xe40] sm:$0xff]
        %v966 = vld [vmem:[%s410 + $0xe48] sm:$0xff]
        %v967 = vld [vmem:[%s410 + $0xe50] sm:$0xff]
        %v968 = vld [vmem:[%s410 + $0xe58] sm:$0xff]
        %v969 = vld [vmem:[%s410 + $0xe60] sm:$0xff]
        %v970 = vld [vmem:[%s410 + $0xe68] sm:$0xff]
        %v971 = vld [vmem:[%s410 + $0xe70] sm:$0xff]
        %v972 = vld [vmem:[%s410 + $0xe78] sm:$0xff]
        %v973 = vld [vmem:[%s410 + $0xe80] sm:$0xff]
        %v974 = vld [vmem:[%s410 + $0xe88] sm:$0xff]
        %v975 = vld [vmem:[%s410 + $0xe90] sm:$0xff]
        %v976 = vld [vmem:[%s410 + $0xe98] sm:$0xff]
        %v977 = vld [vmem:[%s410 + $0xea0] sm:$0xff]
        %v978 = vld [vmem:[%s410 + $0xea8] sm:$0xff]
        %v979 = vld [vmem:[%s410 + $0xeb0] sm:$0xff]
        %v980 = vld [vmem:[%s410 + $0xeb8] sm:$0xff]
        %v981 = vld [vmem:[%s410 + $0xec0] sm:$0xff]
        %v982 = vld [vmem:[%s410 + $0xec8] sm:$0xff]
        %v983 = vld [vmem:[%s410 + $0xed0] sm:$0xff]
        %v984 = vld [vmem:[%s410 + $0xed8] sm:$0xff]
        %v985 = vld [vmem:[%s410 + $0xee0] sm:$0xff]
        %v986 = vld [vmem:[%s410 + $0xee8] sm:$0xff]
        %v987 = vld [vmem:[%s410 + $0xef0] sm:$0xff]
        %v988 = vld [vmem:[%s410 + $0xef8] sm:$0xff]
        %v989 = vld [vmem:[%s410 + $0xf00] sm:$0xff]
        %v990 = vld [vmem:[%s410 + $0xf08] sm:$0xff]
        %v991 = vld [vmem:[%s410 + $0xf10] sm:$0xff]
        %v992 = vld [vmem:[%s410 + $0xf18] sm:$0xff]
        %v993 = vld [vmem:[%s410 + $0xf20] sm:$0xff]
        %v994 = vld [vmem:[%s410 + $0xf28] sm:$0xff]
        %v995 = vld [vmem:[%s410 + $0xf30] sm:$0xff]
        %v996 = vld [vmem:[%s410 + $0xf38] sm:$0xff]
        %v997 = vld [vmem:[%s410 + $0xf40] sm:$0xff]
        %v998 = vld [vmem:[%s410 + $0xf48] sm:$0xff]
        %v999 = vld [vmem:[%s410 + $0xf50] sm:$0xff]
        %v1000 = vld [vmem:[%s410 + $0xf58] sm:$0xff]
        %v1001 = vld [vmem:[%s410 + $0xf60] sm:$0xff]
        %v1002 = vld [vmem:[%s410 + $0xf68] sm:$0xff]
        %v1003 = vld [vmem:[%s410 + $0xf70] sm:$0xff]
        %v1004 = vld [vmem:[%s410 + $0xf78] sm:$0xff]
        %v1005 = vld [vmem:[%s410 + $0xf80] sm:$0xff]
        %v1006 = vld [vmem:[%s410 + $0xf88] sm:$0xff]
        %v1007 = vld [vmem:[%s410 + $0xf90] sm:$0xff]
        %v1008 = vld [vmem:[%s410 + $0xf98] sm:$0xff]
        %v1009 = vld [vmem:[%s410 + $0xfa0] sm:$0xff]
        %v1010 = vld [vmem:[%s410 + $0xfa8] sm:$0xff]
        %v1011 = vld [vmem:[%s410 + $0xfb0] sm:$0xff]
        %v1012 = vld [vmem:[%s410 + $0xfb8] sm:$0xff]
        %v1013 = vld [vmem:[%s410 + $0xfc0] sm:$0xff]
        %v1014 = vld [vmem:[%s410 + $0xfc8] sm:$0xff]
        %v1015 = vld [vmem:[%s410 + $0xfd0] sm:$0xff]
        %v1016 = vld [vmem:[%s410 + $0xfd8] sm:$0xff]
        %v1017 = vld [vmem:[%s410 + $0xfe0] sm:$0xff]
        %v1018 = vld [vmem:[%s410 + $0xfe8] sm:$0xff]
        %v1019 = vld [vmem:[%s410 + $0xff0] sm:$0xff]
        %v1020 = vld [vmem:[%s410 + $0xff8] sm:$0xff]
        %v1029 = vunpack.c.l.b16 %v501
        %v1030 = vunpack.c.h.b16 %v501
        %v1031 = vunpack.c.l.b16 %v502
        %v1032 = vunpack.c.h.b16 %v502
        %v1033 = vunpack.c.l.b16 %v503
        %v1034 = vunpack.c.h.b16 %v503
        %v1035 = vunpack.c.l.b16 %v504
        %v1036 = vunpack.c.h.b16 %v504
        %v1037 = vunpack.c.l.b16 %v505
        %v1038 = vunpack.c.h.b16 %v505
        %v1039 = vunpack.c.l.b16 %v506
        %v1040 = vunpack.c.h.b16 %v506
        %v1041 = vunpack.c.l.b16 %v507
        %v1042 = vunpack.c.h.b16 %v507
        %v1043 = vunpack.c.l.b16 %v508
        %v1044 = vunpack.c.h.b16 %v508
        %v1045 = vpack.c.b16 %v1029, %v1029
        %v1046 = vpack.c.b16 %v1030, %v1030
        %v1047 = vpack.c.b16 %v1031, %v1031
        %v1048 = vpack.c.b16 %v1032, %v1032
        %v1049 = vpack.c.b16 %v1033, %v1033
        %v1050 = vpack.c.b16 %v1034, %v1034
        %v1051 = vpack.c.b16 %v1035, %v1035
        %v1052 = vpack.c.b16 %v1036, %v1036
        %v1053 = vpack.c.b16 %v1037, %v1037
        %v1054 = vpack.c.b16 %v1038, %v1038
        %v1055 = vpack.c.b16 %v1039, %v1039
        %v1056 = vpack.c.b16 %v1040, %v1040
        %v1057 = vpack.c.b16 %v1041, %v1041
        %v1058 = vpack.c.b16 %v1042, %v1042
        %v1059 = vpack.c.b16 %v1043, %v1043
        %v1060 = vpack.c.b16 %v1044, %v1044
        %v1589 = vunpack.c.l.b16 %v509
        %v1590 = vunpack.c.h.b16 %v509
        %v1591 = vunpack.c.l.b16 %v510
        %v1592 = vunpack.c.h.b16 %v510
        %v1593 = vunpack.c.l.b16 %v511
        %v1594 = vunpack.c.h.b16 %v511
        %v1595 = vunpack.c.l.b16 %v512
        %v1596 = vunpack.c.h.b16 %v512
        %v1597 = vunpack.c.l.b16 %v513
        %v1598 = vunpack.c.h.b16 %v513
        %v1599 = vunpack.c.l.b16 %v514
        %v1600 = vunpack.c.h.b16 %v514
        %v1601 = vunpack.c.l.b16 %v515
        %v1602 = vunpack.c.h.b16 %v515
        %v1603 = vunpack.c.l.b16 %v516
        %v1604 = vunpack.c.h.b16 %v516
        %v1605 = vunpack.c.l.b16 %v517
        %v1606 = vunpack.c.h.b16 %v517
        %v1607 = vunpack.c.l.b16 %v518
        %v1608 = vunpack.c.h.b16 %v518
        %v1609 = vunpack.c.l.b16 %v519
        %v1610 = vunpack.c.h.b16 %v519
        %v1611 = vunpack.c.l.b16 %v520
        %v1612 = vunpack.c.h.b16 %v520
        %v1613 = vunpack.c.l.b16 %v521
        %v1614 = vunpack.c.h.b16 %v521
        %v1615 = vunpack.c.l.b16 %v522
        %v1616 = vunpack.c.h.b16 %v522
        %v1617 = vunpack.c.l.b16 %v523
        %v1618 = vunpack.c.h.b16 %v523
        %v1619 = vunpack.c.l.b16 %v524
        %v1620 = vunpack.c.h.b16 %v524
        %v1621 = vunpack.c.l.b16 %v525
        %v1622 = vunpack.c.h.b16 %v525
        %v1623 = vunpack.c.l.b16 %v526
        %v1624 = vunpack.c.h.b16 %v526
        %v1625 = vunpack.c.l.b16 %v527
        %v1626 = vunpack.c.h.b16 %v527
        %v1627 = vunpack.c.l.b16 %v528
        %v1628 = vunpack.c.h.b16 %v528
        %v1629 = vunpack.c.l.b16 %v529
        %v1630 = vunpack.c.h.b16 %v529
        %v1631 = vunpack.c.l.b16 %v530
        %v1632 = vunpack.c.h.b16 %v530
        %v1633 = vunpack.c.l.b16 %v531
        %v1634 = vunpack.c.h.b16 %v531
        %v1635 = vunpack.c.l.b16 %v532
        %v1636 = vunpack.c.h.b16 %v532
        %v1637 = vunpack.c.l.b16 %v533
        %v1638 = vunpack.c.h.b16 %v533
        %v1639 = vunpack.c.l.b16 %v534
        %v1640 = vunpack.c.h.b16 %v534
        %v1641 = vunpack.c.l.b16 %v535
        %v1642 = vunpack.c.h.b16 %v535
        %v1643 = vunpack.c.l.b16 %v536
        %v1644 = vunpack.c.h.b16 %v536
        %v1645 = vunpack.c.l.b16 %v537
        %v1646 = vunpack.c.h.b16 %v537
        %v1647 = vunpack.c.l.b16 %v538
        %v1648 = vunpack.c.h.b16 %v538
        %v1649 = vunpack.c.l.b16 %v539
        %v1650 = vunpack.c.h.b16 %v539
        %v1651 = vunpack.c.l.b16 %v540
        %v1652 = vunpack.c.h.b16 %v540
        %v1653 = vunpack.c.l.b16 %v541
        %v1654 = vunpack.c.h.b16 %v541
        %v1655 = vunpack.c.l.b16 %v542
        %v1656 = vunpack.c.h.b16 %v542
        %v1657 = vunpack.c.l.b16 %v543
        %v1658 = vunpack.c.h.b16 %v543
        %v1659 = vunpack.c.l.b16 %v544
        %v1660 = vunpack.c.h.b16 %v544
        %v1661 = vunpack.c.l.b16 %v545
        %v1662 = vunpack.c.h.b16 %v545
        %v1663 = vunpack.c.l.b16 %v546
        %v1664 = vunpack.c.h.b16 %v546
        %v1665 = vunpack.c.l.b16 %v547
        %v1666 = vunpack.c.h.b16 %v547
        %v1667 = vunpack.c.l.b16 %v548
        %v1668 = vunpack.c.h.b16 %v548
        %v1669 = vunpack.c.l.b16 %v549
        %v1670 = vunpack.c.h.b16 %v549
        %v1671 = vunpack.c.l.b16 %v550
        %v1672 = vunpack.c.h.b16 %v550
        %v1673 = vunpack.c.l.b16 %v551
        %v1674 = vunpack.c.h.b16 %v551
        %v1675 = vunpack.c.l.b16 %v552
        %v1676 = vunpack.c.h.b16 %v552
        %v1677 = vunpack.c.l.b16 %v553
        %v1678 = vunpack.c.h.b16 %v553
        %v1679 = vunpack.c.l.b16 %v554
        %v1680 = vunpack.c.h.b16 %v554
        %v1681 = vunpack.c.l.b16 %v555
        %v1682 = vunpack.c.h.b16 %v555
        %v1683 = vunpack.c.l.b16 %v556
        %v1684 = vunpack.c.h.b16 %v556
        %v1685 = vunpack.c.l.b16 %v557
        %v1686 = vunpack.c.h.b16 %v557
        %v1687 = vunpack.c.l.b16 %v558
        %v1688 = vunpack.c.h.b16 %v558
        %v1689 = vunpack.c.l.b16 %v559
        %v1690 = vunpack.c.h.b16 %v559
        %v1691 = vunpack.c.l.b16 %v560
        %v1692 = vunpack.c.h.b16 %v560
        %v1693 = vunpack.c.l.b16 %v561
        %v1694 = vunpack.c.h.b16 %v561
        %v1695 = vunpack.c.l.b16 %v562
        %v1696 = vunpack.c.h.b16 %v562
        %v1697 = vunpack.c.l.b16 %v563
        %v1698 = vunpack.c.h.b16 %v563
        %v1699 = vunpack.c.l.b16 %v564
        %v1700 = vunpack.c.h.b16 %v564
        %v1701 = vunpack.c.l.b16 %v565
        %v1702 = vunpack.c.h.b16 %v565
        %v1703 = vunpack.c.l.b16 %v566
        %v1704 = vunpack.c.h.b16 %v566
        %v1705 = vunpack.c.l.b16 %v567
        %v1706 = vunpack.c.h.b16 %v567
        %v1707 = vunpack.c.l.b16 %v568
        %v1708 = vunpack.c.h.b16 %v568
        %v1709 = vunpack.c.l.b16 %v569
        %v1710 = vunpack.c.h.b16 %v569
        %v1711 = vunpack.c.l.b16 %v570
        %v1712 = vunpack.c.h.b16 %v570
        %v1713 = vunpack.c.l.b16 %v571
        %v1714 = vunpack.c.h.b16 %v571
        %v1715 = vunpack.c.l.b16 %v572
        %v1716 = vunpack.c.h.b16 %v572
        %v1717 = vunpack.c.l.b16 %v573
        %v1718 = vunpack.c.h.b16 %v573
        %v1719 = vunpack.c.l.b16 %v574
        %v1720 = vunpack.c.h.b16 %v574
        %v1721 = vunpack.c.l.b16 %v575
        %v1722 = vunpack.c.h.b16 %v575
        %v1723 = vunpack.c.l.b16 %v576
        %v1724 = vunpack.c.h.b16 %v576
        %v1725 = vunpack.c.l.b16 %v577
        %v1726 = vunpack.c.h.b16 %v577
        %v1727 = vunpack.c.l.b16 %v578
        %v1728 = vunpack.c.h.b16 %v578
        %v1729 = vunpack.c.l.b16 %v579
        %v1730 = vunpack.c.h.b16 %v579
        %v1731 = vunpack.c.l.b16 %v580
        %v1732 = vunpack.c.h.b16 %v580
        %v1733 = vunpack.c.l.b16 %v581
        %v1734 = vunpack.c.h.b16 %v581
        %v1735 = vunpack.c.l.b16 %v582
        %v1736 = vunpack.c.h.b16 %v582
        %v1737 = vunpack.c.l.b16 %v583
        %v1738 = vunpack.c.h.b16 %v583
        %v1739 = vunpack.c.l.b16 %v584
        %v1740 = vunpack.c.h.b16 %v584
        %v1741 = vunpack.c.l.b16 %v585
        %v1742 = vunpack.c.h.b16 %v585
        %v1743 = vunpack.c.l.b16 %v586
        %v1744 = vunpack.c.h.b16 %v586
        %v1745 = vunpack.c.l.b16 %v587
        %v1746 = vunpack.c.h.b16 %v587
        %v1747 = vunpack.c.l.b16 %v588
        %v1748 = vunpack.c.h.b16 %v588
        %v1749 = vunpack.c.l.b16 %v589
        %v1750 = vunpack.c.h.b16 %v589
        %v1751 = vunpack.c.l.b16 %v590
        %v1752 = vunpack.c.h.b16 %v590
        %v1753 = vunpack.c.l.b16 %v591
        %v1754 = vunpack.c.h.b16 %v591
        %v1755 = vunpack.c.l.b16 %v592
        %v1756 = vunpack.c.h.b16 %v592
        %v1757 = vunpack.c.l.b16 %v593
        %v1758 = vunpack.c.h.b16 %v593
        %v1759 = vunpack.c.l.b16 %v594
        %v1760 = vunpack.c.h.b16 %v594
        %v1761 = vunpack.c.l.b16 %v595
        %v1762 = vunpack.c.h.b16 %v595
        %v1763 = vunpack.c.l.b16 %v596
        %v1764 = vunpack.c.h.b16 %v596
        %v1765 = vunpack.c.l.b16 %v597
        %v1766 = vunpack.c.h.b16 %v597
        %v1767 = vunpack.c.l.b16 %v598
        %v1768 = vunpack.c.h.b16 %v598
        %v1769 = vunpack.c.l.b16 %v599
        %v1770 = vunpack.c.h.b16 %v599
        %v1771 = vunpack.c.l.b16 %v600
        %v1772 = vunpack.c.h.b16 %v600
        %v1773 = vunpack.c.l.b16 %v601
        %v1774 = vunpack.c.h.b16 %v601
        %v1775 = vunpack.c.l.b16 %v602
        %v1776 = vunpack.c.h.b16 %v602
        %v1777 = vunpack.c.l.b16 %v603
        %v1778 = vunpack.c.h.b16 %v603
        %v1779 = vunpack.c.l.b16 %v604
        %v1780 = vunpack.c.h.b16 %v604
        %v1781 = vunpack.c.l.b16 %v605
        %v1782 = vunpack.c.h.b16 %v605
        %v1783 = vunpack.c.l.b16 %v606
        %v1784 = vunpack.c.h.b16 %v606
        %v1785 = vunpack.c.l.b16 %v607
        %v1786 = vunpack.c.h.b16 %v607
        %v1787 = vunpack.c.l.b16 %v608
        %v1788 = vunpack.c.h.b16 %v608
        %v1789 = vunpack.c.l.b16 %v609
        %v1790 = vunpack.c.h.b16 %v609
        %v1791 = vunpack.c.l.b16 %v610
        %v1792 = vunpack.c.h.b16 %v610
        %v1793 = vunpack.c.l.b16 %v611
        %v1794 = vunpack.c.h.b16 %v611
        %v1795 = vunpack.c.l.b16 %v612
        %v1796 = vunpack.c.h.b16 %v612
        %v1797 = vunpack.c.l.b16 %v613
        %v1798 = vunpack.c.h.b16 %v613
        %v1799 = vunpack.c.l.b16 %v614
        %v1800 = vunpack.c.h.b16 %v614
        %v1801 = vunpack.c.l.b16 %v615
        %v1802 = vunpack.c.h.b16 %v615
        %v1803 = vunpack.c.l.b16 %v616
        %v1804 = vunpack.c.h.b16 %v616
        %v1805 = vunpack.c.l.b16 %v617
        %v1806 = vunpack.c.h.b16 %v617
        %v1807 = vunpack.c.l.b16 %v618
        %v1808 = vunpack.c.h.b16 %v618
        %v1809 = vunpack.c.l.b16 %v619
        %v1810 = vunpack.c.h.b16 %v619
        %v1811 = vunpack.c.l.b16 %v620
        %v1812 = vunpack.c.h.b16 %v620
        %v1813 = vunpack.c.l.b16 %v621
        %v1814 = vunpack.c.h.b16 %v621
        %v1815 = vunpack.c.l.b16 %v622
        %v1816 = vunpack.c.h.b16 %v622
        %v1817 = vunpack.c.l.b16 %v623
        %v1818 = vunpack.c.h.b16 %v623
        %v1819 = vunpack.c.l.b16 %v624
        %v1820 = vunpack.c.h.b16 %v624
        %v1821 = vunpack.c.l.b16 %v625
        %v1822 = vunpack.c.h.b16 %v625
        %v1823 = vunpack.c.l.b16 %v626
        %v1824 = vunpack.c.h.b16 %v626
        %v1825 = vunpack.c.l.b16 %v627
        %v1826 = vunpack.c.h.b16 %v627
        %v1827 = vunpack.c.l.b16 %v628
        %v1828 = vunpack.c.h.b16 %v628
        %v1829 = vunpack.c.l.b16 %v629
        %v1830 = vunpack.c.h.b16 %v629
        %v1831 = vunpack.c.l.b16 %v630
        %v1832 = vunpack.c.h.b16 %v630
        %v1833 = vunpack.c.l.b16 %v631
        %v1834 = vunpack.c.h.b16 %v631
        %v1835 = vunpack.c.l.b16 %v632
        %v1836 = vunpack.c.h.b16 %v632
        %v1837 = vunpack.c.l.b16 %v633
        %v1838 = vunpack.c.h.b16 %v633
        %v1839 = vunpack.c.l.b16 %v634
        %v1840 = vunpack.c.h.b16 %v634
        %v1841 = vunpack.c.l.b16 %v635
        %v1842 = vunpack.c.h.b16 %v635
        %v1843 = vunpack.c.l.b16 %v636
        %v1844 = vunpack.c.h.b16 %v636
        %v1845 = vunpack.c.l.b16 %v637
        %v1846 = vunpack.c.h.b16 %v637
        %v1847 = vunpack.c.l.b16 %v638
        %v1848 = vunpack.c.h.b16 %v638
        %v1849 = vunpack.c.l.b16 %v639
        %v1850 = vunpack.c.h.b16 %v639
        %v1851 = vunpack.c.l.b16 %v640
        %v1852 = vunpack.c.h.b16 %v640
        %v1853 = vunpack.c.l.b16 %v641
        %v1854 = vunpack.c.h.b16 %v641
        %v1855 = vunpack.c.l.b16 %v642
        %v1856 = vunpack.c.h.b16 %v642
        %v1857 = vunpack.c.l.b16 %v643
        %v1858 = vunpack.c.h.b16 %v643
        %v1859 = vunpack.c.l.b16 %v644
        %v1860 = vunpack.c.h.b16 %v644
        %v1861 = vunpack.c.l.b16 %v645
        %v1862 = vunpack.c.h.b16 %v645
        %v1863 = vunpack.c.l.b16 %v646
        %v1864 = vunpack.c.h.b16 %v646
        %v1865 = vunpack.c.l.b16 %v647
        %v1866 = vunpack.c.h.b16 %v647
        %v1867 = vunpack.c.l.b16 %v648
        %v1868 = vunpack.c.h.b16 %v648
        %v1869 = vunpack.c.l.b16 %v649
        %v1870 = vunpack.c.h.b16 %v649
        %v1871 = vunpack.c.l.b16 %v650
        %v1872 = vunpack.c.h.b16 %v650
        %v1873 = vunpack.c.l.b16 %v651
        %v1874 = vunpack.c.h.b16 %v651
        %v1875 = vunpack.c.l.b16 %v652
        %v1876 = vunpack.c.h.b16 %v652
        %v1877 = vunpack.c.l.b16 %v653
        %v1878 = vunpack.c.h.b16 %v653
        %v1879 = vunpack.c.l.b16 %v654
        %v1880 = vunpack.c.h.b16 %v654
        %v1881 = vunpack.c.l.b16 %v655
        %v1882 = vunpack.c.h.b16 %v655
        %v1883 = vunpack.c.l.b16 %v656
        %v1884 = vunpack.c.h.b16 %v656
        %v1885 = vunpack.c.l.b16 %v657
        %v1886 = vunpack.c.h.b16 %v657
        %v1887 = vunpack.c.l.b16 %v658
        %v1888 = vunpack.c.h.b16 %v658
        %v1889 = vunpack.c.l.b16 %v659
        %v1890 = vunpack.c.h.b16 %v659
        %v1891 = vunpack.c.l.b16 %v660
        %v1892 = vunpack.c.h.b16 %v660
        %v1893 = vunpack.c.l.b16 %v661
        %v1894 = vunpack.c.h.b16 %v661
        %v1895 = vunpack.c.l.b16 %v662
        %v1896 = vunpack.c.h.b16 %v662
        %v1897 = vunpack.c.l.b16 %v663
        %v1898 = vunpack.c.h.b16 %v663
        %v1899 = vunpack.c.l.b16 %v664
        %v1900 = vunpack.c.h.b16 %v664
        %v1901 = vunpack.c.l.b16 %v665
        %v1902 = vunpack.c.h.b16 %v665
        %v1903 = vunpack.c.l.b16 %v666
        %v1904 = vunpack.c.h.b16 %v666
        %v1905 = vunpack.c.l.b16 %v667
        %v1906 = vunpack.c.h.b16 %v667
        %v1907 = vunpack.c.l.b16 %v668
        %v1908 = vunpack.c.h.b16 %v668
        %v1909 = vunpack.c.l.b16 %v669
        %v1910 = vunpack.c.h.b16 %v669
        %v1911 = vunpack.c.l.b16 %v670
        %v1912 = vunpack.c.h.b16 %v670
        %v1913 = vunpack.c.l.b16 %v671
        %v1914 = vunpack.c.h.b16 %v671
        %v1915 = vunpack.c.l.b16 %v672
        %v1916 = vunpack.c.h.b16 %v672
        %v1917 = vunpack.c.l.b16 %v673
        %v1918 = vunpack.c.h.b16 %v673
        %v1919 = vunpack.c.l.b16 %v674
        %v1920 = vunpack.c.h.b16 %v674
        %v1921 = vunpack.c.l.b16 %v675
        %v1922 = vunpack.c.h.b16 %v675
        %v1923 = vunpack.c.l.b16 %v676
        %v1924 = vunpack.c.h.b16 %v676
        %v1925 = vunpack.c.l.b16 %v677
        %v1926 = vunpack.c.h.b16 %v677
        %v1927 = vunpack.c.l.b16 %v678
        %v1928 = vunpack.c.h.b16 %v678
        %v1929 = vunpack.c.l.b16 %v679
        %v1930 = vunpack.c.h.b16 %v679
        %v1931 = vunpack.c.l.b16 %v680
        %v1932 = vunpack.c.h.b16 %v680
        %v1933 = vunpack.c.l.b16 %v681
        %v1934 = vunpack.c.h.b16 %v681
        %v1935 = vunpack.c.l.b16 %v682
        %v1936 = vunpack.c.h.b16 %v682
        %v1937 = vunpack.c.l.b16 %v683
        %v1938 = vunpack.c.h.b16 %v683
        %v1939 = vunpack.c.l.b16 %v684
        %v1940 = vunpack.c.h.b16 %v684
        %v1941 = vunpack.c.l.b16 %v685
        %v1942 = vunpack.c.h.b16 %v685
        %v1943 = vunpack.c.l.b16 %v686
        %v1944 = vunpack.c.h.b16 %v686
        %v1945 = vunpack.c.l.b16 %v687
        %v1946 = vunpack.c.h.b16 %v687
        %v1947 = vunpack.c.l.b16 %v688
        %v1948 = vunpack.c.h.b16 %v688
        %v1949 = vunpack.c.l.b16 %v689
        %v1950 = vunpack.c.h.b16 %v689
        %v1951 = vunpack.c.l.b16 %v690
        %v1952 = vunpack.c.h.b16 %v690
        %v1953 = vunpack.c.l.b16 %v691
        %v1954 = vunpack.c.h.b16 %v691
        %v1955 = vunpack.c.l.b16 %v692
        %v1956 = vunpack.c.h.b16 %v692
        %v1957 = vunpack.c.l.b16 %v693
        %v1958 = vunpack.c.h.b16 %v693
        %v1959 = vunpack.c.l.b16 %v694
        %v1960 = vunpack.c.h.b16 %v694
        %v1961 = vunpack.c.l.b16 %v695
        %v1962 = vunpack.c.h.b16 %v695
        %v1963 = vunpack.c.l.b16 %v696
        %v1964 = vunpack.c.h.b16 %v696
        %v1965 = vunpack.c.l.b16 %v697
        %v1966 = vunpack.c.h.b16 %v697
        %v1967 = vunpack.c.l.b16 %v698
        %v1968 = vunpack.c.h.b16 %v698
        %v1969 = vunpack.c.l.b16 %v699
        %v1970 = vunpack.c.h.b16 %v699
        %v1971 = vunpack.c.l.b16 %v700
        %v1972 = vunpack.c.h.b16 %v700
        %v1973 = vunpack.c.l.b16 %v701
        %v1974 = vunpack.c.h.b16 %v701
        %v1975 = vunpack.c.l.b16 %v702
        %v1976 = vunpack.c.h.b16 %v702
        %v1977 = vunpack.c.l.b16 %v703
        %v1978 = vunpack.c.h.b16 %v703
        %v1979 = vunpack.c.l.b16 %v704
        %v1980 = vunpack.c.h.b16 %v704
        %v1981 = vunpack.c.l.b16 %v705
        %v1982 = vunpack.c.h.b16 %v705
        %v1983 = vunpack.c.l.b16 %v706
        %v1984 = vunpack.c.h.b16 %v706
        %v1985 = vunpack.c.l.b16 %v707
        %v1986 = vunpack.c.h.b16 %v707
        %v1987 = vunpack.c.l.b16 %v708
        %v1988 = vunpack.c.h.b16 %v708
        %v1989 = vunpack.c.l.b16 %v709
        %v1990 = vunpack.c.h.b16 %v709
        %v1991 = vunpack.c.l.b16 %v710
        %v1992 = vunpack.c.h.b16 %v710
        %v1993 = vunpack.c.l.b16 %v711
        %v1994 = vunpack.c.h.b16 %v711
        %v1995 = vunpack.c.l.b16 %v712
        %v1996 = vunpack.c.h.b16 %v712
        %v1997 = vunpack.c.l.b16 %v713
        %v1998 = vunpack.c.h.b16 %v713
        %v1999 = vunpack.c.l.b16 %v714
        %v2000 = vunpack.c.h.b16 %v714
        %v2001 = vunpack.c.l.b16 %v715
        %v2002 = vunpack.c.h.b16 %v715
        %v2003 = vunpack.c.l.b16 %v716
        %v2004 = vunpack.c.h.b16 %v716
        %v2005 = vunpack.c.l.b16 %v717
        %v2006 = vunpack.c.h.b16 %v717
        %v2007 = vunpack.c.l.b16 %v718
        %v2008 = vunpack.c.h.b16 %v718
        %v2009 = vunpack.c.l.b16 %v719
        %v2010 = vunpack.c.h.b16 %v719
        %v2011 = vunpack.c.l.b16 %v720
        %v2012 = vunpack.c.h.b16 %v720
        %v2013 = vunpack.c.l.b16 %v721
        %v2014 = vunpack.c.h.b16 %v721
        %v2015 = vunpack.c.l.b16 %v722
        %v2016 = vunpack.c.h.b16 %v722
        %v2017 = vunpack.c.l.b16 %v723
        %v2018 = vunpack.c.h.b16 %v723
        %v2019 = vunpack.c.l.b16 %v724
        %v2020 = vunpack.c.h.b16 %v724
        %v2021 = vunpack.c.l.b16 %v725
        %v2022 = vunpack.c.h.b16 %v725
        %v2023 = vunpack.c.l.b16 %v726
        %v2024 = vunpack.c.h.b16 %v726
        %v2025 = vunpack.c.l.b16 %v727
        %v2026 = vunpack.c.h.b16 %v727
        %v2027 = vunpack.c.l.b16 %v728
        %v2028 = vunpack.c.h.b16 %v728
        %v2029 = vunpack.c.l.b16 %v729
        %v2030 = vunpack.c.h.b16 %v729
        %v2031 = vunpack.c.l.b16 %v730
        %v2032 = vunpack.c.h.b16 %v730
        %v2033 = vunpack.c.l.b16 %v731
        %v2034 = vunpack.c.h.b16 %v731
        %v2035 = vunpack.c.l.b16 %v732
        %v2036 = vunpack.c.h.b16 %v732
        %v2037 = vunpack.c.l.b16 %v733
        %v2038 = vunpack.c.h.b16 %v733
        %v2039 = vunpack.c.l.b16 %v734
        %v2040 = vunpack.c.h.b16 %v734
        %v2041 = vunpack.c.l.b16 %v735
        %v2042 = vunpack.c.h.b16 %v735
        %v2043 = vunpack.c.l.b16 %v736
        %v2044 = vunpack.c.h.b16 %v736
        %v2045 = vunpack.c.l.b16 %v737
        %v2046 = vunpack.c.h.b16 %v737
        %v2047 = vunpack.c.l.b16 %v738
        %v2048 = vunpack.c.h.b16 %v738
        %v2049 = vunpack.c.l.b16 %v739
        %v2050 = vunpack.c.h.b16 %v739
        %v2051 = vunpack.c.l.b16 %v740
        %v2052 = vunpack.c.h.b16 %v740
        %v2053 = vunpack.c.l.b16 %v741
        %v2054 = vunpack.c.h.b16 %v741
        %v2055 = vunpack.c.l.b16 %v742
        %v2056 = vunpack.c.h.b16 %v742
        %v2057 = vunpack.c.l.b16 %v743
        %v2058 = vunpack.c.h.b16 %v743
        %v2059 = vunpack.c.l.b16 %v744
        %v2060 = vunpack.c.h.b16 %v744
        %v2061 = vunpack.c.l.b16 %v745
        %v2062 = vunpack.c.h.b16 %v745
        %v2063 = vunpack.c.l.b16 %v746
        %v2064 = vunpack.c.h.b16 %v746
        %v2065 = vunpack.c.l.b16 %v747
        %v2066 = vunpack.c.h.b16 %v747
        %v2067 = vunpack.c.l.b16 %v748
        %v2068 = vunpack.c.h.b16 %v748
        %v2069 = vunpack.c.l.b16 %v749
        %v2070 = vunpack.c.h.b16 %v749
        %v2071 = vunpack.c.l.b16 %v750
        %v2072 = vunpack.c.h.b16 %v750
        %v2073 = vunpack.c.l.b16 %v751
        %v2074 = vunpack.c.h.b16 %v751
        %v2075 = vunpack.c.l.b16 %v752
        %v2076 = vunpack.c.h.b16 %v752
        %v2077 = vunpack.c.l.b16 %v753
        %v2078 = vunpack.c.h.b16 %v753
        %v2079 = vunpack.c.l.b16 %v754
        %v2080 = vunpack.c.h.b16 %v754
        %v2081 = vunpack.c.l.b16 %v755
        %v2082 = vunpack.c.h.b16 %v755
        %v2083 = vunpack.c.l.b16 %v756
        %v2084 = vunpack.c.h.b16 %v756
        %v2085 = vunpack.c.l.b16 %v757
        %v2086 = vunpack.c.h.b16 %v757
        %v2087 = vunpack.c.l.b16 %v758
        %v2088 = vunpack.c.h.b16 %v758
        %v2089 = vunpack.c.l.b16 %v759
        %v2090 = vunpack.c.h.b16 %v759
        %v2091 = vunpack.c.l.b16 %v760
        %v2092 = vunpack.c.h.b16 %v760
        %v2093 = vunpack.c.l.b16 %v761
        %v2094 = vunpack.c.h.b16 %v761
        %v2095 = vunpack.c.l.b16 %v762
        %v2096 = vunpack.c.h.b16 %v762
        %v2097 = vunpack.c.l.b16 %v763
        %v2098 = vunpack.c.h.b16 %v763
        %v2099 = vunpack.c.l.b16 %v764
        %v2100 = vunpack.c.h.b16 %v764
        %v2101 = vunpack.c.l.b16 %v765
        %v2102 = vunpack.c.h.b16 %v765
        %v2103 = vunpack.c.l.b16 %v766
        %v2104 = vunpack.c.h.b16 %v766
        %v2105 = vunpack.c.l.b16 %v767
        %v2106 = vunpack.c.h.b16 %v767
        %v2107 = vunpack.c.l.b16 %v768
        %v2108 = vunpack.c.h.b16 %v768
        %v2109 = vunpack.c.l.b16 %v769
        %v2110 = vunpack.c.h.b16 %v769
        %v2111 = vunpack.c.l.b16 %v770
        %v2112 = vunpack.c.h.b16 %v770
        %v2113 = vunpack.c.l.b16 %v771
        %v2114 = vunpack.c.h.b16 %v771
        %v2115 = vunpack.c.l.b16 %v772
        %v2116 = vunpack.c.h.b16 %v772
        %v2117 = vunpack.c.l.b16 %v773
        %v2118 = vunpack.c.h.b16 %v773
        %v2119 = vunpack.c.l.b16 %v774
        %v2120 = vunpack.c.h.b16 %v774
        %v2121 = vunpack.c.l.b16 %v775
        %v2122 = vunpack.c.h.b16 %v775
        %v2123 = vunpack.c.l.b16 %v776
        %v2124 = vunpack.c.h.b16 %v776
        %v2125 = vunpack.c.l.b16 %v777
        %v2126 = vunpack.c.h.b16 %v777
        %v2127 = vunpack.c.l.b16 %v778
        %v2128 = vunpack.c.h.b16 %v778
        %v2129 = vunpack.c.l.b16 %v779
        %v2130 = vunpack.c.h.b16 %v779
        %v2131 = vunpack.c.l.b16 %v780
        %v2132 = vunpack.c.h.b16 %v780
        %v2133 = vunpack.c.l.b16 %v781
        %v2134 = vunpack.c.h.b16 %v781
        %v2135 = vunpack.c.l.b16 %v782
        %v2136 = vunpack.c.h.b16 %v782
        %v2137 = vunpack.c.l.b16 %v783
        %v2138 = vunpack.c.h.b16 %v783
        %v2139 = vunpack.c.l.b16 %v784
        %v2140 = vunpack.c.h.b16 %v784
        %v2141 = vunpack.c.l.b16 %v785
        %v2142 = vunpack.c.h.b16 %v785
        %v2143 = vunpack.c.l.b16 %v786
        %v2144 = vunpack.c.h.b16 %v786
        %v2145 = vunpack.c.l.b16 %v787
        %v2146 = vunpack.c.h.b16 %v787
        %v2147 = vunpack.c.l.b16 %v788
        %v2148 = vunpack.c.h.b16 %v788
        %v2149 = vunpack.c.l.b16 %v789
        %v2150 = vunpack.c.h.b16 %v789
        %v2151 = vunpack.c.l.b16 %v790
        %v2152 = vunpack.c.h.b16 %v790
        %v2153 = vunpack.c.l.b16 %v791
        %v2154 = vunpack.c.h.b16 %v791
        %v2155 = vunpack.c.l.b16 %v792
        %v2156 = vunpack.c.h.b16 %v792
        %v2157 = vunpack.c.l.b16 %v793
        %v2158 = vunpack.c.h.b16 %v793
        %v2159 = vunpack.c.l.b16 %v794
        %v2160 = vunpack.c.h.b16 %v794
        %v2161 = vunpack.c.l.b16 %v795
        %v2162 = vunpack.c.h.b16 %v795
        %v2163 = vunpack.c.l.b16 %v796
        %v2164 = vunpack.c.h.b16 %v796
        %v2165 = vunpack.c.l.b16 %v797
        %v2166 = vunpack.c.h.b16 %v797
        %v2167 = vunpack.c.l.b16 %v798
        %v2168 = vunpack.c.h.b16 %v798
        %v2169 = vunpack.c.l.b16 %v799
        %v2170 = vunpack.c.h.b16 %v799
        %v2171 = vunpack.c.l.b16 %v800
        %v2172 = vunpack.c.h.b16 %v800
        %v2173 = vunpack.c.l.b16 %v801
        %v2174 = vunpack.c.h.b16 %v801
        %v2175 = vunpack.c.l.b16 %v802
        %v2176 = vunpack.c.h.b16 %v802
        %v2177 = vunpack.c.l.b16 %v803
        %v2178 = vunpack.c.h.b16 %v803
        %v2179 = vunpack.c.l.b16 %v804
        %v2180 = vunpack.c.h.b16 %v804
        %v2181 = vunpack.c.l.b16 %v805
        %v2182 = vunpack.c.h.b16 %v805
        %v2183 = vunpack.c.l.b16 %v806
        %v2184 = vunpack.c.h.b16 %v806
        %v2185 = vunpack.c.l.b16 %v807
        %v2186 = vunpack.c.h.b16 %v807
        %v2187 = vunpack.c.l.b16 %v808
        %v2188 = vunpack.c.h.b16 %v808
        %v2189 = vunpack.c.l.b16 %v809
        %v2190 = vunpack.c.h.b16 %v809
        %v2191 = vunpack.c.l.b16 %v810
        %v2192 = vunpack.c.h.b16 %v810
        %v2193 = vunpack.c.l.b16 %v811
        %v2194 = vunpack.c.h.b16 %v811
        %v2195 = vunpack.c.l.b16 %v812
        %v2196 = vunpack.c.h.b16 %v812
        %v2197 = vunpack.c.l.b16 %v813
        %v2198 = vunpack.c.h.b16 %v813
        %v2199 = vunpack.c.l.b16 %v814
        %v2200 = vunpack.c.h.b16 %v814
        %v2201 = vunpack.c.l.b16 %v815
        %v2202 = vunpack.c.h.b16 %v815
        %v2203 = vunpack.c.l.b16 %v816
        %v2204 = vunpack.c.h.b16 %v816
        %v2205 = vunpack.c.l.b16 %v817
        %v2206 = vunpack.c.h.b16 %v817
        %v2207 = vunpack.c.l.b16 %v818
        %v2208 = vunpack.c.h.b16 %v818
        %v2209 = vunpack.c.l.b16 %v819
        %v2210 = vunpack.c.h.b16 %v819
        %v2211 = vunpack.c.l.b16 %v820
        %v2212 = vunpack.c.h.b16 %v820
        %v2213 = vunpack.c.l.b16 %v821
        %v2214 = vunpack.c.h.b16 %v821
        %v2215 = vunpack.c.l.b16 %v822
        %v2216 = vunpack.c.h.b16 %v822
        %v2217 = vunpack.c.l.b16 %v823
        %v2218 = vunpack.c.h.b16 %v823
        %v2219 = vunpack.c.l.b16 %v824
        %v2220 = vunpack.c.h.b16 %v824
        %v2221 = vunpack.c.l.b16 %v825
        %v2222 = vunpack.c.h.b16 %v825
        %v2223 = vunpack.c.l.b16 %v826
        %v2224 = vunpack.c.h.b16 %v826
        %v2225 = vunpack.c.l.b16 %v827
        %v2226 = vunpack.c.h.b16 %v827
        %v2227 = vunpack.c.l.b16 %v828
        %v2228 = vunpack.c.h.b16 %v828
        %v2229 = vunpack.c.l.b16 %v829
        %v2230 = vunpack.c.h.b16 %v829
        %v2231 = vunpack.c.l.b16 %v830
        %v2232 = vunpack.c.h.b16 %v830
        %v2233 = vunpack.c.l.b16 %v831
        %v2234 = vunpack.c.h.b16 %v831
        %v2235 = vunpack.c.l.b16 %v832
        %v2236 = vunpack.c.h.b16 %v832
        %v2237 = vunpack.c.l.b16 %v833
        %v2238 = vunpack.c.h.b16 %v833
        %v2239 = vunpack.c.l.b16 %v834
        %v2240 = vunpack.c.h.b16 %v834
        %v2241 = vunpack.c.l.b16 %v835
        %v2242 = vunpack.c.h.b16 %v835
        %v2243 = vunpack.c.l.b16 %v836
        %v2244 = vunpack.c.h.b16 %v836
        %v2245 = vunpack.c.l.b16 %v837
        %v2246 = vunpack.c.h.b16 %v837
        %v2247 = vunpack.c.l.b16 %v838
        %v2248 = vunpack.c.h.b16 %v838
        %v2249 = vunpack.c.l.b16 %v839
        %v2250 = vunpack.c.h.b16 %v839
        %v2251 = vunpack.c.l.b16 %v840
        %v2252 = vunpack.c.h.b16 %v840
        %v2253 = vunpack.c.l.b16 %v841
        %v2254 = vunpack.c.h.b16 %v841
        %v2255 = vunpack.c.l.b16 %v842
        %v2256 = vunpack.c.h.b16 %v842
        %v2257 = vunpack.c.l.b16 %v843
        %v2258 = vunpack.c.h.b16 %v843
        %v2259 = vunpack.c.l.b16 %v844
        %v2260 = vunpack.c.h.b16 %v844
        %v2261 = vunpack.c.l.b16 %v845
        %v2262 = vunpack.c.h.b16 %v845
        %v2263 = vunpack.c.l.b16 %v846
        %v2264 = vunpack.c.h.b16 %v846
        %v2265 = vunpack.c.l.b16 %v847
        %v2266 = vunpack.c.h.b16 %v847
        %v2267 = vunpack.c.l.b16 %v848
        %v2268 = vunpack.c.h.b16 %v848
        %v2269 = vunpack.c.l.b16 %v849
        %v2270 = vunpack.c.h.b16 %v849
        %v2271 = vunpack.c.l.b16 %v850
        %v2272 = vunpack.c.h.b16 %v850
        %v2273 = vunpack.c.l.b16 %v851
        %v2274 = vunpack.c.h.b16 %v851
        %v2275 = vunpack.c.l.b16 %v852
        %v2276 = vunpack.c.h.b16 %v852
        %v2277 = vunpack.c.l.b16 %v853
        %v2278 = vunpack.c.h.b16 %v853
        %v2279 = vunpack.c.l.b16 %v854
        %v2280 = vunpack.c.h.b16 %v854
        %v2281 = vunpack.c.l.b16 %v855
        %v2282 = vunpack.c.h.b16 %v855
        %v2283 = vunpack.c.l.b16 %v856
        %v2284 = vunpack.c.h.b16 %v856
        %v2285 = vunpack.c.l.b16 %v857
        %v2286 = vunpack.c.h.b16 %v857
        %v2287 = vunpack.c.l.b16 %v858
        %v2288 = vunpack.c.h.b16 %v858
        %v2289 = vunpack.c.l.b16 %v859
        %v2290 = vunpack.c.h.b16 %v859
        %v2291 = vunpack.c.l.b16 %v860
        %v2292 = vunpack.c.h.b16 %v860
        %v2293 = vunpack.c.l.b16 %v861
        %v2294 = vunpack.c.h.b16 %v861
        %v2295 = vunpack.c.l.b16 %v862
        %v2296 = vunpack.c.h.b16 %v862
        %v2297 = vunpack.c.l.b16 %v863
        %v2298 = vunpack.c.h.b16 %v863
        %v2299 = vunpack.c.l.b16 %v864
        %v2300 = vunpack.c.h.b16 %v864
        %v2301 = vunpack.c.l.b16 %v865
        %v2302 = vunpack.c.h.b16 %v865
        %v2303 = vunpack.c.l.b16 %v866
        %v2304 = vunpack.c.h.b16 %v866
        %v2305 = vunpack.c.l.b16 %v867
        %v2306 = vunpack.c.h.b16 %v867
        %v2307 = vunpack.c.l.b16 %v868
        %v2308 = vunpack.c.h.b16 %v868
        %v2309 = vunpack.c.l.b16 %v869
        %v2310 = vunpack.c.h.b16 %v869
        %v2311 = vunpack.c.l.b16 %v870
        %v2312 = vunpack.c.h.b16 %v870
        %v2313 = vunpack.c.l.b16 %v871
        %v2314 = vunpack.c.h.b16 %v871
        %v2315 = vunpack.c.l.b16 %v872
        %v2316 = vunpack.c.h.b16 %v872
        %v2317 = vunpack.c.l.b16 %v873
        %v2318 = vunpack.c.h.b16 %v873
        %v2319 = vunpack.c.l.b16 %v874
        %v2320 = vunpack.c.h.b16 %v874
        %v2321 = vunpack.c.l.b16 %v875
        %v2322 = vunpack.c.h.b16 %v875
        %v2323 = vunpack.c.l.b16 %v876
        %v2324 = vunpack.c.h.b16 %v876
        %v2325 = vunpack.c.l.b16 %v877
        %v2326 = vunpack.c.h.b16 %v877
        %v2327 = vunpack.c.l.b16 %v878
        %v2328 = vunpack.c.h.b16 %v878
        %v2329 = vunpack.c.l.b16 %v879
        %v2330 = vunpack.c.h.b16 %v879
        %v2331 = vunpack.c.l.b16 %v880
        %v2332 = vunpack.c.h.b16 %v880
        %v2333 = vunpack.c.l.b16 %v881
        %v2334 = vunpack.c.h.b16 %v881
        %v2335 = vunpack.c.l.b16 %v882
        %v2336 = vunpack.c.h.b16 %v882
        %v2337 = vunpack.c.l.b16 %v883
        %v2338 = vunpack.c.h.b16 %v883
        %v2339 = vunpack.c.l.b16 %v884
        %v2340 = vunpack.c.h.b16 %v884
        %v2341 = vunpack.c.l.b16 %v885
        %v2342 = vunpack.c.h.b16 %v885
        %v2343 = vunpack.c.l.b16 %v886
        %v2344 = vunpack.c.h.b16 %v886
        %v2345 = vunpack.c.l.b16 %v887
        %v2346 = vunpack.c.h.b16 %v887
        %v2347 = vunpack.c.l.b16 %v888
        %v2348 = vunpack.c.h.b16 %v888
        %v2349 = vunpack.c.l.b16 %v889
        %v2350 = vunpack.c.h.b16 %v889
        %v2351 = vunpack.c.l.b16 %v890
        %v2352 = vunpack.c.h.b16 %v890
        %v2353 = vunpack.c.l.b16 %v891
        %v2354 = vunpack.c.h.b16 %v891
        %v2355 = vunpack.c.l.b16 %v892
        %v2356 = vunpack.c.h.b16 %v892
        %v2357 = vunpack.c.l.b16 %v893
        %v2358 = vunpack.c.h.b16 %v893
        %v2359 = vunpack.c.l.b16 %v894
        %v2360 = vunpack.c.h.b16 %v894
        %v2361 = vunpack.c.l.b16 %v895
        %v2362 = vunpack.c.h.b16 %v895
        %v2363 = vunpack.c.l.b16 %v896
        %v2364 = vunpack.c.h.b16 %v896
        %v2365 = vunpack.c.l.b16 %v897
        %v2366 = vunpack.c.h.b16 %v897
        %v2367 = vunpack.c.l.b16 %v898
        %v2368 = vunpack.c.h.b16 %v898
        %v2369 = vunpack.c.l.b16 %v899
        %v2370 = vunpack.c.h.b16 %v899
        %v2371 = vunpack.c.l.b16 %v900
        %v2372 = vunpack.c.h.b16 %v900
        %v2373 = vunpack.c.l.b16 %v901
        %v2374 = vunpack.c.h.b16 %v901
        %v2375 = vunpack.c.l.b16 %v902
        %v2376 = vunpack.c.h.b16 %v902
        %v2377 = vunpack.c.l.b16 %v903
        %v2378 = vunpack.c.h.b16 %v903
        %v2379 = vunpack.c.l.b16 %v904
        %v2380 = vunpack.c.h.b16 %v904
        %v2381 = vunpack.c.l.b16 %v905
        %v2382 = vunpack.c.h.b16 %v905
        %v2383 = vunpack.c.l.b16 %v906
        %v2384 = vunpack.c.h.b16 %v906
        %v2385 = vunpack.c.l.b16 %v907
        %v2386 = vunpack.c.h.b16 %v907
        %v2387 = vunpack.c.l.b16 %v908
        %v2388 = vunpack.c.h.b16 %v908
        %v2389 = vunpack.c.l.b16 %v909
        %v2390 = vunpack.c.h.b16 %v909
        %v2391 = vunpack.c.l.b16 %v910
        %v2392 = vunpack.c.h.b16 %v910
        %v2393 = vunpack.c.l.b16 %v911
        %v2394 = vunpack.c.h.b16 %v911
        %v2395 = vunpack.c.l.b16 %v912
        %v2396 = vunpack.c.h.b16 %v912
        %v2397 = vunpack.c.l.b16 %v913
        %v2398 = vunpack.c.h.b16 %v913
        %v2399 = vunpack.c.l.b16 %v914
        %v2400 = vunpack.c.h.b16 %v914
        %v2401 = vunpack.c.l.b16 %v915
        %v2402 = vunpack.c.h.b16 %v915
        %v2403 = vunpack.c.l.b16 %v916
        %v2404 = vunpack.c.h.b16 %v916
        %v2405 = vunpack.c.l.b16 %v917
        %v2406 = vunpack.c.h.b16 %v917
        %v2407 = vunpack.c.l.b16 %v918
        %v2408 = vunpack.c.h.b16 %v918
        %v2409 = vunpack.c.l.b16 %v919
        %v2410 = vunpack.c.h.b16 %v919
        %v2411 = vunpack.c.l.b16 %v920
        %v2412 = vunpack.c.h.b16 %v920
        %v2413 = vunpack.c.l.b16 %v921
        %v2414 = vunpack.c.h.b16 %v921
        %v2415 = vunpack.c.l.b16 %v922
        %v2416 = vunpack.c.h.b16 %v922
        %v2417 = vunpack.c.l.b16 %v923
        %v2418 = vunpack.c.h.b16 %v923
        %v2419 = vunpack.c.l.b16 %v924
        %v2420 = vunpack.c.h.b16 %v924
        %v2421 = vunpack.c.l.b16 %v925
        %v2422 = vunpack.c.h.b16 %v925
        %v2423 = vunpack.c.l.b16 %v926
        %v2424 = vunpack.c.h.b16 %v926
        %v2425 = vunpack.c.l.b16 %v927
        %v2426 = vunpack.c.h.b16 %v927
        %v2427 = vunpack.c.l.b16 %v928
        %v2428 = vunpack.c.h.b16 %v928
        %v2429 = vunpack.c.l.b16 %v929
        %v2430 = vunpack.c.h.b16 %v929
        %v2431 = vunpack.c.l.b16 %v930
        %v2432 = vunpack.c.h.b16 %v930
        %v2433 = vunpack.c.l.b16 %v931
        %v2434 = vunpack.c.h.b16 %v931
        %v2435 = vunpack.c.l.b16 %v932
        %v2436 = vunpack.c.h.b16 %v932
        %v2437 = vunpack.c.l.b16 %v933
        %v2438 = vunpack.c.h.b16 %v933
        %v2439 = vunpack.c.l.b16 %v934
        %v2440 = vunpack.c.h.b16 %v934
        %v2441 = vunpack.c.l.b16 %v935
        %v2442 = vunpack.c.h.b16 %v935
        %v2443 = vunpack.c.l.b16 %v936
        %v2444 = vunpack.c.h.b16 %v936
        %v2445 = vunpack.c.l.b16 %v937
        %v2446 = vunpack.c.h.b16 %v937
        %v2447 = vunpack.c.l.b16 %v938
        %v2448 = vunpack.c.h.b16 %v938
        %v2449 = vunpack.c.l.b16 %v939
        %v2450 = vunpack.c.h.b16 %v939
        %v2451 = vunpack.c.l.b16 %v940
        %v2452 = vunpack.c.h.b16 %v940
        %v2453 = vunpack.c.l.b16 %v941
        %v2454 = vunpack.c.h.b16 %v941
        %v2455 = vunpack.c.l.b16 %v942
        %v2456 = vunpack.c.h.b16 %v942
        %v2457 = vunpack.c.l.b16 %v943
        %v2458 = vunpack.c.h.b16 %v943
        %v2459 = vunpack.c.l.b16 %v944
        %v2460 = vunpack.c.h.b16 %v944
        %v2461 = vunpack.c.l.b16 %v945
        %v2462 = vunpack.c.h.b16 %v945
        %v2463 = vunpack.c.l.b16 %v946
        %v2464 = vunpack.c.h.b16 %v946
        %v2465 = vunpack.c.l.b16 %v947
        %v2466 = vunpack.c.h.b16 %v947
        %v2467 = vunpack.c.l.b16 %v948
        %v2468 = vunpack.c.h.b16 %v948
        %v2469 = vunpack.c.l.b16 %v949
        %v2470 = vunpack.c.h.b16 %v949
        %v2471 = vunpack.c.l.b16 %v950
        %v2472 = vunpack.c.h.b16 %v950
        %v2473 = vunpack.c.l.b16 %v951
        %v2474 = vunpack.c.h.b16 %v951
        %v2475 = vunpack.c.l.b16 %v952
        %v2476 = vunpack.c.h.b16 %v952
        %v2477 = vunpack.c.l.b16 %v953
        %v2478 = vunpack.c.h.b16 %v953
        %v2479 = vunpack.c.l.b16 %v954
        %v2480 = vunpack.c.h.b16 %v954
        %v2481 = vunpack.c.l.b16 %v955
        %v2482 = vunpack.c.h.b16 %v955
        %v2483 = vunpack.c.l.b16 %v956
        %v2484 = vunpack.c.h.b16 %v956
        %v2485 = vunpack.c.l.b16 %v957
        %v2486 = vunpack.c.h.b16 %v957
        %v2487 = vunpack.c.l.b16 %v958
        %v2488 = vunpack.c.h.b16 %v958
        %v2489 = vunpack.c.l.b16 %v959
        %v2490 = vunpack.c.h.b16 %v959
        %v2491 = vunpack.c.l.b16 %v960
        %v2492 = vunpack.c.h.b16 %v960
        %v2493 = vunpack.c.l.b16 %v961
        %v2494 = vunpack.c.h.b16 %v961
        %v2495 = vunpack.c.l.b16 %v962
        %v2496 = vunpack.c.h.b16 %v962
        %v2497 = vunpack.c.l.b16 %v963
        %v2498 = vunpack.c.h.b16 %v963
        %v2499 = vunpack.c.l.b16 %v964
        %v2500 = vunpack.c.h.b16 %v964
        %v2501 = vunpack.c.l.b16 %v965
        %v2502 = vunpack.c.h.b16 %v965
        %v2503 = vunpack.c.l.b16 %v966
        %v2504 = vunpack.c.h.b16 %v966
        %v2505 = vunpack.c.l.b16 %v967
        %v2506 = vunpack.c.h.b16 %v967
        %v2507 = vunpack.c.l.b16 %v968
        %v2508 = vunpack.c.h.b16 %v968
        %v2509 = vunpack.c.l.b16 %v969
        %v2510 = vunpack.c.h.b16 %v969
        %v2511 = vunpack.c.l.b16 %v970
        %v2512 = vunpack.c.h.b16 %v970
        %v2513 = vunpack.c.l.b16 %v971
        %v2514 = vunpack.c.h.b16 %v971
        %v2515 = vunpack.c.l.b16 %v972
        %v2516 = vunpack.c.h.b16 %v972
        %v2517 = vunpack.c.l.b16 %v973
        %v2518 = vunpack.c.h.b16 %v973
        %v2519 = vunpack.c.l.b16 %v974
        %v2520 = vunpack.c.h.b16 %v974
        %v2521 = vunpack.c.l.b16 %v975
        %v2522 = vunpack.c.h.b16 %v975
        %v2523 = vunpack.c.l.b16 %v976
        %v2524 = vunpack.c.h.b16 %v976
        %v2525 = vunpack.c.l.b16 %v977
        %v2526 = vunpack.c.h.b16 %v977
        %v2527 = vunpack.c.l.b16 %v978
        %v2528 = vunpack.c.h.b16 %v978
        %v2529 = vunpack.c.l.b16 %v979
        %v2530 = vunpack.c.h.b16 %v979
        %v2531 = vunpack.c.l.b16 %v980
        %v2532 = vunpack.c.h.b16 %v980
        %v2533 = vunpack.c.l.b16 %v981
        %v2534 = vunpack.c.h.b16 %v981
        %v2535 = vunpack.c.l.b16 %v982
        %v2536 = vunpack.c.h.b16 %v982
        %v2537 = vunpack.c.l.b16 %v983
        %v2538 = vunpack.c.h.b16 %v983
        %v2539 = vunpack.c.l.b16 %v984
        %v2540 = vunpack.c.h.b16 %v984
        %v2541 = vunpack.c.l.b16 %v985
        %v2542 = vunpack.c.h.b16 %v985
        %v2543 = vunpack.c.l.b16 %v986
        %v2544 = vunpack.c.h.b16 %v986
        %v2545 = vunpack.c.l.b16 %v987
        %v2546 = vunpack.c.h.b16 %v987
        %v2547 = vunpack.c.l.b16 %v988
        %v2548 = vunpack.c.h.b16 %v988
        %v2549 = vunpack.c.l.b16 %v989
        %v2550 = vunpack.c.h.b16 %v989
        %v2551 = vunpack.c.l.b16 %v990
        %v2552 = vunpack.c.h.b16 %v990
        %v2553 = vunpack.c.l.b16 %v991
        %v2554 = vunpack.c.h.b16 %v991
        %v2555 = vunpack.c.l.b16 %v992
        %v2556 = vunpack.c.h.b16 %v992
        %v2557 = vunpack.c.l.b16 %v993
        %v2558 = vunpack.c.h.b16 %v993
        %v2559 = vunpack.c.l.b16 %v994
        %v2560 = vunpack.c.h.b16 %v994
        %v2561 = vunpack.c.l.b16 %v995
        %v2562 = vunpack.c.h.b16 %v995
        %v2563 = vunpack.c.l.b16 %v996
        %v2564 = vunpack.c.h.b16 %v996
        %v2565 = vunpack.c.l.b16 %v997
        %v2566 = vunpack.c.h.b16 %v997
        %v2567 = vunpack.c.l.b16 %v998
        %v2568 = vunpack.c.h.b16 %v998
        %v2569 = vunpack.c.l.b16 %v999
        %v2570 = vunpack.c.h.b16 %v999
        %v2571 = vunpack.c.l.b16 %v1000
        %v2572 = vunpack.c.h.b16 %v1000
        %v2573 = vunpack.c.l.b16 %v1001
        %v2574 = vunpack.c.h.b16 %v1001
        %v2575 = vunpack.c.l.b16 %v1002
        %v2576 = vunpack.c.h.b16 %v1002
        %v2577 = vunpack.c.l.b16 %v1003
        %v2578 = vunpack.c.h.b16 %v1003
        %v2579 = vunpack.c.l.b16 %v1004
        %v2580 = vunpack.c.h.b16 %v1004
        %v2581 = vunpack.c.l.b16 %v1005
        %v2582 = vunpack.c.h.b16 %v1005
        %v2583 = vunpack.c.l.b16 %v1006
        %v2584 = vunpack.c.h.b16 %v1006
        %v2585 = vunpack.c.l.b16 %v1007
        %v2586 = vunpack.c.h.b16 %v1007
        %v2587 = vunpack.c.l.b16 %v1008
        %v2588 = vunpack.c.h.b16 %v1008
        %v2589 = vunpack.c.l.b16 %v1009
        %v2590 = vunpack.c.h.b16 %v1009
        %v2591 = vunpack.c.l.b16 %v1010
        %v2592 = vunpack.c.h.b16 %v1010
        %v2593 = vunpack.c.l.b16 %v1011
        %v2594 = vunpack.c.h.b16 %v1011
        %v2595 = vunpack.c.l.b16 %v1012
        %v2596 = vunpack.c.h.b16 %v1012
        %v2597 = vunpack.c.l.b16 %v1013
        %v2598 = vunpack.c.h.b16 %v1013
        %v2599 = vunpack.c.l.b16 %v1014
        %v2600 = vunpack.c.h.b16 %v1014
        %v2601 = vunpack.c.l.b16 %v1015
        %v2602 = vunpack.c.h.b16 %v1015
        %v2603 = vunpack.c.l.b16 %v1016
        %v2604 = vunpack.c.h.b16 %v1016
        %v2605 = vunpack.c.l.b16 %v1017
        %v2606 = vunpack.c.h.b16 %v1017
        %v2607 = vunpack.c.l.b16 %v1018
        %v2608 = vunpack.c.h.b16 %v1018
        %v2609 = vunpack.c.l.b16 %v1019
        %v2610 = vunpack.c.h.b16 %v1019
        %v2611 = vunpack.c.l.b16 %v1020
        %v2612 = vunpack.c.h.b16 %v1020
        %v2613 = vpack.c.b16 %v1593, %v1589
        %v2614 = vpack.c.b16 %v1594, %v1590
        %v2615 = vpack.c.b16 %v1595, %v1591
        %v2616 = vpack.c.b16 %v1596, %v1592
        %v2617 = vpack.c.b16 %v1601, %v1597
        %v2618 = vpack.c.b16 %v1602, %v1598
        %v2619 = vpack.c.b16 %v1603, %v1599
        %v2620 = vpack.c.b16 %v1604, %v1600
        %v2621 = vpack.c.b16 %v1609, %v1605
        %v2622 = vpack.c.b16 %v1610, %v1606
        %v2623 = vpack.c.b16 %v1611, %v1607
        %v2624 = vpack.c.b16 %v1612, %v1608
        %v2625 = vpack.c.b16 %v1617, %v1613
        %v2626 = vpack.c.b16 %v1618, %v1614
        %v2627 = vpack.c.b16 %v1619, %v1615
        %v2628 = vpack.c.b16 %v1620, %v1616
        %v2629 = vpack.c.b16 %v1625, %v1621
        %v2630 = vpack.c.b16 %v1626, %v1622
        %v2631 = vpack.c.b16 %v1627, %v1623
        %v2632 = vpack.c.b16 %v1628, %v1624
        %v2633 = vpack.c.b16 %v1633, %v1629
        %v2634 = vpack.c.b16 %v1634, %v1630
        %v2635 = vpack.c.b16 %v1635, %v1631
        %v2636 = vpack.c.b16 %v1636, %v1632
        %v2637 = vpack.c.b16 %v1641, %v1637
        %v2638 = vpack.c.b16 %v1642, %v1638
        %v2639 = vpack.c.b16 %v1643, %v1639
        %v2640 = vpack.c.b16 %v1644, %v1640
        %v2641 = vpack.c.b16 %v1649, %v1645
        %v2642 = vpack.c.b16 %v1650, %v1646
        %v2643 = vpack.c.b16 %v1651, %v1647
        %v2644 = vpack.c.b16 %v1652, %v1648
        %v2645 = vpack.c.b16 %v1657, %v1653
        %v2646 = vpack.c.b16 %v1658, %v1654
        %v2647 = vpack.c.b16 %v1659, %v1655
        %v2648 = vpack.c.b16 %v1660, %v1656
        %v2649 = vpack.c.b16 %v1665, %v1661
        %v2650 = vpack.c.b16 %v1666, %v1662
        %v2651 = vpack.c.b16 %v1667, %v1663
        %v2652 = vpack.c.b16 %v1668, %v1664
        %v2653 = vpack.c.b16 %v1673, %v1669
        %v2654 = vpack.c.b16 %v1674, %v1670
        %v2655 = vpack.c.b16 %v1675, %v1671
        %v2656 = vpack.c.b16 %v1676, %v1672
        %v2657 = vpack.c.b16 %v1681, %v1677
        %v2658 = vpack.c.b16 %v1682, %v1678
        %v2659 = vpack.c.b16 %v1683, %v1679
        %v2660 = vpack.c.b16 %v1684, %v1680
        %v2661 = vpack.c.b16 %v1689, %v1685
        %v2662 = vpack.c.b16 %v1690, %v1686
        %v2663 = vpack.c.b16 %v1691, %v1687
        %v2664 = vpack.c.b16 %v1692, %v1688
        %v2665 = vpack.c.b16 %v1697, %v1693
        %v2666 = vpack.c.b16 %v1698, %v1694
        %v2667 = vpack.c.b16 %v1699, %v1695
        %v2668 = vpack.c.b16 %v1700, %v1696
        %v2669 = vpack.c.b16 %v1705, %v1701
        %v2670 = vpack.c.b16 %v1706, %v1702
        %v2671 = vpack.c.b16 %v1707, %v1703
        %v2672 = vpack.c.b16 %v1708, %v1704
        %v2673 = vpack.c.b16 %v1713, %v1709
        %v2674 = vpack.c.b16 %v1714, %v1710
        %v2675 = vpack.c.b16 %v1715, %v1711
        %v2676 = vpack.c.b16 %v1716, %v1712
        %v2677 = vpack.c.b16 %v1721, %v1717
        %v2678 = vpack.c.b16 %v1722, %v1718
        %v2679 = vpack.c.b16 %v1723, %v1719
        %v2680 = vpack.c.b16 %v1724, %v1720
        %v2681 = vpack.c.b16 %v1729, %v1725
        %v2682 = vpack.c.b16 %v1730, %v1726
        %v2683 = vpack.c.b16 %v1731, %v1727
        %v2684 = vpack.c.b16 %v1732, %v1728
        %v2685 = vpack.c.b16 %v1737, %v1733
        %v2686 = vpack.c.b16 %v1738, %v1734
        %v2687 = vpack.c.b16 %v1739, %v1735
        %v2688 = vpack.c.b16 %v1740, %v1736
        %v2689 = vpack.c.b16 %v1745, %v1741
        %v2690 = vpack.c.b16 %v1746, %v1742
        %v2691 = vpack.c.b16 %v1747, %v1743
        %v2692 = vpack.c.b16 %v1748, %v1744
        %v2693 = vpack.c.b16 %v1753, %v1749
        %v2694 = vpack.c.b16 %v1754, %v1750
        %v2695 = vpack.c.b16 %v1755, %v1751
        %v2696 = vpack.c.b16 %v1756, %v1752
        %v2697 = vpack.c.b16 %v1761, %v1757
        %v2698 = vpack.c.b16 %v1762, %v1758
        %v2699 = vpack.c.b16 %v1763, %v1759
        %v2700 = vpack.c.b16 %v1764, %v1760
        %v2701 = vpack.c.b16 %v1769, %v1765
        %v2702 = vpack.c.b16 %v1770, %v1766
        %v2703 = vpack.c.b16 %v1771, %v1767
        %v2704 = vpack.c.b16 %v1772, %v1768
        %v2705 = vpack.c.b16 %v1777, %v1773
        %v2706 = vpack.c.b16 %v1778, %v1774
        %v2707 = vpack.c.b16 %v1779, %v1775
        %v2708 = vpack.c.b16 %v1780, %v1776
        %v2709 = vpack.c.b16 %v1785, %v1781
        %v2710 = vpack.c.b16 %v1786, %v1782
        %v2711 = vpack.c.b16 %v1787, %v1783
        %v2712 = vpack.c.b16 %v1788, %v1784
        %v2713 = vpack.c.b16 %v1793, %v1789
        %v2714 = vpack.c.b16 %v1794, %v1790
        %v2715 = vpack.c.b16 %v1795, %v1791
        %v2716 = vpack.c.b16 %v1796, %v1792
        %v2717 = vpack.c.b16 %v1801, %v1797
        %v2718 = vpack.c.b16 %v1802, %v1798
        %v2719 = vpack.c.b16 %v1803, %v1799
        %v2720 = vpack.c.b16 %v1804, %v1800
        %v2721 = vpack.c.b16 %v1809, %v1805
        %v2722 = vpack.c.b16 %v1810, %v1806
        %v2723 = vpack.c.b16 %v1811, %v1807
        %v2724 = vpack.c.b16 %v1812, %v1808
        %v2725 = vpack.c.b16 %v1817, %v1813
        %v2726 = vpack.c.b16 %v1818, %v1814
        %v2727 = vpack.c.b16 %v1819, %v1815
        %v2728 = vpack.c.b16 %v1820, %v1816
        %v2729 = vpack.c.b16 %v1825, %v1821
        %v2730 = vpack.c.b16 %v1826, %v1822
        %v2731 = vpack.c.b16 %v1827, %v1823
        %v2732 = vpack.c.b16 %v1828, %v1824
        %v2733 = vpack.c.b16 %v1833, %v1829
        %v2734 = vpack.c.b16 %v1834, %v1830
        %v2735 = vpack.c.b16 %v1835, %v1831
        %v2736 = vpack.c.b16 %v1836, %v1832
        %v2737 = vpack.c.b16 %v1841, %v1837
        %v2738 = vpack.c.b16 %v1842, %v1838
        %v2739 = vpack.c.b16 %v1843, %v1839
        %v2740 = vpack.c.b16 %v1844, %v1840
        %v2741 = vpack.c.b16 %v1849, %v1845
        %v2742 = vpack.c.b16 %v1850, %v1846
        %v2743 = vpack.c.b16 %v1851, %v1847
        %v2744 = vpack.c.b16 %v1852, %v1848
        %v2745 = vpack.c.b16 %v1857, %v1853
        %v2746 = vpack.c.b16 %v1858, %v1854
        %v2747 = vpack.c.b16 %v1859, %v1855
        %v2748 = vpack.c.b16 %v1860, %v1856
        %v2749 = vpack.c.b16 %v1865, %v1861
        %v2750 = vpack.c.b16 %v1866, %v1862
        %v2751 = vpack.c.b16 %v1867, %v1863
        %v2752 = vpack.c.b16 %v1868, %v1864
        %v2753 = vpack.c.b16 %v1873, %v1869
        %v2754 = vpack.c.b16 %v1874, %v1870
        %v2755 = vpack.c.b16 %v1875, %v1871
        %v2756 = vpack.c.b16 %v1876, %v1872
        %v2757 = vpack.c.b16 %v1881, %v1877
        %v2758 = vpack.c.b16 %v1882, %v1878
        %v2759 = vpack.c.b16 %v1883, %v1879
        %v2760 = vpack.c.b16 %v1884, %v1880
        %v2761 = vpack.c.b16 %v1889, %v1885
        %v2762 = vpack.c.b16 %v1890, %v1886
        %v2763 = vpack.c.b16 %v1891, %v1887
        %v2764 = vpack.c.b16 %v1892, %v1888
        %v2765 = vpack.c.b16 %v1897, %v1893
        %v2766 = vpack.c.b16 %v1898, %v1894
        %v2767 = vpack.c.b16 %v1899, %v1895
        %v2768 = vpack.c.b16 %v1900, %v1896
        %v2769 = vpack.c.b16 %v1905, %v1901
        %v2770 = vpack.c.b16 %v1906, %v1902
        %v2771 = vpack.c.b16 %v1907, %v1903
        %v2772 = vpack.c.b16 %v1908, %v1904
        %v2773 = vpack.c.b16 %v1913, %v1909
        %v2774 = vpack.c.b16 %v1914, %v1910
        %v2775 = vpack.c.b16 %v1915, %v1911
        %v2776 = vpack.c.b16 %v1916, %v1912
        %v2777 = vpack.c.b16 %v1921, %v1917
        %v2778 = vpack.c.b16 %v1922, %v1918
        %v2779 = vpack.c.b16 %v1923, %v1919
        %v2780 = vpack.c.b16 %v1924, %v1920
        %v2781 = vpack.c.b16 %v1929, %v1925
        %v2782 = vpack.c.b16 %v1930, %v1926
        %v2783 = vpack.c.b16 %v1931, %v1927
        %v2784 = vpack.c.b16 %v1932, %v1928
        %v2785 = vpack.c.b16 %v1937, %v1933
        %v2786 = vpack.c.b16 %v1938, %v1934
        %v2787 = vpack.c.b16 %v1939, %v1935
        %v2788 = vpack.c.b16 %v1940, %v1936
        %v2789 = vpack.c.b16 %v1945, %v1941
        %v2790 = vpack.c.b16 %v1946, %v1942
        %v2791 = vpack.c.b16 %v1947, %v1943
        %v2792 = vpack.c.b16 %v1948, %v1944
        %v2793 = vpack.c.b16 %v1953, %v1949
        %v2794 = vpack.c.b16 %v1954, %v1950
        %v2795 = vpack.c.b16 %v1955, %v1951
        %v2796 = vpack.c.b16 %v1956, %v1952
        %v2797 = vpack.c.b16 %v1961, %v1957
        %v2798 = vpack.c.b16 %v1962, %v1958
        %v2799 = vpack.c.b16 %v1963, %v1959
        %v2800 = vpack.c.b16 %v1964, %v1960
        %v2801 = vpack.c.b16 %v1969, %v1965
        %v2802 = vpack.c.b16 %v1970, %v1966
        %v2803 = vpack.c.b16 %v1971, %v1967
        %v2804 = vpack.c.b16 %v1972, %v1968
        %v2805 = vpack.c.b16 %v1977, %v1973
        %v2806 = vpack.c.b16 %v1978, %v1974
        %v2807 = vpack.c.b16 %v1979, %v1975
        %v2808 = vpack.c.b16 %v1980, %v1976
        %v2809 = vpack.c.b16 %v1985, %v1981
        %v2810 = vpack.c.b16 %v1986, %v1982
        %v2811 = vpack.c.b16 %v1987, %v1983
        %v2812 = vpack.c.b16 %v1988, %v1984
        %v2813 = vpack.c.b16 %v1993, %v1989
        %v2814 = vpack.c.b16 %v1994, %v1990
        %v2815 = vpack.c.b16 %v1995, %v1991
        %v2816 = vpack.c.b16 %v1996, %v1992
        %v2817 = vpack.c.b16 %v2001, %v1997
        %v2818 = vpack.c.b16 %v2002, %v1998
        %v2819 = vpack.c.b16 %v2003, %v1999
        %v2820 = vpack.c.b16 %v2004, %v2000
        %v2821 = vpack.c.b16 %v2009, %v2005
        %v2822 = vpack.c.b16 %v2010, %v2006
        %v2823 = vpack.c.b16 %v2011, %v2007
        %v2824 = vpack.c.b16 %v2012, %v2008
        %v2825 = vpack.c.b16 %v2017, %v2013
        %v2826 = vpack.c.b16 %v2018, %v2014
        %v2827 = vpack.c.b16 %v2019, %v2015
        %v2828 = vpack.c.b16 %v2020, %v2016
        %v2829 = vpack.c.b16 %v2025, %v2021
        %v2830 = vpack.c.b16 %v2026, %v2022
        %v2831 = vpack.c.b16 %v2027, %v2023
        %v2832 = vpack.c.b16 %v2028, %v2024
        %v2833 = vpack.c.b16 %v2033, %v2029
        %v2834 = vpack.c.b16 %v2034, %v2030
        %v2835 = vpack.c.b16 %v2035, %v2031
        %v2836 = vpack.c.b16 %v2036, %v2032
        %v2837 = vpack.c.b16 %v2041, %v2037
        %v2838 = vpack.c.b16 %v2042, %v2038
        %v2839 = vpack.c.b16 %v2043, %v2039
        %v2840 = vpack.c.b16 %v2044, %v2040
        %v2841 = vpack.c.b16 %v2049, %v2045
        %v2842 = vpack.c.b16 %v2050, %v2046
        %v2843 = vpack.c.b16 %v2051, %v2047
        %v2844 = vpack.c.b16 %v2052, %v2048
        %v2845 = vpack.c.b16 %v2057, %v2053
        %v2846 = vpack.c.b16 %v2058, %v2054
        %v2847 = vpack.c.b16 %v2059, %v2055
        %v2848 = vpack.c.b16 %v2060, %v2056
        %v2849 = vpack.c.b16 %v2065, %v2061
        %v2850 = vpack.c.b16 %v2066, %v2062
        %v2851 = vpack.c.b16 %v2067, %v2063
        %v2852 = vpack.c.b16 %v2068, %v2064
        %v2853 = vpack.c.b16 %v2073, %v2069
        %v2854 = vpack.c.b16 %v2074, %v2070
        %v2855 = vpack.c.b16 %v2075, %v2071
        %v2856 = vpack.c.b16 %v2076, %v2072
        %v2857 = vpack.c.b16 %v2081, %v2077
        %v2858 = vpack.c.b16 %v2082, %v2078
        %v2859 = vpack.c.b16 %v2083, %v2079
        %v2860 = vpack.c.b16 %v2084, %v2080
        %v2861 = vpack.c.b16 %v2089, %v2085
        %v2862 = vpack.c.b16 %v2090, %v2086
        %v2863 = vpack.c.b16 %v2091, %v2087
        %v2864 = vpack.c.b16 %v2092, %v2088
        %v2865 = vpack.c.b16 %v2097, %v2093
        %v2866 = vpack.c.b16 %v2098, %v2094
        %v2867 = vpack.c.b16 %v2099, %v2095
        %v2868 = vpack.c.b16 %v2100, %v2096
        %v2869 = vpack.c.b16 %v2105, %v2101
        %v2870 = vpack.c.b16 %v2106, %v2102
        %v2871 = vpack.c.b16 %v2107, %v2103
        %v2872 = vpack.c.b16 %v2108, %v2104
        %v2873 = vpack.c.b16 %v2113, %v2109
        %v2874 = vpack.c.b16 %v2114, %v2110
        %v2875 = vpack.c.b16 %v2115, %v2111
        %v2876 = vpack.c.b16 %v2116, %v2112
        %v2877 = vpack.c.b16 %v2121, %v2117
        %v2878 = vpack.c.b16 %v2122, %v2118
        %v2879 = vpack.c.b16 %v2123, %v2119
        %v2880 = vpack.c.b16 %v2124, %v2120
        %v2881 = vpack.c.b16 %v2129, %v2125
        %v2882 = vpack.c.b16 %v2130, %v2126
        %v2883 = vpack.c.b16 %v2131, %v2127
        %v2884 = vpack.c.b16 %v2132, %v2128
        %v2885 = vpack.c.b16 %v2137, %v2133
        %v2886 = vpack.c.b16 %v2138, %v2134
        %v2887 = vpack.c.b16 %v2139, %v2135
        %v2888 = vpack.c.b16 %v2140, %v2136
        %v2889 = vpack.c.b16 %v2145, %v2141
        %v2890 = vpack.c.b16 %v2146, %v2142
        %v2891 = vpack.c.b16 %v2147, %v2143
        %v2892 = vpack.c.b16 %v2148, %v2144
        %v2893 = vpack.c.b16 %v2153, %v2149
        %v2894 = vpack.c.b16 %v2154, %v2150
        %v2895 = vpack.c.b16 %v2155, %v2151
        %v2896 = vpack.c.b16 %v2156, %v2152
        %v2897 = vpack.c.b16 %v2161, %v2157
        %v2898 = vpack.c.b16 %v2162, %v2158
        %v2899 = vpack.c.b16 %v2163, %v2159
        %v2900 = vpack.c.b16 %v2164, %v2160
        %v2901 = vpack.c.b16 %v2169, %v2165
        %v2902 = vpack.c.b16 %v2170, %v2166
        %v2903 = vpack.c.b16 %v2171, %v2167
        %v2904 = vpack.c.b16 %v2172, %v2168
        %v2905 = vpack.c.b16 %v2177, %v2173
        %v2906 = vpack.c.b16 %v2178, %v2174
        %v2907 = vpack.c.b16 %v2179, %v2175
        %v2908 = vpack.c.b16 %v2180, %v2176
        %v2909 = vpack.c.b16 %v2185, %v2181
        %v2910 = vpack.c.b16 %v2186, %v2182
        %v2911 = vpack.c.b16 %v2187, %v2183
        %v2912 = vpack.c.b16 %v2188, %v2184
        %v2913 = vpack.c.b16 %v2193, %v2189
        %v2914 = vpack.c.b16 %v2194, %v2190
        %v2915 = vpack.c.b16 %v2195, %v2191
        %v2916 = vpack.c.b16 %v2196, %v2192
        %v2917 = vpack.c.b16 %v2201, %v2197
        %v2918 = vpack.c.b16 %v2202, %v2198
        %v2919 = vpack.c.b16 %v2203, %v2199
        %v2920 = vpack.c.b16 %v2204, %v2200
        %v2921 = vpack.c.b16 %v2209, %v2205
        %v2922 = vpack.c.b16 %v2210, %v2206
        %v2923 = vpack.c.b16 %v2211, %v2207
        %v2924 = vpack.c.b16 %v2212, %v2208
        %v2925 = vpack.c.b16 %v2217, %v2213
        %v2926 = vpack.c.b16 %v2218, %v2214
        %v2927 = vpack.c.b16 %v2219, %v2215
        %v2928 = vpack.c.b16 %v2220, %v2216
        %v2929 = vpack.c.b16 %v2225, %v2221
        %v2930 = vpack.c.b16 %v2226, %v2222
        %v2931 = vpack.c.b16 %v2227, %v2223
        %v2932 = vpack.c.b16 %v2228, %v2224
        %v2933 = vpack.c.b16 %v2233, %v2229
        %v2934 = vpack.c.b16 %v2234, %v2230
        %v2935 = vpack.c.b16 %v2235, %v2231
        %v2936 = vpack.c.b16 %v2236, %v2232
        %v2937 = vpack.c.b16 %v2241, %v2237
        %v2938 = vpack.c.b16 %v2242, %v2238
        %v2939 = vpack.c.b16 %v2243, %v2239
        %v2940 = vpack.c.b16 %v2244, %v2240
        %v2941 = vpack.c.b16 %v2249, %v2245
        %v2942 = vpack.c.b16 %v2250, %v2246
        %v2943 = vpack.c.b16 %v2251, %v2247
        %v2944 = vpack.c.b16 %v2252, %v2248
        %v2945 = vpack.c.b16 %v2257, %v2253
        %v2946 = vpack.c.b16 %v2258, %v2254
        %v2947 = vpack.c.b16 %v2259, %v2255
        %v2948 = vpack.c.b16 %v2260, %v2256
        %v2949 = vpack.c.b16 %v2265, %v2261
        %v2950 = vpack.c.b16 %v2266, %v2262
        %v2951 = vpack.c.b16 %v2267, %v2263
        %v2952 = vpack.c.b16 %v2268, %v2264
        %v2953 = vpack.c.b16 %v2273, %v2269
        %v2954 = vpack.c.b16 %v2274, %v2270
        %v2955 = vpack.c.b16 %v2275, %v2271
        %v2956 = vpack.c.b16 %v2276, %v2272
        %v2957 = vpack.c.b16 %v2281, %v2277
        %v2958 = vpack.c.b16 %v2282, %v2278
        %v2959 = vpack.c.b16 %v2283, %v2279
        %v2960 = vpack.c.b16 %v2284, %v2280
        %v2961 = vpack.c.b16 %v2289, %v2285
        %v2962 = vpack.c.b16 %v2290, %v2286
        %v2963 = vpack.c.b16 %v2291, %v2287
        %v2964 = vpack.c.b16 %v2292, %v2288
        %v2965 = vpack.c.b16 %v2297, %v2293
        %v2966 = vpack.c.b16 %v2298, %v2294
        %v2967 = vpack.c.b16 %v2299, %v2295
        %v2968 = vpack.c.b16 %v2300, %v2296
        %v2969 = vpack.c.b16 %v2305, %v2301
        %v2970 = vpack.c.b16 %v2306, %v2302
        %v2971 = vpack.c.b16 %v2307, %v2303
        %v2972 = vpack.c.b16 %v2308, %v2304
        %v2973 = vpack.c.b16 %v2313, %v2309
        %v2974 = vpack.c.b16 %v2314, %v2310
        %v2975 = vpack.c.b16 %v2315, %v2311
        %v2976 = vpack.c.b16 %v2316, %v2312
        %v2977 = vpack.c.b16 %v2321, %v2317
        %v2978 = vpack.c.b16 %v2322, %v2318
        %v2979 = vpack.c.b16 %v2323, %v2319
        %v2980 = vpack.c.b16 %v2324, %v2320
        %v2981 = vpack.c.b16 %v2329, %v2325
        %v2982 = vpack.c.b16 %v2330, %v2326
        %v2983 = vpack.c.b16 %v2331, %v2327
        %v2984 = vpack.c.b16 %v2332, %v2328
        %v2985 = vpack.c.b16 %v2337, %v2333
        %v2986 = vpack.c.b16 %v2338, %v2334
        %v2987 = vpack.c.b16 %v2339, %v2335
        %v2988 = vpack.c.b16 %v2340, %v2336
        %v2989 = vpack.c.b16 %v2345, %v2341
        %v2990 = vpack.c.b16 %v2346, %v2342
        %v2991 = vpack.c.b16 %v2347, %v2343
        %v2992 = vpack.c.b16 %v2348, %v2344
        %v2993 = vpack.c.b16 %v2353, %v2349
        %v2994 = vpack.c.b16 %v2354, %v2350
        %v2995 = vpack.c.b16 %v2355, %v2351
        %v2996 = vpack.c.b16 %v2356, %v2352
        %v2997 = vpack.c.b16 %v2361, %v2357
        %v2998 = vpack.c.b16 %v2362, %v2358
        %v2999 = vpack.c.b16 %v2363, %v2359
        %v3000 = vpack.c.b16 %v2364, %v2360
        %v3001 = vpack.c.b16 %v2369, %v2365
        %v3002 = vpack.c.b16 %v2370, %v2366
        %v3003 = vpack.c.b16 %v2371, %v2367
        %v3004 = vpack.c.b16 %v2372, %v2368
        %v3005 = vpack.c.b16 %v2377, %v2373
        %v3006 = vpack.c.b16 %v2378, %v2374
        %v3007 = vpack.c.b16 %v2379, %v2375
        %v3008 = vpack.c.b16 %v2380, %v2376
        %v3009 = vpack.c.b16 %v2385, %v2381
        %v3010 = vpack.c.b16 %v2386, %v2382
        %v3011 = vpack.c.b16 %v2387, %v2383
        %v3012 = vpack.c.b16 %v2388, %v2384
        %v3013 = vpack.c.b16 %v2393, %v2389
        %v3014 = vpack.c.b16 %v2394, %v2390
        %v3015 = vpack.c.b16 %v2395, %v2391
        %v3016 = vpack.c.b16 %v2396, %v2392
        %v3017 = vpack.c.b16 %v2401, %v2397
        %v3018 = vpack.c.b16 %v2402, %v2398
        %v3019 = vpack.c.b16 %v2403, %v2399
        %v3020 = vpack.c.b16 %v2404, %v2400
        %v3021 = vpack.c.b16 %v2409, %v2405
        %v3022 = vpack.c.b16 %v2410, %v2406
        %v3023 = vpack.c.b16 %v2411, %v2407
        %v3024 = vpack.c.b16 %v2412, %v2408
        %v3025 = vpack.c.b16 %v2417, %v2413
        %v3026 = vpack.c.b16 %v2418, %v2414
        %v3027 = vpack.c.b16 %v2419, %v2415
        %v3028 = vpack.c.b16 %v2420, %v2416
        %v3029 = vpack.c.b16 %v2425, %v2421
        %v3030 = vpack.c.b16 %v2426, %v2422
        %v3031 = vpack.c.b16 %v2427, %v2423
        %v3032 = vpack.c.b16 %v2428, %v2424
        %v3033 = vpack.c.b16 %v2433, %v2429
        %v3034 = vpack.c.b16 %v2434, %v2430
        %v3035 = vpack.c.b16 %v2435, %v2431
        %v3036 = vpack.c.b16 %v2436, %v2432
        %v3037 = vpack.c.b16 %v2441, %v2437
        %v3038 = vpack.c.b16 %v2442, %v2438
        %v3039 = vpack.c.b16 %v2443, %v2439
        %v3040 = vpack.c.b16 %v2444, %v2440
        %v3041 = vpack.c.b16 %v2449, %v2445
        %v3042 = vpack.c.b16 %v2450, %v2446
        %v3043 = vpack.c.b16 %v2451, %v2447
        %v3044 = vpack.c.b16 %v2452, %v2448
        %v3045 = vpack.c.b16 %v2457, %v2453
        %v3046 = vpack.c.b16 %v2458, %v2454
        %v3047 = vpack.c.b16 %v2459, %v2455
        %v3048 = vpack.c.b16 %v2460, %v2456
        %v3049 = vpack.c.b16 %v2465, %v2461
        %v3050 = vpack.c.b16 %v2466, %v2462
        %v3051 = vpack.c.b16 %v2467, %v2463
        %v3052 = vpack.c.b16 %v2468, %v2464
        %v3053 = vpack.c.b16 %v2473, %v2469
        %v3054 = vpack.c.b16 %v2474, %v2470
        %v3055 = vpack.c.b16 %v2475, %v2471
        %v3056 = vpack.c.b16 %v2476, %v2472
        %v3057 = vpack.c.b16 %v2481, %v2477
        %v3058 = vpack.c.b16 %v2482, %v2478
        %v3059 = vpack.c.b16 %v2483, %v2479
        %v3060 = vpack.c.b16 %v2484, %v2480
        %v3061 = vpack.c.b16 %v2489, %v2485
        %v3062 = vpack.c.b16 %v2490, %v2486
        %v3063 = vpack.c.b16 %v2491, %v2487
        %v3064 = vpack.c.b16 %v2492, %v2488
        %v3065 = vpack.c.b16 %v2497, %v2493
        %v3066 = vpack.c.b16 %v2498, %v2494
        %v3067 = vpack.c.b16 %v2499, %v2495
        %v3068 = vpack.c.b16 %v2500, %v2496
        %v3069 = vpack.c.b16 %v2505, %v2501
        %v3070 = vpack.c.b16 %v2506, %v2502
        %v3071 = vpack.c.b16 %v2507, %v2503
        %v3072 = vpack.c.b16 %v2508, %v2504
        %v3073 = vpack.c.b16 %v2513, %v2509
        %v3074 = vpack.c.b16 %v2514, %v2510
        %v3075 = vpack.c.b16 %v2515, %v2511
        %v3076 = vpack.c.b16 %v2516, %v2512
        %v3077 = vpack.c.b16 %v2521, %v2517
        %v3078 = vpack.c.b16 %v2522, %v2518
        %v3079 = vpack.c.b16 %v2523, %v2519
        %v3080 = vpack.c.b16 %v2524, %v2520
        %v3081 = vpack.c.b16 %v2529, %v2525
        %v3082 = vpack.c.b16 %v2530, %v2526
        %v3083 = vpack.c.b16 %v2531, %v2527
        %v3084 = vpack.c.b16 %v2532, %v2528
        %v3085 = vpack.c.b16 %v2537, %v2533
        %v3086 = vpack.c.b16 %v2538, %v2534
        %v3087 = vpack.c.b16 %v2539, %v2535
        %v3088 = vpack.c.b16 %v2540, %v2536
        %v3089 = vpack.c.b16 %v2545, %v2541
        %v3090 = vpack.c.b16 %v2546, %v2542
        %v3091 = vpack.c.b16 %v2547, %v2543
        %v3092 = vpack.c.b16 %v2548, %v2544
        %v3093 = vpack.c.b16 %v2553, %v2549
        %v3094 = vpack.c.b16 %v2554, %v2550
        %v3095 = vpack.c.b16 %v2555, %v2551
        %v3096 = vpack.c.b16 %v2556, %v2552
        %v3097 = vpack.c.b16 %v2561, %v2557
        %v3098 = vpack.c.b16 %v2562, %v2558
        %v3099 = vpack.c.b16 %v2563, %v2559
        %v3100 = vpack.c.b16 %v2564, %v2560
        %v3101 = vpack.c.b16 %v2569, %v2565
        %v3102 = vpack.c.b16 %v2570, %v2566
        %v3103 = vpack.c.b16 %v2571, %v2567
        %v3104 = vpack.c.b16 %v2572, %v2568
        %v3105 = vpack.c.b16 %v2577, %v2573
        %v3106 = vpack.c.b16 %v2578, %v2574
        %v3107 = vpack.c.b16 %v2579, %v2575
        %v3108 = vpack.c.b16 %v2580, %v2576
        %v3109 = vpack.c.b16 %v2585, %v2581
        %v3110 = vpack.c.b16 %v2586, %v2582
        %v3111 = vpack.c.b16 %v2587, %v2583
        %v3112 = vpack.c.b16 %v2588, %v2584
        %v3113 = vpack.c.b16 %v2593, %v2589
        %v3114 = vpack.c.b16 %v2594, %v2590
        %v3115 = vpack.c.b16 %v2595, %v2591
        %v3116 = vpack.c.b16 %v2596, %v2592
        %v3117 = vpack.c.b16 %v2601, %v2597
        %v3118 = vpack.c.b16 %v2602, %v2598
        %v3119 = vpack.c.b16 %v2603, %v2599
        %v3120 = vpack.c.b16 %v2604, %v2600
        %v3121 = vpack.c.b16 %v2609, %v2605
        %v3122 = vpack.c.b16 %v2610, %v2606
        %v3123 = vpack.c.b16 %v2611, %v2607
        %v3124 = vpack.c.b16 %v2612, %v2608
        %3637 = vmatprep.subr.bf16.mxu0 %v2642
        %3638 = vmatpush1.bf16.msra.mxu0 %v2641
        %3639 = vmatprep.subr.bf16.mxu0 %v2638
        %3640 = vmatpush1.bf16.msra.mxu0 %v2637
        %3641 = vmatprep.subr.bf16.mxu0 %v2634
        %3642 = vmatpush1.bf16.msra.mxu0 %v2633
        %3643 = vmatprep.subr.bf16.mxu0 %v2630
        %3644 = vmatpush1.bf16.msra.mxu0 %v2629
        %3645 = vmatprep.subr.bf16.mxu0 %v2626
        %3646 = vmatpush1.bf16.msra.mxu0 %v2625
        %3647 = vmatprep.subr.bf16.mxu0 %v2622
        %3648 = vmatpush1.bf16.msra.mxu0 %v2621
        %3649 = vmatprep.subr.bf16.mxu0 %v2618
        %3650 = vmatpush1.bf16.msra.mxu0 %v2617
        %3651 = vmatprep.subr.bf16.mxu0 %v2614
        %3652 = vmatpush1.bf16.msra.mxu0 %v2613
        %3653 = vmatprep.subr.bf16.mxu0 %v2674
        %3654 = vmatpush2.bf16.msra.mxu0 %v2673
        %3655 = vmatprep.subr.bf16.mxu0 %v2670
        %3656 = vmatpush2.bf16.msra.mxu0 %v2669
        %3657 = vmatprep.subr.bf16.mxu0 %v2666
        %3658 = vmatpush2.bf16.msra.mxu0 %v2665
        %3659 = vmatprep.subr.bf16.mxu0 %v2662
        %3660 = vmatpush2.bf16.msra.mxu0 %v2661
        %3661 = vmatprep.subr.bf16.mxu0 %v2658
        %3662 = vmatpush2.bf16.msra.mxu0 %v2657
        %3663 = vmatprep.subr.bf16.mxu0 %v2654
        %3664 = vmatpush2.bf16.msra.mxu0 %v2653
        %3665 = vmatprep.subr.bf16.mxu0 %v2650
        %3666 = vmatpush2.bf16.msra.mxu0 %v2649
        %3667 = vmatprep.subr.bf16.mxu0 %v2646
        %3668 = vmatpush2.bf16.msra.mxu0 %v2645
        %3669 = vmatprep.mubr.bf16.mxu0 %v1046
        %3670 = vmatmul.mubr.bf16.gmra.mxu0 %v1045
        %v3671 = vpop.f32.mrf.mxu0
        %v3672 = vadd.f32 0.0, %v3671
        %v3673 = vpop.f32.mrf.mxu0
        %v3674 = vadd.f32 0.0, %v3673
        %v3675 = vpop.f32.mrf.mxu0
        %v3676 = vpop.f32.mrf.mxu0
        %3677 = vdwg.mxu0
        %3678 = vmatprep.subr.bf16.mxu0 %v2706
        %3679 = vmatpush1.bf16.msra.mxu0 %v2705
        %3680 = vmatprep.subr.bf16.mxu0 %v2702
        %3681 = vmatpush1.bf16.msra.mxu0 %v2701
        %3682 = vmatprep.subr.bf16.mxu0 %v2698
        %3683 = vmatpush1.bf16.msra.mxu0 %v2697
        %3684 = vmatprep.subr.bf16.mxu0 %v2694
        %3685 = vmatpush1.bf16.msra.mxu0 %v2693
        %3686 = vmatprep.subr.bf16.mxu0 %v2690
        %3687 = vmatpush1.bf16.msra.mxu0 %v2689
        %3688 = vmatprep.subr.bf16.mxu0 %v2686
        %3689 = vmatpush1.bf16.msra.mxu0 %v2685
        %3690 = vmatprep.subr.bf16.mxu0 %v2682
        %3691 = vmatpush1.bf16.msra.mxu0 %v2681
        %3692 = vmatprep.subr.bf16.mxu0 %v2678
        %3693 = vmatpush1.bf16.msra.mxu0 %v2677
        %3694 = vmatprep.subr.bf16.mxu0 %v2738
        %3695 = vmatpush2.bf16.msra.mxu0 %v2737
        %3696 = vmatprep.subr.bf16.mxu0 %v2734
        %3697 = vmatpush2.bf16.msra.mxu0 %v2733
        %3698 = vmatprep.subr.bf16.mxu0 %v2730
        %3699 = vmatpush2.bf16.msra.mxu0 %v2729
        %3700 = vmatprep.subr.bf16.mxu0 %v2726
        %3701 = vmatpush2.bf16.msra.mxu0 %v2725
        %3702 = vmatprep.subr.bf16.mxu0 %v2722
        %3703 = vmatpush2.bf16.msra.mxu0 %v2721
        %3704 = vmatprep.subr.bf16.mxu0 %v2718
        %3705 = vmatpush2.bf16.msra.mxu0 %v2717
        %3706 = vmatprep.subr.bf16.mxu0 %v2714
        %3707 = vmatpush2.bf16.msra.mxu0 %v2713
        %3708 = vmatprep.subr.bf16.mxu0 %v2710
        %3709 = vmatpush2.bf16.msra.mxu0 %v2709
        %3710 = vmatprep.mubr.bf16.mxu0 %v1048
        %3711 = vmatmul.mubr.bf16.gmra.mxu0 %v1047
        %v3712 = vpop.f32.mrf.mxu0
        %v3713 = vadd.f32 %v3672, %v3712
        %v3714 = vpop.f32.mrf.mxu0
        %v3715 = vadd.f32 %v3674, %v3714
        %v3716 = vpop.f32.mrf.mxu0
        %v3717 = vpop.f32.mrf.mxu0
        %3718 = vdwg.mxu0
        %3719 = vmatprep.subr.bf16.mxu0 %v2770
        %3720 = vmatpush1.bf16.msra.mxu0 %v2769
        %3721 = vmatprep.subr.bf16.mxu0 %v2766
        %3722 = vmatpush1.bf16.msra.mxu0 %v2765
        %3723 = vmatprep.subr.bf16.mxu0 %v2762
        %3724 = vmatpush1.bf16.msra.mxu0 %v2761
        %3725 = vmatprep.subr.bf16.mxu0 %v2758
        %3726 = vmatpush1.bf16.msra.mxu0 %v2757
        %3727 = vmatprep.subr.bf16.mxu0 %v2754
        %3728 = vmatpush1.bf16.msra.mxu0 %v2753
        %3729 = vmatprep.subr.bf16.mxu0 %v2750
        %3730 = vmatpush1.bf16.msra.mxu0 %v2749
        %3731 = vmatprep.subr.bf16.mxu0 %v2746
        %3732 = vmatpush1.bf16.msra.mxu0 %v2745
        %3733 = vmatprep.subr.bf16.mxu0 %v2742
        %3734 = vmatpush1.bf16.msra.mxu0 %v2741
        %3735 = vmatprep.subr.bf16.mxu0 %v2802
        %3736 = vmatpush2.bf16.msra.mxu0 %v2801
        %3737 = vmatprep.subr.bf16.mxu0 %v2798
        %3738 = vmatpush2.bf16.msra.mxu0 %v2797
        %3739 = vmatprep.subr.bf16.mxu0 %v2794
        %3740 = vmatpush2.bf16.msra.mxu0 %v2793
        %3741 = vmatprep.subr.bf16.mxu0 %v2790
        %3742 = vmatpush2.bf16.msra.mxu0 %v2789
        %3743 = vmatprep.subr.bf16.mxu0 %v2786
        %3744 = vmatpush2.bf16.msra.mxu0 %v2785
        %3745 = vmatprep.subr.bf16.mxu0 %v2782
        %3746 = vmatpush2.bf16.msra.mxu0 %v2781
        %3747 = vmatprep.subr.bf16.mxu0 %v2778
        %3748 = vmatpush2.bf16.msra.mxu0 %v2777
        %3749 = vmatprep.subr.bf16.mxu0 %v2774
        %3750 = vmatpush2.bf16.msra.mxu0 %v2773
        %3751 = vmatprep.mubr.bf16.mxu0 %v1050
        %3752 = vmatmul.mubr.bf16.gmra.mxu0 %v1049
        %v3753 = vpop.f32.mrf.mxu0
        %v3754 = vadd.f32 %v3713, %v3753
        %v3755 = vpop.f32.mrf.mxu0
        %v3756 = vadd.f32 %v3715, %v3755
        %v3757 = vpop.f32.mrf.mxu0
        %v3758 = vpop.f32.mrf.mxu0
        %3759 = vdwg.mxu0
        %3760 = vmatprep.subr.bf16.mxu0 %v2834
        %3761 = vmatpush1.bf16.msra.mxu0 %v2833
        %3762 = vmatprep.subr.bf16.mxu0 %v2830
        %3763 = vmatpush1.bf16.msra.mxu0 %v2829
        %3764 = vmatprep.subr.bf16.mxu0 %v2826
        %3765 = vmatpush1.bf16.msra.mxu0 %v2825
        %3766 = vmatprep.subr.bf16.mxu0 %v2822
        %3767 = vmatpush1.bf16.msra.mxu0 %v2821
        %3768 = vmatprep.subr.bf16.mxu0 %v2818
        %3769 = vmatpush1.bf16.msra.mxu0 %v2817
        %3770 = vmatprep.subr.bf16.mxu0 %v2814
        %3771 = vmatpush1.bf16.msra.mxu0 %v2813
        %3772 = vmatprep.subr.bf16.mxu0 %v2810
        %3773 = vmatpush1.bf16.msra.mxu0 %v2809
        %3774 = vmatprep.subr.bf16.mxu0 %v2806
        %3775 = vmatpush1.bf16.msra.mxu0 %v2805
        %3776 = vmatprep.subr.bf16.mxu0 %v2866
        %3777 = vmatpush2.bf16.msra.mxu0 %v2865
        %3778 = vmatprep.subr.bf16.mxu0 %v2862
        %3779 = vmatpush2.bf16.msra.mxu0 %v2861
        %3780 = vmatprep.subr.bf16.mxu0 %v2858
        %3781 = vmatpush2.bf16.msra.mxu0 %v2857
        %3782 = vmatprep.subr.bf16.mxu0 %v2854
        %3783 = vmatpush2.bf16.msra.mxu0 %v2853
        %3784 = vmatprep.subr.bf16.mxu0 %v2850
        %3785 = vmatpush2.bf16.msra.mxu0 %v2849
        %3786 = vmatprep.subr.bf16.mxu0 %v2846
        %3787 = vmatpush2.bf16.msra.mxu0 %v2845
        %3788 = vmatprep.subr.bf16.mxu0 %v2842
        %3789 = vmatpush2.bf16.msra.mxu0 %v2841
        %3790 = vmatprep.subr.bf16.mxu0 %v2838
        %3791 = vmatpush2.bf16.msra.mxu0 %v2837
        %3792 = vmatprep.mubr.bf16.mxu0 %v1052
        %3793 = vmatmul.mubr.bf16.gmra.mxu0 %v1051
        %v3794 = vpop.f32.mrf.mxu0
        %v3795 = vadd.f32 %v3754, %v3794
        %v3796 = vpop.f32.mrf.mxu0
        %v3797 = vadd.f32 %v3756, %v3796
        %v3798 = vpop.f32.mrf.mxu0
        %v3799 = vpop.f32.mrf.mxu0
        %3800 = vdwg.mxu0
        %3801 = vmatprep.subr.bf16.mxu0 %v2898
        %3802 = vmatpush1.bf16.msra.mxu0 %v2897
        %3803 = vmatprep.subr.bf16.mxu0 %v2894
        %3804 = vmatpush1.bf16.msra.mxu0 %v2893
        %3805 = vmatprep.subr.bf16.mxu0 %v2890
        %3806 = vmatpush1.bf16.msra.mxu0 %v2889
        %3807 = vmatprep.subr.bf16.mxu0 %v2886
        %3808 = vmatpush1.bf16.msra.mxu0 %v2885
        %3809 = vmatprep.subr.bf16.mxu0 %v2882
        %3810 = vmatpush1.bf16.msra.mxu0 %v2881
        %3811 = vmatprep.subr.bf16.mxu0 %v2878
        %3812 = vmatpush1.bf16.msra.mxu0 %v2877
        %3813 = vmatprep.subr.bf16.mxu0 %v2874
        %3814 = vmatpush1.bf16.msra.mxu0 %v2873
        %3815 = vmatprep.subr.bf16.mxu0 %v2870
        %3816 = vmatpush1.bf16.msra.mxu0 %v2869
        %3817 = vmatprep.subr.bf16.mxu0 %v2930
        %3818 = vmatpush2.bf16.msra.mxu0 %v2929
        %3819 = vmatprep.subr.bf16.mxu0 %v2926
        %3820 = vmatpush2.bf16.msra.mxu0 %v2925
        %3821 = vmatprep.subr.bf16.mxu0 %v2922
        %3822 = vmatpush2.bf16.msra.mxu0 %v2921
        %3823 = vmatprep.subr.bf16.mxu0 %v2918
        %3824 = vmatpush2.bf16.msra.mxu0 %v2917
        %3825 = vmatprep.subr.bf16.mxu0 %v2914
        %3826 = vmatpush2.bf16.msra.mxu0 %v2913
        %3827 = vmatprep.subr.bf16.mxu0 %v2910
        %3828 = vmatpush2.bf16.msra.mxu0 %v2909
        %3829 = vmatprep.subr.bf16.mxu0 %v2906
        %3830 = vmatpush2.bf16.msra.mxu0 %v2905
        %3831 = vmatprep.subr.bf16.mxu0 %v2902
        %3832 = vmatpush2.bf16.msra.mxu0 %v2901
        %3833 = vmatprep.mubr.bf16.mxu0 %v1054
        %3834 = vmatmul.mubr.bf16.gmra.mxu0 %v1053
        %v3835 = vpop.f32.mrf.mxu0
        %v3836 = vadd.f32 %v3795, %v3835
        %v3837 = vpop.f32.mrf.mxu0
        %v3838 = vadd.f32 %v3797, %v3837
        %v3839 = vpop.f32.mrf.mxu0
        %v3840 = vpop.f32.mrf.mxu0
        %3841 = vdwg.mxu0
        %3842 = vmatprep.subr.bf16.mxu0 %v2962
        %3843 = vmatpush1.bf16.msra.mxu0 %v2961
        %3844 = vmatprep.subr.bf16.mxu0 %v2958
        %3845 = vmatpush1.bf16.msra.mxu0 %v2957
        %3846 = vmatprep.subr.bf16.mxu0 %v2954
        %3847 = vmatpush1.bf16.msra.mxu0 %v2953
        %3848 = vmatprep.subr.bf16.mxu0 %v2950
        %3849 = vmatpush1.bf16.msra.mxu0 %v2949
        %3850 = vmatprep.subr.bf16.mxu0 %v2946
        %3851 = vmatpush1.bf16.msra.mxu0 %v2945
        %3852 = vmatprep.subr.bf16.mxu0 %v2942
        %3853 = vmatpush1.bf16.msra.mxu0 %v2941
        %3854 = vmatprep.subr.bf16.mxu0 %v2938
        %3855 = vmatpush1.bf16.msra.mxu0 %v2937
        %3856 = vmatprep.subr.bf16.mxu0 %v2934
        %3857 = vmatpush1.bf16.msra.mxu0 %v2933
        %3858 = vmatprep.subr.bf16.mxu0 %v2994
        %3859 = vmatpush2.bf16.msra.mxu0 %v2993
        %3860 = vmatprep.subr.bf16.mxu0 %v2990
        %3861 = vmatpush2.bf16.msra.mxu0 %v2989
        %3862 = vmatprep.subr.bf16.mxu0 %v2986
        %3863 = vmatpush2.bf16.msra.mxu0 %v2985
        %3864 = vmatprep.subr.bf16.mxu0 %v2982
        %3865 = vmatpush2.bf16.msra.mxu0 %v2981
        %3866 = vmatprep.subr.bf16.mxu0 %v2978
        %3867 = vmatpush2.bf16.msra.mxu0 %v2977
        %3868 = vmatprep.subr.bf16.mxu0 %v2974
        %3869 = vmatpush2.bf16.msra.mxu0 %v2973
        %3870 = vmatprep.subr.bf16.mxu0 %v2970
        %3871 = vmatpush2.bf16.msra.mxu0 %v2969
        %3872 = vmatprep.subr.bf16.mxu0 %v2966
        %3873 = vmatpush2.bf16.msra.mxu0 %v2965
        %3874 = vmatprep.mubr.bf16.mxu0 %v1056
        %3875 = vmatmul.mubr.bf16.gmra.mxu0 %v1055
        %v3876 = vpop.f32.mrf.mxu0
        %v3877 = vadd.f32 %v3836, %v3876
        %v3878 = vpop.f32.mrf.mxu0
        %v3879 = vadd.f32 %v3838, %v3878
        %v3880 = vpop.f32.mrf.mxu0
        %v3881 = vpop.f32.mrf.mxu0
        %3882 = vdwg.mxu0
        %3883 = vmatprep.subr.bf16.mxu0 %v3026
        %3884 = vmatpush1.bf16.msra.mxu0 %v3025
        %3885 = vmatprep.subr.bf16.mxu0 %v3022
        %3886 = vmatpush1.bf16.msra.mxu0 %v3021
        %3887 = vmatprep.subr.bf16.mxu0 %v3018
        %3888 = vmatpush1.bf16.msra.mxu0 %v3017
        %3889 = vmatprep.subr.bf16.mxu0 %v3014
        %3890 = vmatpush1.bf16.msra.mxu0 %v3013
        %3891 = vmatprep.subr.bf16.mxu0 %v3010
        %3892 = vmatpush1.bf16.msra.mxu0 %v3009
        %3893 = vmatprep.subr.bf16.mxu0 %v3006
        %3894 = vmatpush1.bf16.msra.mxu0 %v3005
        %3895 = vmatprep.subr.bf16.mxu0 %v3002
        %3896 = vmatpush1.bf16.msra.mxu0 %v3001
        %3897 = vmatprep.subr.bf16.mxu0 %v2998
        %3898 = vmatpush1.bf16.msra.mxu0 %v2997
        %3899 = vmatprep.subr.bf16.mxu0 %v3058
        %3900 = vmatpush2.bf16.msra.mxu0 %v3057
        %3901 = vmatprep.subr.bf16.mxu0 %v3054
        %3902 = vmatpush2.bf16.msra.mxu0 %v3053
        %3903 = vmatprep.subr.bf16.mxu0 %v3050
        %3904 = vmatpush2.bf16.msra.mxu0 %v3049
        %3905 = vmatprep.subr.bf16.mxu0 %v3046
        %3906 = vmatpush2.bf16.msra.mxu0 %v3045
        %3907 = vmatprep.subr.bf16.mxu0 %v3042
        %3908 = vmatpush2.bf16.msra.mxu0 %v3041
        %3909 = vmatprep.subr.bf16.mxu0 %v3038
        %3910 = vmatpush2.bf16.msra.mxu0 %v3037
        %3911 = vmatprep.subr.bf16.mxu0 %v3034
        %3912 = vmatpush2.bf16.msra.mxu0 %v3033
        %3913 = vmatprep.subr.bf16.mxu0 %v3030
        %3914 = vmatpush2.bf16.msra.mxu0 %v3029
        %3915 = vmatprep.mubr.bf16.mxu0 %v1058
        %3916 = vmatmul.mubr.bf16.gmra.mxu0 %v1057
        %v3917 = vpop.f32.mrf.mxu0
        %v3918 = vadd.f32 %v3877, %v3917
        %v3919 = vpop.f32.mrf.mxu0
        %v3920 = vadd.f32 %v3879, %v3919
        %v3921 = vpop.f32.mrf.mxu0
        %v3922 = vpop.f32.mrf.mxu0
        %3923 = vdwg.mxu0
        %3924 = vmatprep.subr.bf16.mxu0 %v3090
        %3925 = vmatpush1.bf16.msra.mxu0 %v3089
        %3926 = vmatprep.subr.bf16.mxu0 %v3086
        %3927 = vmatpush1.bf16.msra.mxu0 %v3085
        %3928 = vmatprep.subr.bf16.mxu0 %v3082
        %3929 = vmatpush1.bf16.msra.mxu0 %v3081
        %3930 = vmatprep.subr.bf16.mxu0 %v3078
        %3931 = vmatpush1.bf16.msra.mxu0 %v3077
        %3932 = vmatprep.subr.bf16.mxu0 %v3074
        %3933 = vmatpush1.bf16.msra.mxu0 %v3073
        %3934 = vmatprep.subr.bf16.mxu0 %v3070
        %3935 = vmatpush1.bf16.msra.mxu0 %v3069
        %3936 = vmatprep.subr.bf16.mxu0 %v3066
        %3937 = vmatpush1.bf16.msra.mxu0 %v3065
        %3938 = vmatprep.subr.bf16.mxu0 %v3062
        %3939 = vmatpush1.bf16.msra.mxu0 %v3061
        %3940 = vmatprep.subr.bf16.mxu0 %v3122
        %3941 = vmatpush2.bf16.msra.mxu0 %v3121
        %3942 = vmatprep.subr.bf16.mxu0 %v3118
        %3943 = vmatpush2.bf16.msra.mxu0 %v3117
        %3944 = vmatprep.subr.bf16.mxu0 %v3114
        %3945 = vmatpush2.bf16.msra.mxu0 %v3113
        %3946 = vmatprep.subr.bf16.mxu0 %v3110
        %3947 = vmatpush2.bf16.msra.mxu0 %v3109
        %3948 = vmatprep.subr.bf16.mxu0 %v3106
        %3949 = vmatpush2.bf16.msra.mxu0 %v3105
        %3950 = vmatprep.subr.bf16.mxu0 %v3102
        %3951 = vmatpush2.bf16.msra.mxu0 %v3101
        %3952 = vmatprep.subr.bf16.mxu0 %v3098
        %3953 = vmatpush2.bf16.msra.mxu0 %v3097
        %3954 = vmatprep.subr.bf16.mxu0 %v3094
        %3955 = vmatpush2.bf16.msra.mxu0 %v3093
        %3956 = vmatprep.mubr.bf16.mxu0 %v1060
        %3957 = vmatmul.mubr.bf16.gmra.mxu0 %v1059
        %v3958 = vpop.f32.mrf.mxu0
        %v3959 = vadd.f32 %v3918, %v3958
        %v3960 = vpop.f32.mrf.mxu0
        %v3961 = vadd.f32 %v3920, %v3960
        %v3962 = vpop.f32.mrf.mxu0
        %v3963 = vpop.f32.mrf.mxu0
        %3964 = vdwg.mxu0
        %3965 = vmatprep.subr.bf16.mxu0 %v2644
        %3966 = vmatpush1.bf16.msra.mxu0 %v2643
        %3967 = vmatprep.subr.bf16.mxu0 %v2640
        %3968 = vmatpush1.bf16.msra.mxu0 %v2639
        %3969 = vmatprep.subr.bf16.mxu0 %v2636
        %3970 = vmatpush1.bf16.msra.mxu0 %v2635
        %3971 = vmatprep.subr.bf16.mxu0 %v2632
        %3972 = vmatpush1.bf16.msra.mxu0 %v2631
        %3973 = vmatprep.subr.bf16.mxu0 %v2628
        %3974 = vmatpush1.bf16.msra.mxu0 %v2627
        %3975 = vmatprep.subr.bf16.mxu0 %v2624
        %3976 = vmatpush1.bf16.msra.mxu0 %v2623
        %3977 = vmatprep.subr.bf16.mxu0 %v2620
        %3978 = vmatpush1.bf16.msra.mxu0 %v2619
        %3979 = vmatprep.subr.bf16.mxu0 %v2616
        %3980 = vmatpush1.bf16.msra.mxu0 %v2615
        %3981 = vmatprep.subr.bf16.mxu0 %v2676
        %3982 = vmatpush2.bf16.msra.mxu0 %v2675
        %3983 = vmatprep.subr.bf16.mxu0 %v2672
        %3984 = vmatpush2.bf16.msra.mxu0 %v2671
        %3985 = vmatprep.subr.bf16.mxu0 %v2668
        %3986 = vmatpush2.bf16.msra.mxu0 %v2667
        %3987 = vmatprep.subr.bf16.mxu0 %v2664
        %3988 = vmatpush2.bf16.msra.mxu0 %v2663
        %3989 = vmatprep.subr.bf16.mxu0 %v2660
        %3990 = vmatpush2.bf16.msra.mxu0 %v2659
        %3991 = vmatprep.subr.bf16.mxu0 %v2656
        %3992 = vmatpush2.bf16.msra.mxu0 %v2655
        %3993 = vmatprep.subr.bf16.mxu0 %v2652
        %3994 = vmatpush2.bf16.msra.mxu0 %v2651
        %3995 = vmatprep.subr.bf16.mxu0 %v2648
        %3996 = vmatpush2.bf16.msra.mxu0 %v2647
        %3997 = vmatprep.mubr.bf16.mxu0 %v1046
        %3998 = vmatmul.mubr.bf16.gmra.mxu0 %v1045
        %v3999 = vpop.f32.mrf.mxu0
        %v4000 = vadd.f32 0.0, %v3999
        %v4001 = vpop.f32.mrf.mxu0
        %v4002 = vadd.f32 0.0, %v4001
        %v4003 = vpop.f32.mrf.mxu0
        %v4004 = vpop.f32.mrf.mxu0
        %4005 = vdwg.mxu0
        %4006 = vmatprep.subr.bf16.mxu0 %v2708
        %4007 = vmatpush1.bf16.msra.mxu0 %v2707
        %4008 = vmatprep.subr.bf16.mxu0 %v2704
        %4009 = vmatpush1.bf16.msra.mxu0 %v2703
        %4010 = vmatprep.subr.bf16.mxu0 %v2700
        %4011 = vmatpush1.bf16.msra.mxu0 %v2699
        %4012 = vmatprep.subr.bf16.mxu0 %v2696
        %4013 = vmatpush1.bf16.msra.mxu0 %v2695
        %4014 = vmatprep.subr.bf16.mxu0 %v2692
        %4015 = vmatpush1.bf16.msra.mxu0 %v2691
        %4016 = vmatprep.subr.bf16.mxu0 %v2688
        %4017 = vmatpush1.bf16.msra.mxu0 %v2687
        %4018 = vmatprep.subr.bf16.mxu0 %v2684
        %4019 = vmatpush1.bf16.msra.mxu0 %v2683
        %4020 = vmatprep.subr.bf16.mxu0 %v2680
        %4021 = vmatpush1.bf16.msra.mxu0 %v2679
        %4022 = vmatprep.subr.bf16.mxu0 %v2740
        %4023 = vmatpush2.bf16.msra.mxu0 %v2739
        %4024 = vmatprep.subr.bf16.mxu0 %v2736
        %4025 = vmatpush2.bf16.msra.mxu0 %v2735
        %4026 = vmatprep.subr.bf16.mxu0 %v2732
        %4027 = vmatpush2.bf16.msra.mxu0 %v2731
        %4028 = vmatprep.subr.bf16.mxu0 %v2728
        %4029 = vmatpush2.bf16.msra.mxu0 %v2727
        %4030 = vmatprep.subr.bf16.mxu0 %v2724
        %4031 = vmatpush2.bf16.msra.mxu0 %v2723
        %4032 = vmatprep.subr.bf16.mxu0 %v2720
        %4033 = vmatpush2.bf16.msra.mxu0 %v2719
        %4034 = vmatprep.subr.bf16.mxu0 %v2716
        %4035 = vmatpush2.bf16.msra.mxu0 %v2715
        %4036 = vmatprep.subr.bf16.mxu0 %v2712
        %4037 = vmatpush2.bf16.msra.mxu0 %v2711
        %4038 = vmatprep.mubr.bf16.mxu0 %v1048
        %4039 = vmatmul.mubr.bf16.gmra.mxu0 %v1047
        %v4040 = vpop.f32.mrf.mxu0
        %v4041 = vadd.f32 %v4000, %v4040
        %v4042 = vpop.f32.mrf.mxu0
        %v4043 = vadd.f32 %v4002, %v4042
        %v4044 = vpop.f32.mrf.mxu0
        %v4045 = vpop.f32.mrf.mxu0
        %4046 = vdwg.mxu0
        %4047 = vmatprep.subr.bf16.mxu0 %v2772
        %4048 = vmatpush1.bf16.msra.mxu0 %v2771
        %4049 = vmatprep.subr.bf16.mxu0 %v2768
        %4050 = vmatpush1.bf16.msra.mxu0 %v2767
        %4051 = vmatprep.subr.bf16.mxu0 %v2764
        %4052 = vmatpush1.bf16.msra.mxu0 %v2763
        %4053 = vmatprep.subr.bf16.mxu0 %v2760
        %4054 = vmatpush1.bf16.msra.mxu0 %v2759
        %4055 = vmatprep.subr.bf16.mxu0 %v2756
        %4056 = vmatpush1.bf16.msra.mxu0 %v2755
        %4057 = vmatprep.subr.bf16.mxu0 %v2752
        %4058 = vmatpush1.bf16.msra.mxu0 %v2751
        %4059 = vmatprep.subr.bf16.mxu0 %v2748
        %4060 = vmatpush1.bf16.msra.mxu0 %v2747
        %4061 = vmatprep.subr.bf16.mxu0 %v2744
        %4062 = vmatpush1.bf16.msra.mxu0 %v2743
        %4063 = vmatprep.subr.bf16.mxu0 %v2804
        %4064 = vmatpush2.bf16.msra.mxu0 %v2803
        %4065 = vmatprep.subr.bf16.mxu0 %v2800
        %4066 = vmatpush2.bf16.msra.mxu0 %v2799
        %4067 = vmatprep.subr.bf16.mxu0 %v2796
        %4068 = vmatpush2.bf16.msra.mxu0 %v2795
        %4069 = vmatprep.subr.bf16.mxu0 %v2792
        %4070 = vmatpush2.bf16.msra.mxu0 %v2791
        %4071 = vmatprep.subr.bf16.mxu0 %v2788
        %4072 = vmatpush2.bf16.msra.mxu0 %v2787
        %4073 = vmatprep.subr.bf16.mxu0 %v2784
        %4074 = vmatpush2.bf16.msra.mxu0 %v2783
        %4075 = vmatprep.subr.bf16.mxu0 %v2780
        %4076 = vmatpush2.bf16.msra.mxu0 %v2779
        %4077 = vmatprep.subr.bf16.mxu0 %v2776
        %4078 = vmatpush2.bf16.msra.mxu0 %v2775
        %4079 = vmatprep.mubr.bf16.mxu0 %v1050
        %4080 = vmatmul.mubr.bf16.gmra.mxu0 %v1049
        %v4081 = vpop.f32.mrf.mxu0
        %v4082 = vadd.f32 %v4041, %v4081
        %v4083 = vpop.f32.mrf.mxu0
        %v4084 = vadd.f32 %v4043, %v4083
        %v4085 = vpop.f32.mrf.mxu0
        %v4086 = vpop.f32.mrf.mxu0
        %4087 = vdwg.mxu0
        %4088 = vmatprep.subr.bf16.mxu0 %v2836
        %4089 = vmatpush1.bf16.msra.mxu0 %v2835
        %4090 = vmatprep.subr.bf16.mxu0 %v2832
        %4091 = vmatpush1.bf16.msra.mxu0 %v2831
        %4092 = vmatprep.subr.bf16.mxu0 %v2828
        %4093 = vmatpush1.bf16.msra.mxu0 %v2827
        %4094 = vmatprep.subr.bf16.mxu0 %v2824
        %4095 = vmatpush1.bf16.msra.mxu0 %v2823
        %4096 = vmatprep.subr.bf16.mxu0 %v2820
        %4097 = vmatpush1.bf16.msra.mxu0 %v2819
        %4098 = vmatprep.subr.bf16.mxu0 %v2816
        %4099 = vmatpush1.bf16.msra.mxu0 %v2815
        %4100 = vmatprep.subr.bf16.mxu0 %v2812
        %4101 = vmatpush1.bf16.msra.mxu0 %v2811
        %4102 = vmatprep.subr.bf16.mxu0 %v2808
        %4103 = vmatpush1.bf16.msra.mxu0 %v2807
        %4104 = vmatprep.subr.bf16.mxu0 %v2868
        %4105 = vmatpush2.bf16.msra.mxu0 %v2867
        %4106 = vmatprep.subr.bf16.mxu0 %v2864
        %4107 = vmatpush2.bf16.msra.mxu0 %v2863
        %4108 = vmatprep.subr.bf16.mxu0 %v2860
        %4109 = vmatpush2.bf16.msra.mxu0 %v2859
        %4110 = vmatprep.subr.bf16.mxu0 %v2856
        %4111 = vmatpush2.bf16.msra.mxu0 %v2855
        %4112 = vmatprep.subr.bf16.mxu0 %v2852
        %4113 = vmatpush2.bf16.msra.mxu0 %v2851
        %4114 = vmatprep.subr.bf16.mxu0 %v2848
        %4115 = vmatpush2.bf16.msra.mxu0 %v2847
        %4116 = vmatprep.subr.bf16.mxu0 %v2844
        %4117 = vmatpush2.bf16.msra.mxu0 %v2843
        %4118 = vmatprep.subr.bf16.mxu0 %v2840
        %4119 = vmatpush2.bf16.msra.mxu0 %v2839
        %4120 = vmatprep.mubr.bf16.mxu0 %v1052
        %4121 = vmatmul.mubr.bf16.gmra.mxu0 %v1051
        %v4122 = vpop.f32.mrf.mxu0
        %v4123 = vadd.f32 %v4082, %v4122
        %v4124 = vpop.f32.mrf.mxu0
        %v4125 = vadd.f32 %v4084, %v4124
        %v4126 = vpop.f32.mrf.mxu0
        %v4127 = vpop.f32.mrf.mxu0
        %4128 = vdwg.mxu0
        %4129 = vmatprep.subr.bf16.mxu0 %v2900
        %4130 = vmatpush1.bf16.msra.mxu0 %v2899
        %4131 = vmatprep.subr.bf16.mxu0 %v2896
        %4132 = vmatpush1.bf16.msra.mxu0 %v2895
        %4133 = vmatprep.subr.bf16.mxu0 %v2892
        %4134 = vmatpush1.bf16.msra.mxu0 %v2891
        %4135 = vmatprep.subr.bf16.mxu0 %v2888
        %4136 = vmatpush1.bf16.msra.mxu0 %v2887
        %4137 = vmatprep.subr.bf16.mxu0 %v2884
        %4138 = vmatpush1.bf16.msra.mxu0 %v2883
        %4139 = vmatprep.subr.bf16.mxu0 %v2880
        %4140 = vmatpush1.bf16.msra.mxu0 %v2879
        %4141 = vmatprep.subr.bf16.mxu0 %v2876
        %4142 = vmatpush1.bf16.msra.mxu0 %v2875
        %4143 = vmatprep.subr.bf16.mxu0 %v2872
        %4144 = vmatpush1.bf16.msra.mxu0 %v2871
        %4145 = vmatprep.subr.bf16.mxu0 %v2932
        %4146 = vmatpush2.bf16.msra.mxu0 %v2931
        %4147 = vmatprep.subr.bf16.mxu0 %v2928
        %4148 = vmatpush2.bf16.msra.mxu0 %v2927
        %4149 = vmatprep.subr.bf16.mxu0 %v2924
        %4150 = vmatpush2.bf16.msra.mxu0 %v2923
        %4151 = vmatprep.subr.bf16.mxu0 %v2920
        %4152 = vmatpush2.bf16.msra.mxu0 %v2919
        %4153 = vmatprep.subr.bf16.mxu0 %v2916
        %4154 = vmatpush2.bf16.msra.mxu0 %v2915
        %4155 = vmatprep.subr.bf16.mxu0 %v2912
        %4156 = vmatpush2.bf16.msra.mxu0 %v2911
        %4157 = vmatprep.subr.bf16.mxu0 %v2908
        %4158 = vmatpush2.bf16.msra.mxu0 %v2907
        %4159 = vmatprep.subr.bf16.mxu0 %v2904
        %4160 = vmatpush2.bf16.msra.mxu0 %v2903
        %4161 = vmatprep.mubr.bf16.mxu0 %v1054
        %4162 = vmatmul.mubr.bf16.gmra.mxu0 %v1053
        %v4163 = vpop.f32.mrf.mxu0
        %v4164 = vadd.f32 %v4123, %v4163
        %v4165 = vpop.f32.mrf.mxu0
        %v4166 = vadd.f32 %v4125, %v4165
        %v4167 = vpop.f32.mrf.mxu0
        %v4168 = vpop.f32.mrf.mxu0
        %4169 = vdwg.mxu0
        %4170 = vmatprep.subr.bf16.mxu0 %v2964
        %4171 = vmatpush1.bf16.msra.mxu0 %v2963
        %4172 = vmatprep.subr.bf16.mxu0 %v2960
        %4173 = vmatpush1.bf16.msra.mxu0 %v2959
        %4174 = vmatprep.subr.bf16.mxu0 %v2956
        %4175 = vmatpush1.bf16.msra.mxu0 %v2955
        %4176 = vmatprep.subr.bf16.mxu0 %v2952
        %4177 = vmatpush1.bf16.msra.mxu0 %v2951
        %4178 = vmatprep.subr.bf16.mxu0 %v2948
        %4179 = vmatpush1.bf16.msra.mxu0 %v2947
        %4180 = vmatprep.subr.bf16.mxu0 %v2944
        %4181 = vmatpush1.bf16.msra.mxu0 %v2943
        %4182 = vmatprep.subr.bf16.mxu0 %v2940
        %4183 = vmatpush1.bf16.msra.mxu0 %v2939
        %4184 = vmatprep.subr.bf16.mxu0 %v2936
        %4185 = vmatpush1.bf16.msra.mxu0 %v2935
        %4186 = vmatprep.subr.bf16.mxu0 %v2996
        %4187 = vmatpush2.bf16.msra.mxu0 %v2995
        %4188 = vmatprep.subr.bf16.mxu0 %v2992
        %4189 = vmatpush2.bf16.msra.mxu0 %v2991
        %4190 = vmatprep.subr.bf16.mxu0 %v2988
        %4191 = vmatpush2.bf16.msra.mxu0 %v2987
        %4192 = vmatprep.subr.bf16.mxu0 %v2984
        %4193 = vmatpush2.bf16.msra.mxu0 %v2983
        %4194 = vmatprep.subr.bf16.mxu0 %v2980
        %4195 = vmatpush2.bf16.msra.mxu0 %v2979
        %4196 = vmatprep.subr.bf16.mxu0 %v2976
        %4197 = vmatpush2.bf16.msra.mxu0 %v2975
        %4198 = vmatprep.subr.bf16.mxu0 %v2972
        %4199 = vmatpush2.bf16.msra.mxu0 %v2971
        %4200 = vmatprep.subr.bf16.mxu0 %v2968
        %4201 = vmatpush2.bf16.msra.mxu0 %v2967
        %4202 = vmatprep.mubr.bf16.mxu0 %v1056
        %4203 = vmatmul.mubr.bf16.gmra.mxu0 %v1055
        %v4204 = vpop.f32.mrf.mxu0
        %v4205 = vadd.f32 %v4164, %v4204
        %v4206 = vpop.f32.mrf.mxu0
        %v4207 = vadd.f32 %v4166, %v4206
        %v4208 = vpop.f32.mrf.mxu0
        %v4209 = vpop.f32.mrf.mxu0
        %4210 = vdwg.mxu0
        %4211 = vmatprep.subr.bf16.mxu0 %v3028
        %4212 = vmatpush1.bf16.msra.mxu0 %v3027
        %4213 = vmatprep.subr.bf16.mxu0 %v3024
        %4214 = vmatpush1.bf16.msra.mxu0 %v3023
        %4215 = vmatprep.subr.bf16.mxu0 %v3020
        %4216 = vmatpush1.bf16.msra.mxu0 %v3019
        %4217 = vmatprep.subr.bf16.mxu0 %v3016
        %4218 = vmatpush1.bf16.msra.mxu0 %v3015
        %4219 = vmatprep.subr.bf16.mxu0 %v3012
        %4220 = vmatpush1.bf16.msra.mxu0 %v3011
        %4221 = vmatprep.subr.bf16.mxu0 %v3008
        %4222 = vmatpush1.bf16.msra.mxu0 %v3007
        %4223 = vmatprep.subr.bf16.mxu0 %v3004
        %4224 = vmatpush1.bf16.msra.mxu0 %v3003
        %4225 = vmatprep.subr.bf16.mxu0 %v3000
        %4226 = vmatpush1.bf16.msra.mxu0 %v2999
        %4227 = vmatprep.subr.bf16.mxu0 %v3060
        %4228 = vmatpush2.bf16.msra.mxu0 %v3059
        %4229 = vmatprep.subr.bf16.mxu0 %v3056
        %4230 = vmatpush2.bf16.msra.mxu0 %v3055
        %4231 = vmatprep.subr.bf16.mxu0 %v3052
        %4232 = vmatpush2.bf16.msra.mxu0 %v3051
        %4233 = vmatprep.subr.bf16.mxu0 %v3048
        %4234 = vmatpush2.bf16.msra.mxu0 %v3047
        %4235 = vmatprep.subr.bf16.mxu0 %v3044
        %4236 = vmatpush2.bf16.msra.mxu0 %v3043
        %4237 = vmatprep.subr.bf16.mxu0 %v3040
        %4238 = vmatpush2.bf16.msra.mxu0 %v3039
        %4239 = vmatprep.subr.bf16.mxu0 %v3036
        %4240 = vmatpush2.bf16.msra.mxu0 %v3035
        %4241 = vmatprep.subr.bf16.mxu0 %v3032
        %4242 = vmatpush2.bf16.msra.mxu0 %v3031
        %4243 = vmatprep.mubr.bf16.mxu0 %v1058
        %4244 = vmatmul.mubr.bf16.gmra.mxu0 %v1057
        %v4245 = vpop.f32.mrf.mxu0
        %v4246 = vadd.f32 %v4205, %v4245
        %v4247 = vpop.f32.mrf.mxu0
        %v4248 = vadd.f32 %v4207, %v4247
        %v4249 = vpop.f32.mrf.mxu0
        %v4250 = vpop.f32.mrf.mxu0
        %4251 = vdwg.mxu0
        %4252 = vmatprep.subr.bf16.mxu0 %v3092
        %4253 = vmatpush1.bf16.msra.mxu0 %v3091
        %4254 = vmatprep.subr.bf16.mxu0 %v3088
        %4255 = vmatpush1.bf16.msra.mxu0 %v3087
        %4256 = vmatprep.subr.bf16.mxu0 %v3084
        %4257 = vmatpush1.bf16.msra.mxu0 %v3083
        %4258 = vmatprep.subr.bf16.mxu0 %v3080
        %4259 = vmatpush1.bf16.msra.mxu0 %v3079
        %4260 = vmatprep.subr.bf16.mxu0 %v3076
        %4261 = vmatpush1.bf16.msra.mxu0 %v3075
        %4262 = vmatprep.subr.bf16.mxu0 %v3072
        %4263 = vmatpush1.bf16.msra.mxu0 %v3071
        %4264 = vmatprep.subr.bf16.mxu0 %v3068
        %4265 = vmatpush1.bf16.msra.mxu0 %v3067
        %4266 = vmatprep.subr.bf16.mxu0 %v3064
        %4267 = vmatpush1.bf16.msra.mxu0 %v3063
        %4268 = vmatprep.subr.bf16.mxu0 %v3124
        %4269 = vmatpush2.bf16.msra.mxu0 %v3123
        %4270 = vmatprep.subr.bf16.mxu0 %v3120
        %4271 = vmatpush2.bf16.msra.mxu0 %v3119
        %4272 = vmatprep.subr.bf16.mxu0 %v3116
        %4273 = vmatpush2.bf16.msra.mxu0 %v3115
        %4274 = vmatprep.subr.bf16.mxu0 %v3112
        %4275 = vmatpush2.bf16.msra.mxu0 %v3111
        %4276 = vmatprep.subr.bf16.mxu0 %v3108
        %4277 = vmatpush2.bf16.msra.mxu0 %v3107
        %4278 = vmatprep.subr.bf16.mxu0 %v3104
        %4279 = vmatpush2.bf16.msra.mxu0 %v3103
        %4280 = vmatprep.subr.bf16.mxu0 %v3100
        %4281 = vmatpush2.bf16.msra.mxu0 %v3099
        %4282 = vmatprep.subr.bf16.mxu0 %v3096
        %4283 = vmatpush2.bf16.msra.mxu0 %v3095
        %4284 = vmatprep.mubr.bf16.mxu0 %v1060
        %4285 = vmatmul.mubr.bf16.gmra.mxu0 %v1059
        %v4286 = vpop.f32.mrf.mxu0
        %v4287 = vadd.f32 %v4246, %v4286
        %v4288 = vpop.f32.mrf.mxu0
        %v4289 = vadd.f32 %v4248, %v4288
        %v4290 = vpop.f32.mrf.mxu0
        %v4291 = vpop.f32.mrf.mxu0
        %4292 = vdwg.mxu0
        %v4293 = vadd.f32 %v497, %v3959
        %v4294 = vadd.f32 %v498, %v3961
        %v4295 = vadd.f32 %v499, %v4287
        %v4296 = vadd.f32 %v500, %v4289
        %4297 = vst [vmem:[#allocation2] sm:$0xff] %v4293
        %4298 = vst [vmem:[#allocation2 + $0x8] sm:$0xff] %v4294
        %4299 = vst [vmem:[#allocation2 + $0x10] sm:$0xff] %v4295
        %4300 = vst [vmem:[#allocation2 + $0x18] sm:$0xff] %v4296
        %p4301 = scmp.eq.s32.totalorder %s33, 1
        // Predicated region
        $region93: #{mlp_forward.1} parent=55 // pred_check
          %p4302 = pneg %p4301
        $region94: #{mlp_forward.1} parent=55 // pred_check_branch
          %4304 = sbr.rel (%p4302) target = $region96
        $region95: #{mlp_forward.1} parent=55 // pred_region
          %v4305 = vld [vmem:[#allocation2] sm:$0xff]
          %v4306 = vld [vmem:[#allocation2 + $0x8] sm:$0xff]
          %v4307 = vld [vmem:[#allocation2 + $0x10] sm:$0xff]
          %v4308 = vld [vmem:[#allocation2 + $0x18] sm:$0xff]
          %v4309 = vld [vmem:[#allocation6] sm:$0xf]
          %v4311 = vlaneseq
          %v4312 = vshrl.u32 %v4311, 7
          %v4313 = vsub.s32 0, %v4312
          %v4314 = vrot.slane %v4309, %v4313
          %v4315 = vlaneseq
          %v4316 = vshrl.u32 %v4315, 7
          %v4317 = vsub.s32 1, %v4316
          %v4318 = vrot.slane %v4309, %v4317
          %v4319 = vlaneseq
          %v4320 = vshrl.u32 %v4319, 7
          %v4321 = vsub.s32 2, %v4320
          %v4322 = vrot.slane %v4309, %v4321
          %v4323 = vlaneseq
          %v4324 = vshrl.u32 %v4323, 7
          %v4325 = vsub.s32 3, %v4324
          %v4326 = vrot.slane %v4309, %v4325
          %v4331 = vadd.f32 %v4305, %v4314
          %v4332 = vadd.f32 %v4306, %v4318
          %v4333 = vadd.f32 %v4307, %v4322
          %v4334 = vadd.f32 %v4308, %v4326
          %v4335 = vmax.f32 %v4331, 0.0
          %v4336 = vmax.f32 %v4332, 0.0
          %v4337 = vmax.f32 %v4333, 0.0
          %v4338 = vmax.f32 %v4334, 0.0
          %v4339 = vpack.c.bf16 %v4335, %v4335
          %v4340 = vpack.c.bf16 %v4336, %v4336
          %v4341 = vpack.c.bf16 %v4337, %v4337
          %v4342 = vpack.c.bf16 %v4338, %v4338
          %v4343 = vld [vmem:[#allocation8] sm:$0xff]
          %v4344 = vld [vmem:[#allocation8 + $0x8] sm:$0xff]
          %v4345 = vld [vmem:[#allocation8 + $0x10] sm:$0xff]
          %v4346 = vld [vmem:[#allocation8 + $0x18] sm:$0xff]
          %v4347 = vld [vmem:[#allocation8 + $0x20] sm:$0xff]
          %v4348 = vld [vmem:[#allocation8 + $0x28] sm:$0xff]
          %v4349 = vld [vmem:[#allocation8 + $0x30] sm:$0xff]
          %v4350 = vld [vmem:[#allocation8 + $0x38] sm:$0xff]
          %v4351 = vld [vmem:[#allocation8 + $0x40] sm:$0xff]
          %v4352 = vld [vmem:[#allocation8 + $0x48] sm:$0xff]
          %v4353 = vld [vmem:[#allocation8 + $0x50] sm:$0xff]
          %v4354 = vld [vmem:[#allocation8 + $0x58] sm:$0xff]
          %v4355 = vld [vmem:[#allocation8 + $0x60] sm:$0xff]
          %v4356 = vld [vmem:[#allocation8 + $0x68] sm:$0xff]
          %v4357 = vld [vmem:[#allocation8 + $0x70] sm:$0xff]
          %v4358 = vld [vmem:[#allocation8 + $0x78] sm:$0xff]
          %v4359 = vld [vmem:[#allocation8 + $0x80] sm:$0xff]
          %v4360 = vld [vmem:[#allocation8 + $0x88] sm:$0xff]
          %v4361 = vld [vmem:[#allocation8 + $0x90] sm:$0xff]
          %v4362 = vld [vmem:[#allocation8 + $0x98] sm:$0xff]
          %v4363 = vld [vmem:[#allocation8 + $0xa0] sm:$0xff]
          %v4364 = vld [vmem:[#allocation8 + $0xa8] sm:$0xff]
          %v4365 = vld [vmem:[#allocation8 + $0xb0] sm:$0xff]
          %v4366 = vld [vmem:[#allocation8 + $0xb8] sm:$0xff]
          %v4367 = vld [vmem:[#allocation8 + $0xc0] sm:$0xff]
          %v4368 = vld [vmem:[#allocation8 + $0xc8] sm:$0xff]
          %v4369 = vld [vmem:[#allocation8 + $0xd0] sm:$0xff]
          %v4370 = vld [vmem:[#allocation8 + $0xd8] sm:$0xff]
          %v4371 = vld [vmem:[#allocation8 + $0xe0] sm:$0xff]
          %v4372 = vld [vmem:[#allocation8 + $0xe8] sm:$0xff]
          %v4373 = vld [vmem:[#allocation8 + $0xf0] sm:$0xff]
          %v4374 = vld [vmem:[#allocation8 + $0xf8] sm:$0xff]
          %v4375 = vld [vmem:[#allocation8 + $0x100] sm:$0xff]
          %v4376 = vld [vmem:[#allocation8 + $0x108] sm:$0xff]
          %v4377 = vld [vmem:[#allocation8 + $0x110] sm:$0xff]
          %v4378 = vld [vmem:[#allocation8 + $0x118] sm:$0xff]
          %v4379 = vld [vmem:[#allocation8 + $0x120] sm:$0xff]
          %v4380 = vld [vmem:[#allocation8 + $0x128] sm:$0xff]
          %v4381 = vld [vmem:[#allocation8 + $0x130] sm:$0xff]
          %v4382 = vld [vmem:[#allocation8 + $0x138] sm:$0xff]
          %v4383 = vld [vmem:[#allocation8 + $0x140] sm:$0xff]
          %v4384 = vld [vmem:[#allocation8 + $0x148] sm:$0xff]
          %v4385 = vld [vmem:[#allocation8 + $0x150] sm:$0xff]
          %v4386 = vld [vmem:[#allocation8 + $0x158] sm:$0xff]
          %v4387 = vld [vmem:[#allocation8 + $0x160] sm:$0xff]
          %v4388 = vld [vmem:[#allocation8 + $0x168] sm:$0xff]
          %v4389 = vld [vmem:[#allocation8 + $0x170] sm:$0xff]
          %v4390 = vld [vmem:[#allocation8 + $0x178] sm:$0xff]
          %v4391 = vld [vmem:[#allocation8 + $0x180] sm:$0xff]
          %v4392 = vld [vmem:[#allocation8 + $0x188] sm:$0xff]
          %v4393 = vld [vmem:[#allocation8 + $0x190] sm:$0xff]
          %v4394 = vld [vmem:[#allocation8 + $0x198] sm:$0xff]
          %v4395 = vld [vmem:[#allocation8 + $0x1a0] sm:$0xff]
          %v4396 = vld [vmem:[#allocation8 + $0x1a8] sm:$0xff]
          %v4397 = vld [vmem:[#allocation8 + $0x1b0] sm:$0xff]
          %v4398 = vld [vmem:[#allocation8 + $0x1b8] sm:$0xff]
          %v4399 = vld [vmem:[#allocation8 + $0x1c0] sm:$0xff]
          %v4400 = vld [vmem:[#allocation8 + $0x1c8] sm:$0xff]
          %v4401 = vld [vmem:[#allocation8 + $0x1d0] sm:$0xff]
          %v4402 = vld [vmem:[#allocation8 + $0x1d8] sm:$0xff]
          %v4403 = vld [vmem:[#allocation8 + $0x1e0] sm:$0xff]
          %v4404 = vld [vmem:[#allocation8 + $0x1e8] sm:$0xff]
          %v4405 = vld [vmem:[#allocation8 + $0x1f0] sm:$0xff]
          %v4406 = vld [vmem:[#allocation8 + $0x1f8] sm:$0xff]
          %v4407 = vld [vmem:[#allocation8 + $0x200] sm:$0xff]
          %v4408 = vld [vmem:[#allocation8 + $0x208] sm:$0xff]
          %v4409 = vld [vmem:[#allocation8 + $0x210] sm:$0xff]
          %v4410 = vld [vmem:[#allocation8 + $0x218] sm:$0xff]
          %v4411 = vld [vmem:[#allocation8 + $0x220] sm:$0xff]
          %v4412 = vld [vmem:[#allocation8 + $0x228] sm:$0xff]
          %v4413 = vld [vmem:[#allocation8 + $0x230] sm:$0xff]
          %v4414 = vld [vmem:[#allocation8 + $0x238] sm:$0xff]
          %v4415 = vld [vmem:[#allocation8 + $0x240] sm:$0xff]
          %v4416 = vld [vmem:[#allocation8 + $0x248] sm:$0xff]
          %v4417 = vld [vmem:[#allocation8 + $0x250] sm:$0xff]
          %v4418 = vld [vmem:[#allocation8 + $0x258] sm:$0xff]
          %v4419 = vld [vmem:[#allocation8 + $0x260] sm:$0xff]
          %v4420 = vld [vmem:[#allocation8 + $0x268] sm:$0xff]
          %v4421 = vld [vmem:[#allocation8 + $0x270] sm:$0xff]
          %v4422 = vld [vmem:[#allocation8 + $0x278] sm:$0xff]
          %v4423 = vld [vmem:[#allocation8 + $0x280] sm:$0xff]
          %v4424 = vld [vmem:[#allocation8 + $0x288] sm:$0xff]
          %v4425 = vld [vmem:[#allocation8 + $0x290] sm:$0xff]
          %v4426 = vld [vmem:[#allocation8 + $0x298] sm:$0xff]
          %v4427 = vld [vmem:[#allocation8 + $0x2a0] sm:$0xff]
          %v4428 = vld [vmem:[#allocation8 + $0x2a8] sm:$0xff]
          %v4429 = vld [vmem:[#allocation8 + $0x2b0] sm:$0xff]
          %v4430 = vld [vmem:[#allocation8 + $0x2b8] sm:$0xff]
          %v4431 = vld [vmem:[#allocation8 + $0x2c0] sm:$0xff]
          %v4432 = vld [vmem:[#allocation8 + $0x2c8] sm:$0xff]
          %v4433 = vld [vmem:[#allocation8 + $0x2d0] sm:$0xff]
          %v4434 = vld [vmem:[#allocation8 + $0x2d8] sm:$0xff]
          %v4435 = vld [vmem:[#allocation8 + $0x2e0] sm:$0xff]
          %v4436 = vld [vmem:[#allocation8 + $0x2e8] sm:$0xff]
          %v4437 = vld [vmem:[#allocation8 + $0x2f0] sm:$0xff]
          %v4438 = vld [vmem:[#allocation8 + $0x2f8] sm:$0xff]
          %v4439 = vld [vmem:[#allocation8 + $0x300] sm:$0xff]
          %v4440 = vld [vmem:[#allocation8 + $0x308] sm:$0xff]
          %v4441 = vld [vmem:[#allocation8 + $0x310] sm:$0xff]
          %v4442 = vld [vmem:[#allocation8 + $0x318] sm:$0xff]
          %v4443 = vld [vmem:[#allocation8 + $0x320] sm:$0xff]
          %v4444 = vld [vmem:[#allocation8 + $0x328] sm:$0xff]
          %v4445 = vld [vmem:[#allocation8 + $0x330] sm:$0xff]
          %v4446 = vld [vmem:[#allocation8 + $0x338] sm:$0xff]
          %v4447 = vld [vmem:[#allocation8 + $0x340] sm:$0xff]
          %v4448 = vld [vmem:[#allocation8 + $0x348] sm:$0xff]
          %v4449 = vld [vmem:[#allocation8 + $0x350] sm:$0xff]
          %v4450 = vld [vmem:[#allocation8 + $0x358] sm:$0xff]
          %v4451 = vld [vmem:[#allocation8 + $0x360] sm:$0xff]
          %v4452 = vld [vmem:[#allocation8 + $0x368] sm:$0xff]
          %v4453 = vld [vmem:[#allocation8 + $0x370] sm:$0xff]
          %v4454 = vld [vmem:[#allocation8 + $0x378] sm:$0xff]
          %v4455 = vld [vmem:[#allocation8 + $0x380] sm:$0xff]
          %v4456 = vld [vmem:[#allocation8 + $0x388] sm:$0xff]
          %v4457 = vld [vmem:[#allocation8 + $0x390] sm:$0xff]
          %v4458 = vld [vmem:[#allocation8 + $0x398] sm:$0xff]
          %v4459 = vld [vmem:[#allocation8 + $0x3a0] sm:$0xff]
          %v4460 = vld [vmem:[#allocation8 + $0x3a8] sm:$0xff]
          %v4461 = vld [vmem:[#allocation8 + $0x3b0] sm:$0xff]
          %v4462 = vld [vmem:[#allocation8 + $0x3b8] sm:$0xff]
          %v4463 = vld [vmem:[#allocation8 + $0x3c0] sm:$0xff]
          %v4464 = vld [vmem:[#allocation8 + $0x3c8] sm:$0xff]
          %v4465 = vld [vmem:[#allocation8 + $0x3d0] sm:$0xff]
          %v4466 = vld [vmem:[#allocation8 + $0x3d8] sm:$0xff]
          %v4467 = vld [vmem:[#allocation8 + $0x3e0] sm:$0xff]
          %v4468 = vld [vmem:[#allocation8 + $0x3e8] sm:$0xff]
          %v4469 = vld [vmem:[#allocation8 + $0x3f0] sm:$0xff]
          %v4470 = vld [vmem:[#allocation8 + $0x3f8] sm:$0xff]
          %v4471 = vld [vmem:[#allocation9] sm:$0xf]
          %v4473 = vlaneseq
          %v4474 = vshrl.u32 %v4473, 7
          %v4475 = vsub.s32 0, %v4474
          %v4476 = vrot.slane %v4471, %v4475
          %v4477 = vlaneseq
          %v4478 = vshrl.u32 %v4477, 7
          %v4479 = vsub.s32 1, %v4478
          %v4480 = vrot.slane %v4471, %v4479
          %v4481 = vlaneseq
          %v4482 = vshrl.u32 %v4481, 7
          %v4483 = vsub.s32 2, %v4482
          %v4484 = vrot.slane %v4471, %v4483
          %v4485 = vlaneseq
          %v4486 = vshrl.u32 %v4485, 7
          %v4487 = vsub.s32 3, %v4486
          %v4488 = vrot.slane %v4471, %v4487
          %v4621 = vunpack.c.l.b16 %v4343
          %v4622 = vunpack.c.h.b16 %v4343
          %v4623 = vunpack.c.l.b16 %v4344
          %v4624 = vunpack.c.h.b16 %v4344
          %v4625 = vunpack.c.l.b16 %v4345
          %v4626 = vunpack.c.h.b16 %v4345
          %v4627 = vunpack.c.l.b16 %v4346
          %v4628 = vunpack.c.h.b16 %v4346
          %v4629 = vunpack.c.l.b16 %v4347
          %v4630 = vunpack.c.h.b16 %v4347
          %v4631 = vunpack.c.l.b16 %v4348
          %v4632 = vunpack.c.h.b16 %v4348
          %v4633 = vunpack.c.l.b16 %v4349
          %v4634 = vunpack.c.h.b16 %v4349
          %v4635 = vunpack.c.l.b16 %v4350
          %v4636 = vunpack.c.h.b16 %v4350
          %v4637 = vunpack.c.l.b16 %v4351
          %v4638 = vunpack.c.h.b16 %v4351
          %v4639 = vunpack.c.l.b16 %v4352
          %v4640 = vunpack.c.h.b16 %v4352
          %v4641 = vunpack.c.l.b16 %v4353
          %v4642 = vunpack.c.h.b16 %v4353
          %v4643 = vunpack.c.l.b16 %v4354
          %v4644 = vunpack.c.h.b16 %v4354
          %v4645 = vunpack.c.l.b16 %v4355
          %v4646 = vunpack.c.h.b16 %v4355
          %v4647 = vunpack.c.l.b16 %v4356
          %v4648 = vunpack.c.h.b16 %v4356
          %v4649 = vunpack.c.l.b16 %v4357
          %v4650 = vunpack.c.h.b16 %v4357
          %v4651 = vunpack.c.l.b16 %v4358
          %v4652 = vunpack.c.h.b16 %v4358
          %v4653 = vunpack.c.l.b16 %v4359
          %v4654 = vunpack.c.h.b16 %v4359
          %v4655 = vunpack.c.l.b16 %v4360
          %v4656 = vunpack.c.h.b16 %v4360
          %v4657 = vunpack.c.l.b16 %v4361
          %v4658 = vunpack.c.h.b16 %v4361
          %v4659 = vunpack.c.l.b16 %v4362
          %v4660 = vunpack.c.h.b16 %v4362
          %v4661 = vunpack.c.l.b16 %v4363
          %v4662 = vunpack.c.h.b16 %v4363
          %v4663 = vunpack.c.l.b16 %v4364
          %v4664 = vunpack.c.h.b16 %v4364
          %v4665 = vunpack.c.l.b16 %v4365
          %v4666 = vunpack.c.h.b16 %v4365
          %v4667 = vunpack.c.l.b16 %v4366
          %v4668 = vunpack.c.h.b16 %v4366
          %v4669 = vunpack.c.l.b16 %v4367
          %v4670 = vunpack.c.h.b16 %v4367
          %v4671 = vunpack.c.l.b16 %v4368
          %v4672 = vunpack.c.h.b16 %v4368
          %v4673 = vunpack.c.l.b16 %v4369
          %v4674 = vunpack.c.h.b16 %v4369
          %v4675 = vunpack.c.l.b16 %v4370
          %v4676 = vunpack.c.h.b16 %v4370
          %v4677 = vunpack.c.l.b16 %v4371
          %v4678 = vunpack.c.h.b16 %v4371
          %v4679 = vunpack.c.l.b16 %v4372
          %v4680 = vunpack.c.h.b16 %v4372
          %v4681 = vunpack.c.l.b16 %v4373
          %v4682 = vunpack.c.h.b16 %v4373
          %v4683 = vunpack.c.l.b16 %v4374
          %v4684 = vunpack.c.h.b16 %v4374
          %v4685 = vunpack.c.l.b16 %v4375
          %v4686 = vunpack.c.h.b16 %v4375
          %v4687 = vunpack.c.l.b16 %v4376
          %v4688 = vunpack.c.h.b16 %v4376
          %v4689 = vunpack.c.l.b16 %v4377
          %v4690 = vunpack.c.h.b16 %v4377
          %v4691 = vunpack.c.l.b16 %v4378
          %v4692 = vunpack.c.h.b16 %v4378
          %v4693 = vunpack.c.l.b16 %v4379
          %v4694 = vunpack.c.h.b16 %v4379
          %v4695 = vunpack.c.l.b16 %v4380
          %v4696 = vunpack.c.h.b16 %v4380
          %v4697 = vunpack.c.l.b16 %v4381
          %v4698 = vunpack.c.h.b16 %v4381
          %v4699 = vunpack.c.l.b16 %v4382
          %v4700 = vunpack.c.h.b16 %v4382
          %v4701 = vunpack.c.l.b16 %v4383
          %v4702 = vunpack.c.h.b16 %v4383
          %v4703 = vunpack.c.l.b16 %v4384
          %v4704 = vunpack.c.h.b16 %v4384
          %v4705 = vunpack.c.l.b16 %v4385
          %v4706 = vunpack.c.h.b16 %v4385
          %v4707 = vunpack.c.l.b16 %v4386
          %v4708 = vunpack.c.h.b16 %v4386
          %v4709 = vunpack.c.l.b16 %v4387
          %v4710 = vunpack.c.h.b16 %v4387
          %v4711 = vunpack.c.l.b16 %v4388
          %v4712 = vunpack.c.h.b16 %v4388
          %v4713 = vunpack.c.l.b16 %v4389
          %v4714 = vunpack.c.h.b16 %v4389
          %v4715 = vunpack.c.l.b16 %v4390
          %v4716 = vunpack.c.h.b16 %v4390
          %v4717 = vunpack.c.l.b16 %v4391
          %v4718 = vunpack.c.h.b16 %v4391
          %v4719 = vunpack.c.l.b16 %v4392
          %v4720 = vunpack.c.h.b16 %v4392
          %v4721 = vunpack.c.l.b16 %v4393
          %v4722 = vunpack.c.h.b16 %v4393
          %v4723 = vunpack.c.l.b16 %v4394
          %v4724 = vunpack.c.h.b16 %v4394
          %v4725 = vunpack.c.l.b16 %v4395
          %v4726 = vunpack.c.h.b16 %v4395
          %v4727 = vunpack.c.l.b16 %v4396
          %v4728 = vunpack.c.h.b16 %v4396
          %v4729 = vunpack.c.l.b16 %v4397
          %v4730 = vunpack.c.h.b16 %v4397
          %v4731 = vunpack.c.l.b16 %v4398
          %v4732 = vunpack.c.h.b16 %v4398
          %v4733 = vunpack.c.l.b16 %v4399
          %v4734 = vunpack.c.h.b16 %v4399
          %v4735 = vunpack.c.l.b16 %v4400
          %v4736 = vunpack.c.h.b16 %v4400
          %v4737 = vunpack.c.l.b16 %v4401
          %v4738 = vunpack.c.h.b16 %v4401
          %v4739 = vunpack.c.l.b16 %v4402
          %v4740 = vunpack.c.h.b16 %v4402
          %v4741 = vunpack.c.l.b16 %v4403
          %v4742 = vunpack.c.h.b16 %v4403
          %v4743 = vunpack.c.l.b16 %v4404
          %v4744 = vunpack.c.h.b16 %v4404
          %v4745 = vunpack.c.l.b16 %v4405
          %v4746 = vunpack.c.h.b16 %v4405
          %v4747 = vunpack.c.l.b16 %v4406
          %v4748 = vunpack.c.h.b16 %v4406
          %v4749 = vunpack.c.l.b16 %v4407
          %v4750 = vunpack.c.h.b16 %v4407
          %v4751 = vunpack.c.l.b16 %v4408
          %v4752 = vunpack.c.h.b16 %v4408
          %v4753 = vunpack.c.l.b16 %v4409
          %v4754 = vunpack.c.h.b16 %v4409
          %v4755 = vunpack.c.l.b16 %v4410
          %v4756 = vunpack.c.h.b16 %v4410
          %v4757 = vunpack.c.l.b16 %v4411
          %v4758 = vunpack.c.h.b16 %v4411
          %v4759 = vunpack.c.l.b16 %v4412
          %v4760 = vunpack.c.h.b16 %v4412
          %v4761 = vunpack.c.l.b16 %v4413
          %v4762 = vunpack.c.h.b16 %v4413
          %v4763 = vunpack.c.l.b16 %v4414
          %v4764 = vunpack.c.h.b16 %v4414
          %v4765 = vunpack.c.l.b16 %v4415
          %v4766 = vunpack.c.h.b16 %v4415
          %v4767 = vunpack.c.l.b16 %v4416
          %v4768 = vunpack.c.h.b16 %v4416
          %v4769 = vunpack.c.l.b16 %v4417
          %v4770 = vunpack.c.h.b16 %v4417
          %v4771 = vunpack.c.l.b16 %v4418
          %v4772 = vunpack.c.h.b16 %v4418
          %v4773 = vunpack.c.l.b16 %v4419
          %v4774 = vunpack.c.h.b16 %v4419
          %v4775 = vunpack.c.l.b16 %v4420
          %v4776 = vunpack.c.h.b16 %v4420
          %v4777 = vunpack.c.l.b16 %v4421
          %v4778 = vunpack.c.h.b16 %v4421
          %v4779 = vunpack.c.l.b16 %v4422
          %v4780 = vunpack.c.h.b16 %v4422
          %v4781 = vunpack.c.l.b16 %v4423
          %v4782 = vunpack.c.h.b16 %v4423
          %v4783 = vunpack.c.l.b16 %v4424
          %v4784 = vunpack.c.h.b16 %v4424
          %v4785 = vunpack.c.l.b16 %v4425
          %v4786 = vunpack.c.h.b16 %v4425
          %v4787 = vunpack.c.l.b16 %v4426
          %v4788 = vunpack.c.h.b16 %v4426
          %v4789 = vunpack.c.l.b16 %v4427
          %v4790 = vunpack.c.h.b16 %v4427
          %v4791 = vunpack.c.l.b16 %v4428
          %v4792 = vunpack.c.h.b16 %v4428
          %v4793 = vunpack.c.l.b16 %v4429
          %v4794 = vunpack.c.h.b16 %v4429
          %v4795 = vunpack.c.l.b16 %v4430
          %v4796 = vunpack.c.h.b16 %v4430
          %v4797 = vunpack.c.l.b16 %v4431
          %v4798 = vunpack.c.h.b16 %v4431
          %v4799 = vunpack.c.l.b16 %v4432
          %v4800 = vunpack.c.h.b16 %v4432
          %v4801 = vunpack.c.l.b16 %v4433
          %v4802 = vunpack.c.h.b16 %v4433
          %v4803 = vunpack.c.l.b16 %v4434
          %v4804 = vunpack.c.h.b16 %v4434
          %v4805 = vunpack.c.l.b16 %v4435
          %v4806 = vunpack.c.h.b16 %v4435
          %v4807 = vunpack.c.l.b16 %v4436
          %v4808 = vunpack.c.h.b16 %v4436
          %v4809 = vunpack.c.l.b16 %v4437
          %v4810 = vunpack.c.h.b16 %v4437
          %v4811 = vunpack.c.l.b16 %v4438
          %v4812 = vunpack.c.h.b16 %v4438
          %v4813 = vunpack.c.l.b16 %v4439
          %v4814 = vunpack.c.h.b16 %v4439
          %v4815 = vunpack.c.l.b16 %v4440
          %v4816 = vunpack.c.h.b16 %v4440
          %v4817 = vunpack.c.l.b16 %v4441
          %v4818 = vunpack.c.h.b16 %v4441
          %v4819 = vunpack.c.l.b16 %v4442
          %v4820 = vunpack.c.h.b16 %v4442
          %v4821 = vunpack.c.l.b16 %v4443
          %v4822 = vunpack.c.h.b16 %v4443
          %v4823 = vunpack.c.l.b16 %v4444
          %v4824 = vunpack.c.h.b16 %v4444
          %v4825 = vunpack.c.l.b16 %v4445
          %v4826 = vunpack.c.h.b16 %v4445
          %v4827 = vunpack.c.l.b16 %v4446
          %v4828 = vunpack.c.h.b16 %v4446
          %v4829 = vunpack.c.l.b16 %v4447
          %v4830 = vunpack.c.h.b16 %v4447
          %v4831 = vunpack.c.l.b16 %v4448
          %v4832 = vunpack.c.h.b16 %v4448
          %v4833 = vunpack.c.l.b16 %v4449
          %v4834 = vunpack.c.h.b16 %v4449
          %v4835 = vunpack.c.l.b16 %v4450
          %v4836 = vunpack.c.h.b16 %v4450
          %v4837 = vunpack.c.l.b16 %v4451
          %v4838 = vunpack.c.h.b16 %v4451
          %v4839 = vunpack.c.l.b16 %v4452
          %v4840 = vunpack.c.h.b16 %v4452
          %v4841 = vunpack.c.l.b16 %v4453
          %v4842 = vunpack.c.h.b16 %v4453
          %v4843 = vunpack.c.l.b16 %v4454
          %v4844 = vunpack.c.h.b16 %v4454
          %v4845 = vunpack.c.l.b16 %v4455
          %v4846 = vunpack.c.h.b16 %v4455
          %v4847 = vunpack.c.l.b16 %v4456
          %v4848 = vunpack.c.h.b16 %v4456
          %v4849 = vunpack.c.l.b16 %v4457
          %v4850 = vunpack.c.h.b16 %v4457
          %v4851 = vunpack.c.l.b16 %v4458
          %v4852 = vunpack.c.h.b16 %v4458
          %v4853 = vunpack.c.l.b16 %v4459
          %v4854 = vunpack.c.h.b16 %v4459
          %v4855 = vunpack.c.l.b16 %v4460
          %v4856 = vunpack.c.h.b16 %v4460
          %v4857 = vunpack.c.l.b16 %v4461
          %v4858 = vunpack.c.h.b16 %v4461
          %v4859 = vunpack.c.l.b16 %v4462
          %v4860 = vunpack.c.h.b16 %v4462
          %v4861 = vunpack.c.l.b16 %v4463
          %v4862 = vunpack.c.h.b16 %v4463
          %v4863 = vunpack.c.l.b16 %v4464
          %v4864 = vunpack.c.h.b16 %v4464
          %v4865 = vunpack.c.l.b16 %v4465
          %v4866 = vunpack.c.h.b16 %v4465
          %v4867 = vunpack.c.l.b16 %v4466
          %v4868 = vunpack.c.h.b16 %v4466
          %v4869 = vunpack.c.l.b16 %v4467
          %v4870 = vunpack.c.h.b16 %v4467
          %v4871 = vunpack.c.l.b16 %v4468
          %v4872 = vunpack.c.h.b16 %v4468
          %v4873 = vunpack.c.l.b16 %v4469
          %v4874 = vunpack.c.h.b16 %v4469
          %v4875 = vunpack.c.l.b16 %v4470
          %v4876 = vunpack.c.h.b16 %v4470
          %v4877 = vpack.c.b16 %v4625, %v4621
          %v4878 = vpack.c.b16 %v4626, %v4622
          %v4879 = vpack.c.b16 %v4627, %v4623
          %v4880 = vpack.c.b16 %v4628, %v4624
          %v4881 = vpack.c.b16 %v4633, %v4629
          %v4882 = vpack.c.b16 %v4634, %v4630
          %v4883 = vpack.c.b16 %v4635, %v4631
          %v4884 = vpack.c.b16 %v4636, %v4632
          %v4885 = vpack.c.b16 %v4641, %v4637
          %v4886 = vpack.c.b16 %v4642, %v4638
          %v4887 = vpack.c.b16 %v4643, %v4639
          %v4888 = vpack.c.b16 %v4644, %v4640
          %v4889 = vpack.c.b16 %v4649, %v4645
          %v4890 = vpack.c.b16 %v4650, %v4646
          %v4891 = vpack.c.b16 %v4651, %v4647
          %v4892 = vpack.c.b16 %v4652, %v4648
          %v4893 = vpack.c.b16 %v4657, %v4653
          %v4894 = vpack.c.b16 %v4658, %v4654
          %v4895 = vpack.c.b16 %v4659, %v4655
          %v4896 = vpack.c.b16 %v4660, %v4656
          %v4897 = vpack.c.b16 %v4665, %v4661
          %v4898 = vpack.c.b16 %v4666, %v4662
          %v4899 = vpack.c.b16 %v4667, %v4663
          %v4900 = vpack.c.b16 %v4668, %v4664
          %v4901 = vpack.c.b16 %v4673, %v4669
          %v4902 = vpack.c.b16 %v4674, %v4670
          %v4903 = vpack.c.b16 %v4675, %v4671
          %v4904 = vpack.c.b16 %v4676, %v4672
          %v4905 = vpack.c.b16 %v4681, %v4677
          %v4906 = vpack.c.b16 %v4682, %v4678
          %v4907 = vpack.c.b16 %v4683, %v4679
          %v4908 = vpack.c.b16 %v4684, %v4680
          %v4909 = vpack.c.b16 %v4689, %v4685
          %v4910 = vpack.c.b16 %v4690, %v4686
          %v4911 = vpack.c.b16 %v4691, %v4687
          %v4912 = vpack.c.b16 %v4692, %v4688
          %v4913 = vpack.c.b16 %v4697, %v4693
          %v4914 = vpack.c.b16 %v4698, %v4694
          %v4915 = vpack.c.b16 %v4699, %v4695
          %v4916 = vpack.c.b16 %v4700, %v4696
          %v4917 = vpack.c.b16 %v4705, %v4701
          %v4918 = vpack.c.b16 %v4706, %v4702
          %v4919 = vpack.c.b16 %v4707, %v4703
          %v4920 = vpack.c.b16 %v4708, %v4704
          %v4921 = vpack.c.b16 %v4713, %v4709
          %v4922 = vpack.c.b16 %v4714, %v4710
          %v4923 = vpack.c.b16 %v4715, %v4711
          %v4924 = vpack.c.b16 %v4716, %v4712
          %v4925 = vpack.c.b16 %v4721, %v4717
          %v4926 = vpack.c.b16 %v4722, %v4718
          %v4927 = vpack.c.b16 %v4723, %v4719
          %v4928 = vpack.c.b16 %v4724, %v4720
          %v4929 = vpack.c.b16 %v4729, %v4725
          %v4930 = vpack.c.b16 %v4730, %v4726
          %v4931 = vpack.c.b16 %v4731, %v4727
          %v4932 = vpack.c.b16 %v4732, %v4728
          %v4933 = vpack.c.b16 %v4737, %v4733
          %v4934 = vpack.c.b16 %v4738, %v4734
          %v4935 = vpack.c.b16 %v4739, %v4735
          %v4936 = vpack.c.b16 %v4740, %v4736
          %v4937 = vpack.c.b16 %v4745, %v4741
          %v4938 = vpack.c.b16 %v4746, %v4742
          %v4939 = vpack.c.b16 %v4747, %v4743
          %v4940 = vpack.c.b16 %v4748, %v4744
          %v4941 = vpack.c.b16 %v4753, %v4749
          %v4942 = vpack.c.b16 %v4754, %v4750
          %v4943 = vpack.c.b16 %v4755, %v4751
          %v4944 = vpack.c.b16 %v4756, %v4752
          %v4945 = vpack.c.b16 %v4761, %v4757
          %v4946 = vpack.c.b16 %v4762, %v4758
          %v4947 = vpack.c.b16 %v4763, %v4759
          %v4948 = vpack.c.b16 %v4764, %v4760
          %v4949 = vpack.c.b16 %v4769, %v4765
          %v4950 = vpack.c.b16 %v4770, %v4766
          %v4951 = vpack.c.b16 %v4771, %v4767
          %v4952 = vpack.c.b16 %v4772, %v4768
          %v4953 = vpack.c.b16 %v4777, %v4773
          %v4954 = vpack.c.b16 %v4778, %v4774
          %v4955 = vpack.c.b16 %v4779, %v4775
          %v4956 = vpack.c.b16 %v4780, %v4776
          %v4957 = vpack.c.b16 %v4785, %v4781
          %v4958 = vpack.c.b16 %v4786, %v4782
          %v4959 = vpack.c.b16 %v4787, %v4783
          %v4960 = vpack.c.b16 %v4788, %v4784
          %v4961 = vpack.c.b16 %v4793, %v4789
          %v4962 = vpack.c.b16 %v4794, %v4790
          %v4963 = vpack.c.b16 %v4795, %v4791
          %v4964 = vpack.c.b16 %v4796, %v4792
          %v4965 = vpack.c.b16 %v4801, %v4797
          %v4966 = vpack.c.b16 %v4802, %v4798
          %v4967 = vpack.c.b16 %v4803, %v4799
          %v4968 = vpack.c.b16 %v4804, %v4800
          %v4969 = vpack.c.b16 %v4809, %v4805
          %v4970 = vpack.c.b16 %v4810, %v4806
          %v4971 = vpack.c.b16 %v4811, %v4807
          %v4972 = vpack.c.b16 %v4812, %v4808
          %v4973 = vpack.c.b16 %v4817, %v4813
          %v4974 = vpack.c.b16 %v4818, %v4814
          %v4975 = vpack.c.b16 %v4819, %v4815
          %v4976 = vpack.c.b16 %v4820, %v4816
          %v4977 = vpack.c.b16 %v4825, %v4821
          %v4978 = vpack.c.b16 %v4826, %v4822
          %v4979 = vpack.c.b16 %v4827, %v4823
          %v4980 = vpack.c.b16 %v4828, %v4824
          %v4981 = vpack.c.b16 %v4833, %v4829
          %v4982 = vpack.c.b16 %v4834, %v4830
          %v4983 = vpack.c.b16 %v4835, %v4831
          %v4984 = vpack.c.b16 %v4836, %v4832
          %v4985 = vpack.c.b16 %v4841, %v4837
          %v4986 = vpack.c.b16 %v4842, %v4838
          %v4987 = vpack.c.b16 %v4843, %v4839
          %v4988 = vpack.c.b16 %v4844, %v4840
          %v4989 = vpack.c.b16 %v4849, %v4845
          %v4990 = vpack.c.b16 %v4850, %v4846
          %v4991 = vpack.c.b16 %v4851, %v4847
          %v4992 = vpack.c.b16 %v4852, %v4848
          %v4993 = vpack.c.b16 %v4857, %v4853
          %v4994 = vpack.c.b16 %v4858, %v4854
          %v4995 = vpack.c.b16 %v4859, %v4855
          %v4996 = vpack.c.b16 %v4860, %v4856
          %v4997 = vpack.c.b16 %v4865, %v4861
          %v4998 = vpack.c.b16 %v4866, %v4862
          %v4999 = vpack.c.b16 %v4867, %v4863
          %v5000 = vpack.c.b16 %v4868, %v4864
          %v5001 = vpack.c.b16 %v4873, %v4869
          %v5002 = vpack.c.b16 %v4874, %v4870
          %v5003 = vpack.c.b16 %v4875, %v4871
          %v5004 = vpack.c.b16 %v4876, %v4872
          %5133 = vmatprep.subr.bf16.mxu0 %v4906
          %5134 = vmatpush1.bf16.msra.mxu0 %v4905
          %5135 = vmatprep.subr.bf16.mxu0 %v4902
          %5136 = vmatpush1.bf16.msra.mxu0 %v4901
          %5137 = vmatprep.subr.bf16.mxu0 %v4898
          %5138 = vmatpush1.bf16.msra.mxu0 %v4897
          %5139 = vmatprep.subr.bf16.mxu0 %v4894
          %5140 = vmatpush1.bf16.msra.mxu0 %v4893
          %5141 = vmatprep.subr.bf16.mxu0 %v4890
          %5142 = vmatpush1.bf16.msra.mxu0 %v4889
          %5143 = vmatprep.subr.bf16.mxu0 %v4886
          %5144 = vmatpush1.bf16.msra.mxu0 %v4885
          %5145 = vmatprep.subr.bf16.mxu0 %v4882
          %5146 = vmatpush1.bf16.msra.mxu0 %v4881
          %5147 = vmatprep.subr.bf16.mxu0 %v4878
          %5148 = vmatpush1.bf16.msra.mxu0 %v4877
          %5149 = vmatprep.subr.bf16.mxu0 %v4938
          %5150 = vmatpush2.bf16.msra.mxu0 %v4937
          %5151 = vmatprep.subr.bf16.mxu0 %v4934
          %5152 = vmatpush2.bf16.msra.mxu0 %v4933
          %5153 = vmatprep.subr.bf16.mxu0 %v4930
          %5154 = vmatpush2.bf16.msra.mxu0 %v4929
          %5155 = vmatprep.subr.bf16.mxu0 %v4926
          %5156 = vmatpush2.bf16.msra.mxu0 %v4925
          %5157 = vmatprep.subr.bf16.mxu0 %v4922
          %5158 = vmatpush2.bf16.msra.mxu0 %v4921
          %5159 = vmatprep.subr.bf16.mxu0 %v4918
          %5160 = vmatpush2.bf16.msra.mxu0 %v4917
          %5161 = vmatprep.subr.bf16.mxu0 %v4914
          %5162 = vmatpush2.bf16.msra.mxu0 %v4913
          %5163 = vmatprep.subr.bf16.mxu0 %v4910
          %5164 = vmatpush2.bf16.msra.mxu0 %v4909
          %5165 = vmatprep.mubr.bf16.mxu0 %v4340
          %5166 = vmatmul.mubr.bf16.gmra.mxu0 %v4339
          %v5167 = vpop.f32.mrf.mxu0
          %v5168 = vadd.f32 %v4476, %v5167
          %v5169 = vpop.f32.mrf.mxu0
          %v5170 = vadd.f32 %v4480, %v5169
          %v5171 = vpop.f32.mrf.mxu0
          %v5172 = vpop.f32.mrf.mxu0
          %5173 = vdwg.mxu0
          %5174 = vmatprep.subr.bf16.mxu0 %v4970
          %5175 = vmatpush1.bf16.msra.mxu0 %v4969
          %5176 = vmatprep.subr.bf16.mxu0 %v4966
          %5177 = vmatpush1.bf16.msra.mxu0 %v4965
          %5178 = vmatprep.subr.bf16.mxu0 %v4962
          %5179 = vmatpush1.bf16.msra.mxu0 %v4961
          %5180 = vmatprep.subr.bf16.mxu0 %v4958
          %5181 = vmatpush1.bf16.msra.mxu0 %v4957
          %5182 = vmatprep.subr.bf16.mxu0 %v4954
          %5183 = vmatpush1.bf16.msra.mxu0 %v4953
          %5184 = vmatprep.subr.bf16.mxu0 %v4950
          %5185 = vmatpush1.bf16.msra.mxu0 %v4949
          %5186 = vmatprep.subr.bf16.mxu0 %v4946
          %5187 = vmatpush1.bf16.msra.mxu0 %v4945
          %5188 = vmatprep.subr.bf16.mxu0 %v4942
          %5189 = vmatpush1.bf16.msra.mxu0 %v4941
          %5190 = vmatprep.subr.bf16.mxu0 %v5002
          %5191 = vmatpush2.bf16.msra.mxu0 %v5001
          %5192 = vmatprep.subr.bf16.mxu0 %v4998
          %5193 = vmatpush2.bf16.msra.mxu0 %v4997
          %5194 = vmatprep.subr.bf16.mxu0 %v4994
          %5195 = vmatpush2.bf16.msra.mxu0 %v4993
          %5196 = vmatprep.subr.bf16.mxu0 %v4990
          %5197 = vmatpush2.bf16.msra.mxu0 %v4989
          %5198 = vmatprep.subr.bf16.mxu0 %v4986
          %5199 = vmatpush2.bf16.msra.mxu0 %v4985
          %5200 = vmatprep.subr.bf16.mxu0 %v4982
          %5201 = vmatpush2.bf16.msra.mxu0 %v4981
          %5202 = vmatprep.subr.bf16.mxu0 %v4978
          %5203 = vmatpush2.bf16.msra.mxu0 %v4977
          %5204 = vmatprep.subr.bf16.mxu0 %v4974
          %5205 = vmatpush2.bf16.msra.mxu0 %v4973
          %5206 = vmatprep.mubr.bf16.mxu0 %v4342
          %5207 = vmatmul.mubr.bf16.gmra.mxu0 %v4341
          %v5208 = vpop.f32.mrf.mxu0
          %v5209 = vadd.f32 %v5168, %v5208
          %v5210 = vpop.f32.mrf.mxu0
          %v5211 = vadd.f32 %v5170, %v5210
          %v5212 = vpop.f32.mrf.mxu0
          %v5213 = vpop.f32.mrf.mxu0
          %5214 = vdwg.mxu0
          %5215 = vmatprep.subr.bf16.mxu0 %v4908
          %5216 = vmatpush1.bf16.msra.mxu0 %v4907
          %5217 = vmatprep.subr.bf16.mxu0 %v4904
          %5218 = vmatpush1.bf16.msra.mxu0 %v4903
          %5219 = vmatprep.subr.bf16.mxu0 %v4900
          %5220 = vmatpush1.bf16.msra.mxu0 %v4899
          %5221 = vmatprep.subr.bf16.mxu0 %v4896
          %5222 = vmatpush1.bf16.msra.mxu0 %v4895
          %5223 = vmatprep.subr.bf16.mxu0 %v4892
          %5224 = vmatpush1.bf16.msra.mxu0 %v4891
          %5225 = vmatprep.subr.bf16.mxu0 %v4888
          %5226 = vmatpush1.bf16.msra.mxu0 %v4887
          %5227 = vmatprep.subr.bf16.mxu0 %v4884
          %5228 = vmatpush1.bf16.msra.mxu0 %v4883
          %5229 = vmatprep.subr.bf16.mxu0 %v4880
          %5230 = vmatpush1.bf16.msra.mxu0 %v4879
          %5231 = vmatprep.subr.bf16.mxu0 %v4940
          %5232 = vmatpush2.bf16.msra.mxu0 %v4939
          %5233 = vmatprep.subr.bf16.mxu0 %v4936
          %5234 = vmatpush2.bf16.msra.mxu0 %v4935
          %5235 = vmatprep.subr.bf16.mxu0 %v4932
          %5236 = vmatpush2.bf16.msra.mxu0 %v4931
          %5237 = vmatprep.subr.bf16.mxu0 %v4928
          %5238 = vmatpush2.bf16.msra.mxu0 %v4927
          %5239 = vmatprep.subr.bf16.mxu0 %v4924
          %5240 = vmatpush2.bf16.msra.mxu0 %v4923
          %5241 = vmatprep.subr.bf16.mxu0 %v4920
          %5242 = vmatpush2.bf16.msra.mxu0 %v4919
          %5243 = vmatprep.subr.bf16.mxu0 %v4916
          %5244 = vmatpush2.bf16.msra.mxu0 %v4915
          %5245 = vmatprep.subr.bf16.mxu0 %v4912
          %5246 = vmatpush2.bf16.msra.mxu0 %v4911
          %5247 = vmatprep.mubr.bf16.mxu0 %v4340
          %5248 = vmatmul.mubr.bf16.gmra.mxu0 %v4339
          %v5249 = vpop.f32.mrf.mxu0
          %v5250 = vadd.f32 %v4484, %v5249
          %v5251 = vpop.f32.mrf.mxu0
          %v5252 = vadd.f32 %v4488, %v5251
          %v5253 = vpop.f32.mrf.mxu0
          %v5254 = vpop.f32.mrf.mxu0
          %5255 = vdwg.mxu0
          %5256 = vmatprep.subr.bf16.mxu0 %v4972
          %5257 = vmatpush1.bf16.msra.mxu0 %v4971
          %5258 = vmatprep.subr.bf16.mxu0 %v4968
          %5259 = vmatpush1.bf16.msra.mxu0 %v4967
          %5260 = vmatprep.subr.bf16.mxu0 %v4964
          %5261 = vmatpush1.bf16.msra.mxu0 %v4963
          %5262 = vmatprep.subr.bf16.mxu0 %v4960
          %5263 = vmatpush1.bf16.msra.mxu0 %v4959
          %5264 = vmatprep.subr.bf16.mxu0 %v4956
          %5265 = vmatpush1.bf16.msra.mxu0 %v4955
          %5266 = vmatprep.subr.bf16.mxu0 %v4952
          %5267 = vmatpush1.bf16.msra.mxu0 %v4951
          %5268 = vmatprep.subr.bf16.mxu0 %v4948
          %5269 = vmatpush1.bf16.msra.mxu0 %v4947
          %5270 = vmatprep.subr.bf16.mxu0 %v4944
          %5271 = vmatpush1.bf16.msra.mxu0 %v4943
          %5272 = vmatprep.subr.bf16.mxu0 %v5004
          %5273 = vmatpush2.bf16.msra.mxu0 %v5003
          %5274 = vmatprep.subr.bf16.mxu0 %v5000
          %5275 = vmatpush2.bf16.msra.mxu0 %v4999
          %5276 = vmatprep.subr.bf16.mxu0 %v4996
          %5277 = vmatpush2.bf16.msra.mxu0 %v4995
          %5278 = vmatprep.subr.bf16.mxu0 %v4992
          %5279 = vmatpush2.bf16.msra.mxu0 %v4991
          %5280 = vmatprep.subr.bf16.mxu0 %v4988
          %5281 = vmatpush2.bf16.msra.mxu0 %v4987
          %5282 = vmatprep.subr.bf16.mxu0 %v4984
          %5283 = vmatpush2.bf16.msra.mxu0 %v4983
          %5284 = vmatprep.subr.bf16.mxu0 %v4980
          %5285 = vmatpush2.bf16.msra.mxu0 %v4979
          %5286 = vmatprep.subr.bf16.mxu0 %v4976
          %5287 = vmatpush2.bf16.msra.mxu0 %v4975
          %5288 = vmatprep.mubr.bf16.mxu0 %v4342
          %5289 = vmatmul.mubr.bf16.gmra.mxu0 %v4341
          %v5290 = vpop.f32.mrf.mxu0
          %v5291 = vadd.f32 %v5250, %v5290
          %v5292 = vpop.f32.mrf.mxu0
          %v5293 = vadd.f32 %v5252, %v5292
          %v5294 = vpop.f32.mrf.mxu0
          %v5295 = vpop.f32.mrf.mxu0
          %5296 = vdwg.mxu0
          %v5297 = vmax.f32 %v5209, 0.0
          %v5298 = vmax.f32 %v5211, 0.0
          %v5299 = vmax.f32 %v5291, 0.0
          %v5300 = vmax.f32 %v5293, 0.0
          %v5301 = vpack.c.bf16 %v5297, %v5297
          %v5302 = vpack.c.bf16 %v5298, %v5298
          %v5303 = vpack.c.bf16 %v5299, %v5299
          %v5304 = vpack.c.bf16 %v5300, %v5300
          %v5305 = vld [vmem:[#allocation11] sm:$0xff]
          %v5306 = vld [vmem:[#allocation11 + $0x8] sm:$0xff]
          %v5307 = vld [vmem:[#allocation11 + $0x10] sm:$0xff]
          %v5308 = vld [vmem:[#allocation11 + $0x18] sm:$0xff]
          %v5309 = vld [vmem:[#allocation11 + $0x20] sm:$0xff]
          %v5310 = vld [vmem:[#allocation11 + $0x28] sm:$0xff]
          %v5311 = vld [vmem:[#allocation11 + $0x30] sm:$0xff]
          %v5312 = vld [vmem:[#allocation11 + $0x38] sm:$0xff]
          %v5313 = vld [vmem:[#allocation11 + $0x40] sm:$0xff]
          %v5314 = vld [vmem:[#allocation11 + $0x48] sm:$0xff]
          %v5315 = vld [vmem:[#allocation11 + $0x50] sm:$0xff]
          %v5316 = vld [vmem:[#allocation11 + $0x58] sm:$0xff]
          %v5317 = vld [vmem:[#allocation11 + $0x60] sm:$0xff]
          %v5318 = vld [vmem:[#allocation11 + $0x68] sm:$0xff]
          %v5319 = vld [vmem:[#allocation11 + $0x70] sm:$0xff]
          %v5320 = vld [vmem:[#allocation11 + $0x78] sm:$0xff]
          %v5321 = vld [vmem:[#allocation11 + $0x80] sm:$0xff]
          %v5322 = vld [vmem:[#allocation11 + $0x88] sm:$0xff]
          %v5323 = vld [vmem:[#allocation11 + $0x90] sm:$0xff]
          %v5324 = vld [vmem:[#allocation11 + $0x98] sm:$0xff]
          %v5325 = vld [vmem:[#allocation11 + $0xa0] sm:$0xff]
          %v5326 = vld [vmem:[#allocation11 + $0xa8] sm:$0xff]
          %v5327 = vld [vmem:[#allocation11 + $0xb0] sm:$0xff]
          %v5328 = vld [vmem:[#allocation11 + $0xb8] sm:$0xff]
          %v5329 = vld [vmem:[#allocation11 + $0xc0] sm:$0xff]
          %v5330 = vld [vmem:[#allocation11 + $0xc8] sm:$0xff]
          %v5331 = vld [vmem:[#allocation11 + $0xd0] sm:$0xff]
          %v5332 = vld [vmem:[#allocation11 + $0xd8] sm:$0xff]
          %v5333 = vld [vmem:[#allocation11 + $0xe0] sm:$0xff]
          %v5334 = vld [vmem:[#allocation11 + $0xe8] sm:$0xff]
          %v5335 = vld [vmem:[#allocation11 + $0xf0] sm:$0xff]
          %v5336 = vld [vmem:[#allocation11 + $0xf8] sm:$0xff]
          %v5337 = vld [vmem:[#allocation11 + $0x100] sm:$0xff]
          %v5338 = vld [vmem:[#allocation11 + $0x108] sm:$0xff]
          %v5339 = vld [vmem:[#allocation11 + $0x110] sm:$0xff]
          %v5340 = vld [vmem:[#allocation11 + $0x118] sm:$0xff]
          %v5341 = vld [vmem:[#allocation11 + $0x120] sm:$0xff]
          %v5342 = vld [vmem:[#allocation11 + $0x128] sm:$0xff]
          %v5343 = vld [vmem:[#allocation11 + $0x130] sm:$0xff]
          %v5344 = vld [vmem:[#allocation11 + $0x138] sm:$0xff]
          %v5345 = vld [vmem:[#allocation11 + $0x140] sm:$0xff]
          %v5346 = vld [vmem:[#allocation11 + $0x148] sm:$0xff]
          %v5347 = vld [vmem:[#allocation11 + $0x150] sm:$0xff]
          %v5348 = vld [vmem:[#allocation11 + $0x158] sm:$0xff]
          %v5349 = vld [vmem:[#allocation11 + $0x160] sm:$0xff]
          %v5350 = vld [vmem:[#allocation11 + $0x168] sm:$0xff]
          %v5351 = vld [vmem:[#allocation11 + $0x170] sm:$0xff]
          %v5352 = vld [vmem:[#allocation11 + $0x178] sm:$0xff]
          %v5353 = vld [vmem:[#allocation11 + $0x180] sm:$0xff]
          %v5354 = vld [vmem:[#allocation11 + $0x188] sm:$0xff]
          %v5355 = vld [vmem:[#allocation11 + $0x190] sm:$0xff]
          %v5356 = vld [vmem:[#allocation11 + $0x198] sm:$0xff]
          %v5357 = vld [vmem:[#allocation11 + $0x1a0] sm:$0xff]
          %v5358 = vld [vmem:[#allocation11 + $0x1a8] sm:$0xff]
          %v5359 = vld [vmem:[#allocation11 + $0x1b0] sm:$0xff]
          %v5360 = vld [vmem:[#allocation11 + $0x1b8] sm:$0xff]
          %v5361 = vld [vmem:[#allocation11 + $0x1c0] sm:$0xff]
          %v5362 = vld [vmem:[#allocation11 + $0x1c8] sm:$0xff]
          %v5363 = vld [vmem:[#allocation11 + $0x1d0] sm:$0xff]
          %v5364 = vld [vmem:[#allocation11 + $0x1d8] sm:$0xff]
          %v5365 = vld [vmem:[#allocation11 + $0x1e0] sm:$0xff]
          %v5366 = vld [vmem:[#allocation11 + $0x1e8] sm:$0xff]
          %v5367 = vld [vmem:[#allocation11 + $0x1f0] sm:$0xff]
          %v5368 = vld [vmem:[#allocation11 + $0x1f8] sm:$0xff]
          %v5369 = vld [vmem:[#allocation12] sm:$0x3]
          %v5371 = vlaneseq
          %v5372 = vshrl.u32 %v5371, 7
          %v5373 = vsub.s32 0, %v5372
          %v5374 = vrot.slane %v5369, %v5373
          %v5375 = vlaneseq
          %v5376 = vshrl.u32 %v5375, 7
          %v5377 = vsub.s32 1, %v5376
          %v5378 = vrot.slane %v5369, %v5377
          %v5445 = vunpack.c.l.b16 %v5305
          %v5446 = vunpack.c.h.b16 %v5305
          %v5447 = vunpack.c.l.b16 %v5306
          %v5448 = vunpack.c.h.b16 %v5306
          %v5449 = vunpack.c.l.b16 %v5307
          %v5450 = vunpack.c.h.b16 %v5307
          %v5451 = vunpack.c.l.b16 %v5308
          %v5452 = vunpack.c.h.b16 %v5308
          %v5453 = vunpack.c.l.b16 %v5309
          %v5454 = vunpack.c.h.b16 %v5309
          %v5455 = vunpack.c.l.b16 %v5310
          %v5456 = vunpack.c.h.b16 %v5310
          %v5457 = vunpack.c.l.b16 %v5311
          %v5458 = vunpack.c.h.b16 %v5311
          %v5459 = vunpack.c.l.b16 %v5312
          %v5460 = vunpack.c.h.b16 %v5312
          %v5461 = vunpack.c.l.b16 %v5313
          %v5462 = vunpack.c.h.b16 %v5313
          %v5463 = vunpack.c.l.b16 %v5314
          %v5464 = vunpack.c.h.b16 %v5314
          %v5465 = vunpack.c.l.b16 %v5315
          %v5466 = vunpack.c.h.b16 %v5315
          %v5467 = vunpack.c.l.b16 %v5316
          %v5468 = vunpack.c.h.b16 %v5316
          %v5469 = vunpack.c.l.b16 %v5317
          %v5470 = vunpack.c.h.b16 %v5317
          %v5471 = vunpack.c.l.b16 %v5318
          %v5472 = vunpack.c.h.b16 %v5318
          %v5473 = vunpack.c.l.b16 %v5319
          %v5474 = vunpack.c.h.b16 %v5319
          %v5475 = vunpack.c.l.b16 %v5320
          %v5476 = vunpack.c.h.b16 %v5320
          %v5477 = vunpack.c.l.b16 %v5321
          %v5478 = vunpack.c.h.b16 %v5321
          %v5479 = vunpack.c.l.b16 %v5322
          %v5480 = vunpack.c.h.b16 %v5322
          %v5481 = vunpack.c.l.b16 %v5323
          %v5482 = vunpack.c.h.b16 %v5323
          %v5483 = vunpack.c.l.b16 %v5324
          %v5484 = vunpack.c.h.b16 %v5324
          %v5485 = vunpack.c.l.b16 %v5325
          %v5486 = vunpack.c.h.b16 %v5325
          %v5487 = vunpack.c.l.b16 %v5326
          %v5488 = vunpack.c.h.b16 %v5326
          %v5489 = vunpack.c.l.b16 %v5327
          %v5490 = vunpack.c.h.b16 %v5327
          %v5491 = vunpack.c.l.b16 %v5328
          %v5492 = vunpack.c.h.b16 %v5328
          %v5493 = vunpack.c.l.b16 %v5329
          %v5494 = vunpack.c.h.b16 %v5329
          %v5495 = vunpack.c.l.b16 %v5330
          %v5496 = vunpack.c.h.b16 %v5330
          %v5497 = vunpack.c.l.b16 %v5331
          %v5498 = vunpack.c.h.b16 %v5331
          %v5499 = vunpack.c.l.b16 %v5332
          %v5500 = vunpack.c.h.b16 %v5332
          %v5501 = vunpack.c.l.b16 %v5333
          %v5502 = vunpack.c.h.b16 %v5333
          %v5503 = vunpack.c.l.b16 %v5334
          %v5504 = vunpack.c.h.b16 %v5334
          %v5505 = vunpack.c.l.b16 %v5335
          %v5506 = vunpack.c.h.b16 %v5335
          %v5507 = vunpack.c.l.b16 %v5336
          %v5508 = vunpack.c.h.b16 %v5336
          %v5509 = vunpack.c.l.b16 %v5337
          %v5510 = vunpack.c.h.b16 %v5337
          %v5511 = vunpack.c.l.b16 %v5338
          %v5512 = vunpack.c.h.b16 %v5338
          %v5513 = vunpack.c.l.b16 %v5339
          %v5514 = vunpack.c.h.b16 %v5339
          %v5515 = vunpack.c.l.b16 %v5340
          %v5516 = vunpack.c.h.b16 %v5340
          %v5517 = vunpack.c.l.b16 %v5341
          %v5518 = vunpack.c.h.b16 %v5341
          %v5519 = vunpack.c.l.b16 %v5342
          %v5520 = vunpack.c.h.b16 %v5342
          %v5521 = vunpack.c.l.b16 %v5343
          %v5522 = vunpack.c.h.b16 %v5343
          %v5523 = vunpack.c.l.b16 %v5344
          %v5524 = vunpack.c.h.b16 %v5344
          %v5525 = vunpack.c.l.b16 %v5345
          %v5526 = vunpack.c.h.b16 %v5345
          %v5527 = vunpack.c.l.b16 %v5346
          %v5528 = vunpack.c.h.b16 %v5346
          %v5529 = vunpack.c.l.b16 %v5347
          %v5530 = vunpack.c.h.b16 %v5347
          %v5531 = vunpack.c.l.b16 %v5348
          %v5532 = vunpack.c.h.b16 %v5348
          %v5533 = vunpack.c.l.b16 %v5349
          %v5534 = vunpack.c.h.b16 %v5349
          %v5535 = vunpack.c.l.b16 %v5350
          %v5536 = vunpack.c.h.b16 %v5350
          %v5537 = vunpack.c.l.b16 %v5351
          %v5538 = vunpack.c.h.b16 %v5351
          %v5539 = vunpack.c.l.b16 %v5352
          %v5540 = vunpack.c.h.b16 %v5352
          %v5541 = vunpack.c.l.b16 %v5353
          %v5542 = vunpack.c.h.b16 %v5353
          %v5543 = vunpack.c.l.b16 %v5354
          %v5544 = vunpack.c.h.b16 %v5354
          %v5545 = vunpack.c.l.b16 %v5355
          %v5546 = vunpack.c.h.b16 %v5355
          %v5547 = vunpack.c.l.b16 %v5356
          %v5548 = vunpack.c.h.b16 %v5356
          %v5549 = vunpack.c.l.b16 %v5357
          %v5550 = vunpack.c.h.b16 %v5357
          %v5551 = vunpack.c.l.b16 %v5358
          %v5552 = vunpack.c.h.b16 %v5358
          %v5553 = vunpack.c.l.b16 %v5359
          %v5554 = vunpack.c.h.b16 %v5359
          %v5555 = vunpack.c.l.b16 %v5360
          %v5556 = vunpack.c.h.b16 %v5360
          %v5557 = vunpack.c.l.b16 %v5361
          %v5558 = vunpack.c.h.b16 %v5361
          %v5559 = vunpack.c.l.b16 %v5362
          %v5560 = vunpack.c.h.b16 %v5362
          %v5561 = vunpack.c.l.b16 %v5363
          %v5562 = vunpack.c.h.b16 %v5363
          %v5563 = vunpack.c.l.b16 %v5364
          %v5564 = vunpack.c.h.b16 %v5364
          %v5565 = vunpack.c.l.b16 %v5365
          %v5566 = vunpack.c.h.b16 %v5365
          %v5567 = vunpack.c.l.b16 %v5366
          %v5568 = vunpack.c.h.b16 %v5366
          %v5569 = vunpack.c.l.b16 %v5367
          %v5570 = vunpack.c.h.b16 %v5367
          %v5571 = vunpack.c.l.b16 %v5368
          %v5572 = vunpack.c.h.b16 %v5368
          %v5573 = vpack.c.b16 %v5447, %v5445
          %v5574 = vpack.c.b16 %v5448, %v5446
          %v5575 = vpack.c.b16 %v5451, %v5449
          %v5576 = vpack.c.b16 %v5452, %v5450
          %v5577 = vpack.c.b16 %v5455, %v5453
          %v5578 = vpack.c.b16 %v5456, %v5454
          %v5579 = vpack.c.b16 %v5459, %v5457
          %v5580 = vpack.c.b16 %v5460, %v5458
          %v5581 = vpack.c.b16 %v5463, %v5461
          %v5582 = vpack.c.b16 %v5464, %v5462
          %v5583 = vpack.c.b16 %v5467, %v5465
          %v5584 = vpack.c.b16 %v5468, %v5466
          %v5585 = vpack.c.b16 %v5471, %v5469
          %v5586 = vpack.c.b16 %v5472, %v5470
          %v5587 = vpack.c.b16 %v5475, %v5473
          %v5588 = vpack.c.b16 %v5476, %v5474
          %v5589 = vpack.c.b16 %v5479, %v5477
          %v5590 = vpack.c.b16 %v5480, %v5478
          %v5591 = vpack.c.b16 %v5483, %v5481
          %v5592 = vpack.c.b16 %v5484, %v5482
          %v5593 = vpack.c.b16 %v5487, %v5485
          %v5594 = vpack.c.b16 %v5488, %v5486
          %v5595 = vpack.c.b16 %v5491, %v5489
          %v5596 = vpack.c.b16 %v5492, %v5490
          %v5597 = vpack.c.b16 %v5495, %v5493
          %v5598 = vpack.c.b16 %v5496, %v5494
          %v5599 = vpack.c.b16 %v5499, %v5497
          %v5600 = vpack.c.b16 %v5500, %v5498
          %v5601 = vpack.c.b16 %v5503, %v5501
          %v5602 = vpack.c.b16 %v5504, %v5502
          %v5603 = vpack.c.b16 %v5507, %v5505
          %v5604 = vpack.c.b16 %v5508, %v5506
          %v5605 = vpack.c.b16 %v5511, %v5509
          %v5606 = vpack.c.b16 %v5512, %v5510
          %v5607 = vpack.c.b16 %v5515, %v5513
          %v5608 = vpack.c.b16 %v5516, %v5514
          %v5609 = vpack.c.b16 %v5519, %v5517
          %v5610 = vpack.c.b16 %v5520, %v5518
          %v5611 = vpack.c.b16 %v5523, %v5521
          %v5612 = vpack.c.b16 %v5524, %v5522
          %v5613 = vpack.c.b16 %v5527, %v5525
          %v5614 = vpack.c.b16 %v5528, %v5526
          %v5615 = vpack.c.b16 %v5531, %v5529
          %v5616 = vpack.c.b16 %v5532, %v5530
          %v5617 = vpack.c.b16 %v5535, %v5533
          %v5618 = vpack.c.b16 %v5536, %v5534
          %v5619 = vpack.c.b16 %v5539, %v5537
          %v5620 = vpack.c.b16 %v5540, %v5538
          %v5621 = vpack.c.b16 %v5543, %v5541
          %v5622 = vpack.c.b16 %v5544, %v5542
          %v5623 = vpack.c.b16 %v5547, %v5545
          %v5624 = vpack.c.b16 %v5548, %v5546
          %v5625 = vpack.c.b16 %v5551, %v5549
          %v5626 = vpack.c.b16 %v5552, %v5550
          %v5627 = vpack.c.b16 %v5555, %v5553
          %v5628 = vpack.c.b16 %v5556, %v5554
          %v5629 = vpack.c.b16 %v5559, %v5557
          %v5630 = vpack.c.b16 %v5560, %v5558
          %v5631 = vpack.c.b16 %v5563, %v5561
          %v5632 = vpack.c.b16 %v5564, %v5562
          %v5633 = vpack.c.b16 %v5567, %v5565
          %v5634 = vpack.c.b16 %v5568, %v5566
          %v5635 = vpack.c.b16 %v5571, %v5569
          %v5636 = vpack.c.b16 %v5572, %v5570
          %5701 = vmatprep.subr.bf16.mxu0 %v5588
          %5702 = vmatpush1.bf16.msra.mxu0 %v5587
          %5703 = vmatprep.subr.bf16.mxu0 %v5586
          %5704 = vmatpush1.bf16.msra.mxu0 %v5585
          %5705 = vmatprep.subr.bf16.mxu0 %v5584
          %5706 = vmatpush1.bf16.msra.mxu0 %v5583
          %5707 = vmatprep.subr.bf16.mxu0 %v5582
          %5708 = vmatpush1.bf16.msra.mxu0 %v5581
          %5709 = vmatprep.subr.bf16.mxu0 %v5580
          %5710 = vmatpush1.bf16.msra.mxu0 %v5579
          %5711 = vmatprep.subr.bf16.mxu0 %v5578
          %5712 = vmatpush1.bf16.msra.mxu0 %v5577
          %5713 = vmatprep.subr.bf16.mxu0 %v5576
          %5714 = vmatpush1.bf16.msra.mxu0 %v5575
          %5715 = vmatprep.subr.bf16.mxu0 %v5574
          %5716 = vmatpush1.bf16.msra.mxu0 %v5573
          %5717 = vmatprep.subr.bf16.mxu0 %v5604
          %5718 = vmatpush2.bf16.msra.mxu0 %v5603
          %5719 = vmatprep.subr.bf16.mxu0 %v5602
          %5720 = vmatpush2.bf16.msra.mxu0 %v5601
          %5721 = vmatprep.subr.bf16.mxu0 %v5600
          %5722 = vmatpush2.bf16.msra.mxu0 %v5599
          %5723 = vmatprep.subr.bf16.mxu0 %v5598
          %5724 = vmatpush2.bf16.msra.mxu0 %v5597
          %5725 = vmatprep.subr.bf16.mxu0 %v5596
          %5726 = vmatpush2.bf16.msra.mxu0 %v5595
          %5727 = vmatprep.subr.bf16.mxu0 %v5594
          %5728 = vmatpush2.bf16.msra.mxu0 %v5593
          %5729 = vmatprep.subr.bf16.mxu0 %v5592
          %5730 = vmatpush2.bf16.msra.mxu0 %v5591
          %5731 = vmatprep.subr.bf16.mxu0 %v5590
          %5732 = vmatpush2.bf16.msra.mxu0 %v5589
          %5733 = vmatprep.mubr.bf16.mxu0 %v5302
          %5734 = vmatmul.mubr.bf16.gmra.mxu0 %v5301
          %v5735 = vpop.f32.mrf.mxu0
          %v5736 = vadd.f32 %v5374, %v5735
          %v5737 = vpop.f32.mrf.mxu0
          %v5738 = vadd.f32 %v5378, %v5737
          %v5739 = vpop.f32.mrf.mxu0
          %v5740 = vpop.f32.mrf.mxu0
          %5741 = vdwg.mxu0
          %5742 = vmatprep.subr.bf16.mxu0 %v5620
          %5743 = vmatpush1.bf16.msra.mxu0 %v5619
          %5744 = vmatprep.subr.bf16.mxu0 %v5618
          %5745 = vmatpush1.bf16.msra.mxu0 %v5617
          %5746 = vmatprep.subr.bf16.mxu0 %v5616
          %5747 = vmatpush1.bf16.msra.mxu0 %v5615
          %5748 = vmatprep.subr.bf16.mxu0 %v5614
          %5749 = vmatpush1.bf16.msra.mxu0 %v5613
          %5750 = vmatprep.subr.bf16.mxu0 %v5612
          %5751 = vmatpush1.bf16.msra.mxu0 %v5611
          %5752 = vmatprep.subr.bf16.mxu0 %v5610
          %5753 = vmatpush1.bf16.msra.mxu0 %v5609
          %5754 = vmatprep.subr.bf16.mxu0 %v5608
          %5755 = vmatpush1.bf16.msra.mxu0 %v5607
          %5756 = vmatprep.subr.bf16.mxu0 %v5606
          %5757 = vmatpush1.bf16.msra.mxu0 %v5605
          %5758 = vmatprep.subr.bf16.mxu0 %v5636
          %5759 = vmatpush2.bf16.msra.mxu0 %v5635
          %5760 = vmatprep.subr.bf16.mxu0 %v5634
          %5761 = vmatpush2.bf16.msra.mxu0 %v5633
          %5762 = vmatprep.subr.bf16.mxu0 %v5632
          %5763 = vmatpush2.bf16.msra.mxu0 %v5631
          %5764 = vmatprep.subr.bf16.mxu0 %v5630
          %5765 = vmatpush2.bf16.msra.mxu0 %v5629
          %5766 = vmatprep.subr.bf16.mxu0 %v5628
          %5767 = vmatpush2.bf16.msra.mxu0 %v5627
          %5768 = vmatprep.subr.bf16.mxu0 %v5626
          %5769 = vmatpush2.bf16.msra.mxu0 %v5625
          %5770 = vmatprep.subr.bf16.mxu0 %v5624
          %5771 = vmatpush2.bf16.msra.mxu0 %v5623
          %5772 = vmatprep.subr.bf16.mxu0 %v5622
          %5773 = vmatpush2.bf16.msra.mxu0 %v5621
          %5774 = vmatprep.mubr.bf16.mxu0 %v5304
          %5775 = vmatmul.mubr.bf16.gmra.mxu0 %v5303
          %v5776 = vpop.f32.mrf.mxu0
          %v5777 = vadd.f32 %v5736, %v5776
          %v5778 = vpop.f32.mrf.mxu0
          %v5779 = vadd.f32 %v5738, %v5778
          %v5780 = vpop.f32.mrf.mxu0
          %v5781 = vpop.f32.mrf.mxu0
          %5782 = vdwg.mxu0
          %v5783 = vmax.f32 %v5777, 0.0
          %v5784 = vmax.f32 %v5779, 0.0
          %v5785 = vpack.c.bf16 %v5783, %v5783
          %v5786 = vpack.c.bf16 %v5784, %v5784
          %v5787 = vld [vmem:[#allocation14] sm:$0xf]
          %v5788 = vld [vmem:[#allocation14 + $0x4] sm:$0xf]
          %v5789 = vld [vmem:[#allocation14 + $0x8] sm:$0xf]
          %v5790 = vld [vmem:[#allocation14 + $0xc] sm:$0xf]
          %v5791 = vld [vmem:[#allocation14 + $0x10] sm:$0xf]
          %v5792 = vld [vmem:[#allocation14 + $0x14] sm:$0xf]
          %v5793 = vld [vmem:[#allocation14 + $0x18] sm:$0xf]
          %v5794 = vld [vmem:[#allocation14 + $0x1c] sm:$0xf]
          %v5795 = vld [vmem:[#allocation14 + $0x20] sm:$0xf]
          %v5796 = vld [vmem:[#allocation14 + $0x24] sm:$0xf]
          %v5797 = vld [vmem:[#allocation14 + $0x28] sm:$0xf]
          %v5798 = vld [vmem:[#allocation14 + $0x2c] sm:$0xf]
          %v5799 = vld [vmem:[#allocation14 + $0x30] sm:$0xf]
          %v5800 = vld [vmem:[#allocation14 + $0x34] sm:$0xf]
          %v5801 = vld [vmem:[#allocation14 + $0x38] sm:$0xf]
          %v5802 = vld [vmem:[#allocation14 + $0x3c] sm:$0xf]
          %v5803 = vld [vmem:[#allocation14 + $0x40] sm:$0xf]
          %v5804 = vld [vmem:[#allocation14 + $0x44] sm:$0xf]
          %v5805 = vld [vmem:[#allocation14 + $0x48] sm:$0xf]
          %v5806 = vld [vmem:[#allocation14 + $0x4c] sm:$0xf]
          %v5807 = vld [vmem:[#allocation14 + $0x50] sm:$0xf]
          %v5808 = vld [vmem:[#allocation14 + $0x54] sm:$0xf]
          %v5809 = vld [vmem:[#allocation14 + $0x58] sm:$0xf]
          %v5810 = vld [vmem:[#allocation14 + $0x5c] sm:$0xf]
          %v5811 = vld [vmem:[#allocation14 + $0x60] sm:$0xf]
          %v5812 = vld [vmem:[#allocation14 + $0x64] sm:$0xf]
          %v5813 = vld [vmem:[#allocation14 + $0x68] sm:$0xf]
          %v5814 = vld [vmem:[#allocation14 + $0x6c] sm:$0xf]
          %v5815 = vld [vmem:[#allocation14 + $0x70] sm:$0xf]
          %v5816 = vld [vmem:[#allocation14 + $0x74] sm:$0xf]
          %v5817 = vld [vmem:[#allocation14 + $0x78] sm:$0xf]
          %v5818 = vld [vmem:[#allocation14 + $0x7c] sm:$0xf]
          %v5819 = vld [vmem:[#allocation15] sm:$0x1]
          %v5821 = vlaneseq
          %v5822 = vshrl.u32 %v5821, 7
          %v5823 = vsub.s32 0, %v5822
          %v5824 = vrot.slane %v5819, %v5823
          %v5858 = vunpack.c.l.b16 %v5787
          %v5859 = vunpack.c.l.b16 %v5788
          %v5860 = vunpack.c.l.b16 %v5789
          %v5861 = vunpack.c.l.b16 %v5790
          %v5862 = vunpack.c.l.b16 %v5791
          %v5863 = vunpack.c.l.b16 %v5792
          %v5864 = vunpack.c.l.b16 %v5793
          %v5865 = vunpack.c.l.b16 %v5794
          %v5866 = vunpack.c.l.b16 %v5795
          %v5867 = vunpack.c.l.b16 %v5796
          %v5868 = vunpack.c.l.b16 %v5797
          %v5869 = vunpack.c.l.b16 %v5798
          %v5870 = vunpack.c.l.b16 %v5799
          %v5871 = vunpack.c.l.b16 %v5800
          %v5872 = vunpack.c.l.b16 %v5801
          %v5873 = vunpack.c.l.b16 %v5802
          %v5874 = vunpack.c.l.b16 %v5803
          %v5875 = vunpack.c.l.b16 %v5804
          %v5876 = vunpack.c.l.b16 %v5805
          %v5877 = vunpack.c.l.b16 %v5806
          %v5878 = vunpack.c.l.b16 %v5807
          %v5879 = vunpack.c.l.b16 %v5808
          %v5880 = vunpack.c.l.b16 %v5809
          %v5881 = vunpack.c.l.b16 %v5810
          %v5882 = vunpack.c.l.b16 %v5811
          %v5883 = vunpack.c.l.b16 %v5812
          %v5884 = vunpack.c.l.b16 %v5813
          %v5885 = vunpack.c.l.b16 %v5814
          %v5886 = vunpack.c.l.b16 %v5815
          %v5887 = vunpack.c.l.b16 %v5816
          %v5888 = vunpack.c.l.b16 %v5817
          %v5889 = vunpack.c.l.b16 %v5818
          %v5890 = vpack.c.b16 %v5859, %v5858
          %v5891 = vpack.c.b16 %v5861, %v5860
          %v5892 = vpack.c.b16 %v5863, %v5862
          %v5893 = vpack.c.b16 %v5865, %v5864
          %v5894 = vpack.c.b16 %v5867, %v5866
          %v5895 = vpack.c.b16 %v5869, %v5868
          %v5896 = vpack.c.b16 %v5871, %v5870
          %v5897 = vpack.c.b16 %v5873, %v5872
          %v5898 = vpack.c.b16 %v5875, %v5874
          %v5899 = vpack.c.b16 %v5877, %v5876
          %v5900 = vpack.c.b16 %v5879, %v5878
          %v5901 = vpack.c.b16 %v5881, %v5880
          %v5902 = vpack.c.b16 %v5883, %v5882
          %v5903 = vpack.c.b16 %v5885, %v5884
          %v5904 = vpack.c.b16 %v5887, %v5886
          %v5905 = vpack.c.b16 %v5889, %v5888
          %5922 = vmatprep.subr.bf16.mxu0 0
          %5923 = vmatpush1.bf16.msra.mxu0 %v5897
          %5924 = vmatprep.subr.bf16.mxu0 0
          %5925 = vmatpush1.bf16.msra.mxu0 %v5896
          %5926 = vmatprep.subr.bf16.mxu0 0
          %5927 = vmatpush1.bf16.msra.mxu0 %v5895
          %5928 = vmatprep.subr.bf16.mxu0 0
          %5929 = vmatpush1.bf16.msra.mxu0 %v5894
          %5930 = vmatprep.subr.bf16.mxu0 0
          %5931 = vmatpush1.bf16.msra.mxu0 %v5893
          %5932 = vmatprep.subr.bf16.mxu0 0
          %5933 = vmatpush1.bf16.msra.mxu0 %v5892
          %5934 = vmatprep.subr.bf16.mxu0 0
          %5935 = vmatpush1.bf16.msra.mxu0 %v5891
          %5936 = vmatprep.subr.bf16.mxu0 0
          %5937 = vmatpush1.bf16.msra.mxu0 %v5890
          %5938 = vmatprep.subr.bf16.mxu0 0
          %5939 = vmatpush2.bf16.msra.mxu0 %v5905
          %5940 = vmatprep.subr.bf16.mxu0 0
          %5941 = vmatpush2.bf16.msra.mxu0 %v5904
          %5942 = vmatprep.subr.bf16.mxu0 0
          %5943 = vmatpush2.bf16.msra.mxu0 %v5903
          %5944 = vmatprep.subr.bf16.mxu0 0
          %5945 = vmatpush2.bf16.msra.mxu0 %v5902
          %5946 = vmatprep.subr.bf16.mxu0 0
          %5947 = vmatpush2.bf16.msra.mxu0 %v5901
          %5948 = vmatprep.subr.bf16.mxu0 0
          %5949 = vmatpush2.bf16.msra.mxu0 %v5900
          %5950 = vmatprep.subr.bf16.mxu0 0
          %5951 = vmatpush2.bf16.msra.mxu0 %v5899
          %5952 = vmatprep.subr.bf16.mxu0 0
          %5953 = vmatpush2.bf16.msra.mxu0 %v5898
          %5954 = vmatprep.mubr.bf16.mxu0 %v5786
          %5955 = vmatmul.mubr.bf16.gmra.mxu0 %v5785
          %v5956 = vpop.f32.mrf.mxu0
          %v5957 = vadd.f32 %v5824, %v5956
          %v5958 = vpop.f32.mrf.mxu0
          %v5959 = vpop.f32.mrf.mxu0
          %v5960 = vpop.f32.mrf.mxu0
          %5961 = vdwg.mxu0
          %5962 = vst [vmem:[#allocation17] sm:$0xff] %v5957
        $region96: #{mlp_forward.1} parent=55 // pred_fallthru
          _
        // Predicated region
        $region97: #{mlp_forward.1} parent=55 // pred_check
          %p5963 = pneg %p259
        $region98: #{mlp_forward.1} parent=55 // pred_check_branch
          %5965 = sbr.rel (%p5963) target = $region100
        $region99: #{mlp_forward.1} parent=55 // pred_region
          %s5967 = ssub.s32 128, 128
          %5968 = vsyncadd [#allocation5], %s5967
          %s5969 = smul.addr %s32, 128
          %s5970 = scalar_lea.hbm %s9, %s5969
          %s5972 = sshll.u32 [#allocation17], 4
          %s5973 = int_to_ptr.vmem [resolvable:$true] %s5972
          %5975 = dma.vmem_to_hbm [thread:$0]  %s5973, 128, %s5970, [#allocation5]
        $region100: #{mlp_forward.1} parent=55 // pred_fallthru
          _
        // Predicated region
        $region101: #{mlp_forward.1} parent=55 // pred_check
          %p5976 = pneg %p259
        $region102: #{mlp_forward.1} parent=55 // pred_check_branch
          %5978 = sbr.rel (%p5976) target = $region104
        $region103: #{mlp_forward.1} parent=55 // pred_region
          %5979 = dma.done [#allocation5], 128
        $region104: #{mlp_forward.1} parent=55 // pred_fallthru
          _
      $region56: #{mlp_forward.1} parent=5 // pred_fallthru
        _
      %p5980 = scmp.le.s32.totalorder 2, %s23
      // Predicated region
      $region105: #{mlp_forward.1} parent=5 // pred_check
        %p5981 = pneg %p5980
      $region106: #{mlp_forward.1} parent=5 // pred_check_branch
        %5983 = sbr.rel (%p5981) target = $region108
      $region107: #{mlp_forward.1} parent=5 // pred_region
        %s5984 = ssub.s32 %s23, 2
      $region108: #{mlp_forward.1} parent=5 // pred_fallthru
        _
    $region6: #{mlp_forward.1} parent=1 // loop_footer
      %s27 = sadd.s32 1, %s23
    $region7: #{mlp_forward.1} parent=1 // loop_footer_branch
      %22 = sbr.rel target = $region3
    $region8: #{mlp_forward.1} parent=1 // loop_exit
      _
    %5985 = vsyncpa [#allocation4], 1
    %s5986 = scalar_lea.sflag [#allocation4], 1
    %5987 = vsyncpa %s5986, 1
    %5988 = vsyncpa [#allocation7], 1
    %5989 = vsyncpa [#allocation10], 1
    %5990 = vsyncpa [#allocation13], 1
    %5991 = vsyncpa [#allocation16], 1
    %5992 = vsyncpa [#allocation5], 1
    %s5993 = scalar_lea.sflag [#allocation5], 1
    %5994 = vsyncpa %s5993, 1

</llo_original>
